<compile_context>
chip_gen: v6e
topology: v6e:2x2x1
jax: 0.10.0
libtpu: 0.0.40
codegen_flags: <defaults>
</compile_context>

<pallas_src>
import functools

import jax
import jax.numpy as jnp
from jax.experimental import pallas as pl
from jax.experimental.pallas import tpu as pltpu

EPS = 1e-5                       # nn.BatchNorm2d default eps

_BUFFERED1 = False               # set by probe_buffered()


# --------------------------- device-aware knobs ----------------------------- #

def _vmem_limit():
    try:
        cap = int(pltpu.get_tpu_info().vmem_capacity_bytes)
    except Exception:
        cap = 64 * 1024 * 1024
    return max(32 * 1024 * 1024, min(100 * 1024 * 1024, (cap * 3) // 4))


def _probe_kernel(x_ref, o_ref):
    o_ref[...] = x_ref[...] + 1.0


def probe_buffered():
    """Probe (once, outside jit) whether pipeline_mode=pl.Buffered(1) works."""
    global _BUFFERED1
    try:
        spec = pl.BlockSpec((8, 128), lambda i: (0, 0),
                            pipeline_mode=pl.Buffered(1))
        fn = pl.pallas_call(
            _probe_kernel,
            grid=(2,),
            in_specs=[spec],
            out_specs=pl.BlockSpec((8, 128), lambda i: (i, 0)),
            out_shape=jax.ShapeDtypeStruct((16, 128), jnp.float32))
        jax.block_until_ready(fn(jnp.zeros((8, 128), jnp.float32)))
        _BUFFERED1 = True
    except Exception:
        _BUFFERED1 = False
    return _BUFFERED1


def _const_spec(shape, grid_ndim):
    """Full-array block with constant index map; single-buffered if possible."""
    nd = len(shape)
    if grid_ndim == 1:
        idx = lambda b: (0,) * nd
    else:
        idx = lambda b, t: (0,) * nd
    if _BUFFERED1:
        return pl.BlockSpec(shape, idx, pipeline_mode=pl.Buffered(1))
    return pl.BlockSpec(shape, idx)


# ----------------------------- Pallas kernels ------------------------------- #

def _conv1_kernel(p_ref, w1_ref, y_ref, st_ref):
    """conv1 matmul + partial BN sums (identity-shortcut variant)."""
    y = jnp.dot(p_ref[0], w1_ref[...], preferred_element_type=jnp.float32)
    y_ref[0] = y.astype(y_ref.dtype)
    st_ref[0, 0:1, :] = jnp.sum(y, axis=0, keepdims=True)
    st_ref[0, 1:2, :] = jnp.sum(y * y, axis=0, keepdims=True)


def _conv1_proj_kernel(p_ref, x0_ref, w1_ref, wsc_ref, y_ref, sc_ref, st_ref):
    """conv1 matmul + 1x1 projection-shortcut matmul + partial BN sums."""
    y = jnp.dot(p_ref[0], w1_ref[...], preferred_element_type=jnp.float32)
    s = jnp.dot(x0_ref[0], wsc_ref[...], preferred_element_type=jnp.float32)
    y_ref[0] = y.astype(y_ref.dtype)
    sc_ref[0] = s.astype(sc_ref.dtype)
    st_ref[0, 0:1, :] = jnp.sum(y, axis=0, keepdims=True)
    st_ref[0, 1:2, :] = jnp.sum(y * y, axis=0, keepdims=True)
    st_ref[0, 2:3, :] = jnp.sum(s, axis=0, keepdims=True)
    st_ref[0, 3:4, :] = jnp.sum(s * s, axis=0, keepdims=True)


def _conv2_block_kernel(y1_ref, ab1_ref, w2_ref, sc_ref, scab_ref,
                        r_ref, st_ref, xpad_ref, *, ho, wo):
    """Fused per-image stage:
       x1 = relu(bn1*mask1 affine (y1))        (affine folded in wrapper)
       z  = conv2_3x3(x1) with mask2 folded into the weight columns
       r  = relu(z + shortcut-affine(sc))      (identity or projection BN)
       plus bn2 partial sums of r (f32)."""
    cp = xpad_ref.shape[-1]
    hw = ho * wo

    x1 = jnp.maximum(
        y1_ref[0, :hw, :].astype(jnp.float32) * ab1_ref[0:1, :] + ab1_ref[1:2, :],
        0.0).astype(jnp.bfloat16)

    # Build the zero-halo image for the 3x3 implicit GEMM.
    xpad_ref[...] = jnp.zeros_like(xpad_ref)
    xpad_ref[1:ho + 1, 1:wo + 1, :] = x1.reshape(ho, wo, cp)

    acc = None
    for k in range(9):
        kh, kw = divmod(k, 3)
        xs = xpad_ref[kh:kh + ho, kw:kw + wo, :].reshape(hw, cp)
        d = jnp.dot(xs, w2_ref[k], preferred_element_type=jnp.float32)
        acc = d if acc is None else acc + d

    scv = sc_ref[0, :hw, :].astype(jnp.float32)
    csc = scv.shape[-1]
    if csc < cp:   # identity shortcut fed unpadded: place into first csc lanes
        scv = jnp.concatenate(
            [scv, jnp.zeros((hw, cp - csc), jnp.float32)], axis=-1)

    r = jnp.maximum(acc + scv * scab_ref[0:1, :] + scab_ref[1:2, :], 0.0)
    r_ref[0] = r.astype(r_ref.dtype)
    st_ref[0, 0:1, :] = jnp.sum(r, axis=0, keepdims=True)
    st_ref[0, 1:2, :] = jnp.sum(r * r, axis=0, keepdims=True)


def _affine_kernel(y_ref, ab_ref, o_ref):
    """out = y*scale + shift with per-channel scale/shift (bn2*mask3)."""
    o_ref[0] = (y_ref[0].astype(jnp.float32) * ab_ref[0:1, :]
                + ab_ref[1:2, :]).astype(o_ref.dtype)


# ------------------------------- JAX glue ------------------------------------ #

def _round_up(x, m):
    return (x + m - 1) // m * m


def _split_rows(hw, max_tile):
    """Balanced, 16-aligned row tiling of hw: returns (tile, n_tiles, padded)."""
    max_tile = max(16, int(max_tile))
    n = -(-hw // max_tile)
    t = _round_up(-(-hw // n), 16)
    n = -(-hw // t)
    return t, n, t * n


def _im2col_3x3(x_nhwc, stride):
    """3x3, padding=1 patch extraction -> (N, Ho*Wo, 9*C)."""
    n, h, w, c = x_nhwc.shape
    xp = jnp.pad(x_nhwc, ((0, 0), (1, 1), (1, 1), (0, 0)))
    ho = (h - 1) // stride + 1
    wo = (w - 1) // stride + 1
    cols = []
    for kh in range(3):
        for kw in range(3):
            cols.append(xp[:, kh:kh + (ho - 1) * stride + 1:stride,
                              kw:kw + (wo - 1) * stride + 1:stride, :])
    patches = jnp.concatenate(cols, axis=-1)                  # (N, Ho, Wo, 9C)
    return patches.reshape(n, ho * wo, 9 * c), ho, wo


def _w1_to_mat(w_oihw):
    """(Co, Ci, 3, 3) -> (9*Ci, Co), matching _im2col column ordering."""
    co, ci, kh, kw = w_oihw.shape
    return jnp.transpose(w_oihw, (2, 3, 1, 0)).reshape(kh * kw * ci, co)


def _w2_to_taps(w_oihw, col_scale):
    """(Co, Ci, 3, 3) -> (9, Ci, Co) tap matrices, columns scaled by mask2."""
    co, ci, _, _ = w_oihw.shape
    w = jnp.transpose(w_oihw, (2, 3, 1, 0)) * col_scale        # (3, 3, Ci, Co)
    return w.reshape(9, ci, co)


def _bn_affine(s1, s2, count, gamma, beta, post_mask=None):
    """Per-channel affine for training-mode BN from sum / sum-of-squares."""
    mean = s1 / count
    var = jnp.maximum(s2 / count - mean * mean, 0.0)
    scale = gamma * jax.lax.rsqrt(var + EPS)
    shift = beta - mean * scale
    if post_mask is not None:       # mask applied after BN: fold into affine
        scale = scale * post_mask
        shift = shift * post_mask
    return scale, shift


def _pack_ab(scale, shift):
    ab = jnp.zeros((8, scale.shape[0]), jnp.float32)
    return ab.at[0].set(scale).at[1].set(shift)


def init_params(key, c_in, c_out, stride):
    # NOTE: Mask.reset_parameters sets P=1.0; non-trivial values are used here
    # so the test actually validates the mask folding.
    ks = jax.random.split(key, 11)
    p = {
        "w1": 0.1 * jax.random.normal(ks[0], (c_out, c_in, 3, 3), jnp.float32),
        "bn1_gamma": 1.0 + 0.1 * jax.random.normal(ks[1], (c_out,), jnp.float32),
        "bn1_beta": 0.1 * jax.random.normal(ks[2], (c_out,), jnp.float32),
        "mask1": 1.0 + 0.1 * jax.random.normal(ks[3], (c_out,), jnp.float32),
        "w2": 0.1 * jax.random.normal(ks[4], (c_out, c_out, 3, 3), jnp.float32),
        "bn2_gamma": 1.0 + 0.1 * jax.random.normal(ks[5], (c_out,), jnp.float32),
        "bn2_beta": 0.1 * jax.random.normal(ks[6], (c_out,), jnp.float32),
        "mask2": 1.0 + 0.1 * jax.random.normal(ks[7], (c_out,), jnp.float32),
        "mask3": 1.0 + 0.1 * jax.random.normal(ks[8], (c_out,), jnp.float32),
    }
    if stride != 1 or c_in != c_out:  # projection shortcut (expansion = 1)
        p["w_sc"] = 0.1 * jax.random.normal(ks[9], (c_out, c_in, 1, 1), jnp.float32)
        p["bn_sc_gamma"] = 1.0 + 0.1 * jax.random.normal(ks[10], (c_out,), jnp.float32)
        p["bn_sc_beta"] = jnp.zeros((c_out,), jnp.float32)
    return p


def basic_block_forward(x_nchw, params, stride, max_tile_rows=None):
    c_out, c_in = params["w1"].shape[0], params["w1"].shape[1]
    if x_nchw.shape[1] != c_in:
        raise ValueError("Input mode 1 contains {} rather than {} elements."
                         .format(x_nchw.shape[1], c_in))

    x = jnp.transpose(x_nchw, (0, 2, 3, 1)).astype(jnp.float32)    # NHWC
    n = x.shape[0]
    proj = "w_sc" in params
    cp = _round_up(c_out, 128)                # lane-dense channel padding

    vmem = _vmem_limit()
    if max_tile_rows is None:                 # larger tiles on 128 MiB VMEM parts
        max_tile_rows = 1024 if vmem > 64 * 1024 * 1024 else 512

    # ---- K1: conv1 matmul (+ projection shortcut) + partial BN sums -------- #
    p1, ho, wo = _im2col_3x3(x.astype(jnp.bfloat16), stride)       # (N, hw, 9C)
    hw = ho * wo
    tm, n_t, hw_p = _split_rows(hw, max_tile_rows)
    k1p = _round_up(9 * c_in, 128)
    p1 = jnp.pad(p1, ((0, 0), (0, hw_p - hw), (0, k1p - 9 * c_in)))
    w1m = jnp.pad(_w1_to_mat(params["w1"]),
                  ((0, k1p - 9 * c_in), (0, cp - c_out))).astype(jnp.bfloat16)

    y_spec = pl.BlockSpec((1, tm, cp), lambda b, t: (b, t, 0))
    st1_spec = pl.BlockSpec((1, 8, cp), lambda b, t: (b * n_t + t, 0, 0))
    cparams2 = pltpu.CompilerParams(
        dimension_semantics=("parallel", "parallel"), vmem_limit_bytes=vmem)
    cparams1 = pltpu.CompilerParams(
        dimension_semantics=("parallel",), vmem_limit_bytes=vmem)

    if proj:
        cip = _round_up(c_in, 128)
        x0s = x[:, ::stride, ::stride, :].reshape(n, hw, c_in)     # 1x1 sampling
        x0s = jnp.pad(x0s, ((0, 0), (0, hw_p - hw),
                            (0, cip - c_in))).astype(jnp.bfloat16)
        wscm = jnp.pad(params["w_sc"][:, :, 0, 0].T,
                       ((0, cip - c_in), (0, cp - c_out))).astype(jnp.bfloat16)
        y1, sc, st1 = pl.pallas_call(
            _conv1_proj_kernel,
            grid=(n, n_t),
            in_specs=[pl.BlockSpec((1, tm, k1p), lambda b, t: (b, t, 0)),
                      pl.BlockSpec((1, tm, cip), lambda b, t: (b, t, 0)),
                      _const_spec((k1p, cp), 2),
                      _const_spec((cip, cp), 2)],
            out_specs=[y_spec, y_spec, st1_spec],
            out_shape=[jax.ShapeDtypeStruct((n, hw_p, cp), jnp.bfloat16),
                       jax.ShapeDtypeStruct((n, hw_p, cp), jnp.bfloat16),
                       jax.ShapeDtypeStruct((n * n_t, 8, cp), jnp.float32)],
            compiler_params=cparams2,
        )(p1, x0s, w1m, wscm)
    else:
        y1, st1 = pl.pallas_call(
            _conv1_kernel,
            grid=(n, n_t),
            in_specs=[pl.BlockSpec((1, tm, k1p), lambda b, t: (b, t, 0)),
                      _const_spec((k1p, cp), 2)],
            out_specs=[y_spec, st1_spec],
            out_shape=[jax.ShapeDtypeStruct((n, hw_p, cp), jnp.bfloat16),
                       jax.ShapeDtypeStruct((n * n_t, 8, cp), jnp.float32)],
            compiler_params=cparams2,
        )(p1, w1m)
        # Identity shortcut: feed x directly (f32, unpadded lanes); the conv2
        # kernel places it into the first c_out lanes (no wrapper pad copy).
        sc = x.reshape(n, hw, c_in)

    st1 = jnp.sum(st1, axis=0)                 # (8, cp) full-batch sums
    count = float(n * hw)                      # padded rows contribute zero

    def padded(v):
        return jnp.pad(v, (0, cp - c_out))

    scale1, shift1 = _bn_affine(st1[0], st1[1], count,
                                padded(params["bn1_gamma"]),
                                padded(params["bn1_beta"]),
                                padded(params["mask1"]))        # mask1 folded
    ab1 = _pack_ab(scale1, shift1)
    if proj:
        ssc, hsc = _bn_affine(st1[2], st1[3], count,
                              padded(params["bn_sc_gamma"]),
                              padded(params["bn_sc_beta"]))
        scab = _pack_ab(ssc, hsc)
    else:
        scab = _pack_ab(jnp.ones((cp,), jnp.float32),
                        jnp.zeros((cp,), jnp.float32))

    # ---- K3: fused bn1-affine+relu -> implicit-GEMM conv2 (mask2 folded) --- #
    # ----       -> shortcut(-BN) + residual + relu + bn2 partial sums ------- #
    w2k = jnp.pad(_w2_to_taps(params["w2"], params["mask2"][None, :]),
                  ((0, 0), (0, cp - c_out), (0, cp - c_out))).astype(jnp.bfloat16)
    sc_rows, sc_ch = sc.shape[1], sc.shape[2]
    r, st2 = pl.pallas_call(
        functools.partial(_conv2_block_kernel, ho=ho, wo=wo),
        grid=(n,),
        in_specs=[pl.BlockSpec((1, hw_p, cp), lambda b: (b, 0, 0)),
                  _const_spec((8, cp), 1),
                  _const_spec((9, cp, cp), 1),
                  pl.BlockSpec((1, sc_rows, sc_ch), lambda b: (b, 0, 0)),
                  _const_spec((8, cp), 1)],
        out_specs=[pl.BlockSpec((1, hw, cp), lambda b: (b, 0, 0)),
                   pl.BlockSpec((1, 8, cp), lambda b: (b, 0, 0))],
        out_shape=[jax.ShapeDtypeStruct((n, hw, cp), jnp.bfloat16),
                   jax.ShapeDtypeStruct((n, 8, cp), jnp.float32)],
        scratch_shapes=[pltpu.VMEM((ho + 2, wo + 2, cp), jnp.bfloat16)],
        compiler_params=cparams1,
    )(y1, ab1, w2k, sc, scab)

    st2 = jnp.sum(st2, axis=0)
    scale2, shift2 = _bn_affine(st2[0], st2[1], count,
                                padded(params["bn2_gamma"]),
                                padded(params["bn2_beta"]),
                                padded(params["mask3"]))        # mask3 folded
    ab2 = _pack_ab(scale2, shift2)

    # ---- K4: out = mask3 * bn2(r) ------------------------------------------ #
    out = pl.pallas_call(
        _affine_kernel,
        grid=(n,),
        in_specs=[pl.BlockSpec((1, hw, cp), lambda b: (b, 0, 0)),
                  _const_spec((8, cp), 1)],
        out_specs=pl.BlockSpec((1, hw, cp), lambda b: (b, 0, 0)),
        out_shape=jax.ShapeDtypeStruct((n, hw, cp), jnp.float32),
        compiler_params=cparams1,
    )(r, ab2)

    out = out[:, :, :c_out].reshape(n, ho, wo, c_out)
    return jnp.transpose(out, (0, 3, 1, 2))                      # NCHW


# ---------------------------- pure-JAX reference ----------------------------- #

def reference_forward(x_nchw, params, stride):
    hi = jax.lax.Precision.HIGHEST

    def conv(x, w, s, pad):
        return jax.lax.conv_general_dilated(
            x, w, (s, s), ((pad, pad), (pad, pad)),
            dimension_numbers=("NCHW", "OIHW", "NCHW"), precision=hi)

    def bn(x, gamma, beta):
        mean = jnp.mean(x, axis=(0, 2, 3), keepdims=True)
        var = jnp.mean((x - mean) ** 2, axis=(0, 2, 3), keepdims=True)
        return ((x - mean) * jax.lax.rsqrt(var + EPS)
                * gamma.reshape(1, -1, 1, 1) + beta.reshape(1, -1, 1, 1))

    def mask(x, p):
        return x * p.reshape(1, -1, 1, 1)

    x1 = jax.nn.relu(mask(bn(conv(x_nchw, params["w1"], stride, 1),
                             params["bn1_gamma"], params["bn1_beta"]),
                          params["mask1"]))
    if "w_sc" in params:
        sc = bn(conv(x_nchw, params["w_sc"], stride, 0),
                params["bn_sc_gamma"], params["bn_sc_beta"])
    else:
        sc = x_nchw
    x2 = bn(jax.nn.relu(mask(conv(x1, params["w2"], 1, 1), params["mask2"]) + sc),
            params["bn2_gamma"], params["bn2_beta"])
    return mask(x2, params["mask3"])


# ---------------------------------- main ------------------------------------- #

if __name__ == "__main__":
    probe_buffered()          # enables single-buffered constant blocks if supported

    key = jax.random.PRNGKey(0)
    kx, kp, kx2, kp2 = jax.random.split(key, 4)

    # ---- projection-shortcut block (stride 2, channel expansion) ----------- #
    N, C_IN, H, W = 2, 4, 16, 16
    C_OUT, STRIDE = 8, 2
    x = jax.random.normal(kx, (N, C_IN, H, W), jnp.float32)
    params = init_params(kp, C_IN, C_OUT, STRIDE)

    # max_tile_rows=32 -> a (2, 2) grid for K1 (exercises the multi-tile
    # BN-statistics reduction); real shapes use the device-derived default.
    fwd = jax.jit(functools.partial(basic_block_forward, stride=STRIDE,
                                    max_tile_rows=32))
    out = jax.block_until_ready(fwd(x, params))
    ref = reference_forward(x, params, STRIDE)
    assert out.shape == ref.shape == (N, C_OUT, H // STRIDE, W // STRIDE)
    err = float(jnp.max(jnp.abs(out - ref)))
    assert jnp.allclose(out, ref, atol=5e-2, rtol=5e-2), err   # bf16 MXU tolerance

    # ---- identity-shortcut block (stride 1, same channels) ----------------- #
    x2 = jax.random.normal(kx2, (N, C_OUT, H, W), jnp.float32)
    params2 = init_params(kp2, C_OUT, C_OUT, 1)
    fwd2 = jax.jit(functools.partial(basic_block_forward, stride=1,
                                     max_tile_rows=128))
    out2 = jax.block_until_ready(fwd2(x2, params2))
    ref2 = reference_forward(x2, params2, 1)
    assert out2.shape == ref2.shape == (N, C_OUT, H, W)
    err2 = float(jnp.max(jnp.abs(out2 - ref2)))
    assert jnp.allclose(out2, ref2, atol=5e-2, rtol=5e-2), err2

    print("KERNEL_OK")
</pallas_src>

<mosaic_0001>
module attributes {stable_mosaic.version = 11 : i64} {
  func.func @_probe_kernel(%arg0: i32, %arg1: memref<8x128xf32, #tpu.memory_space<vmem>>, %arg2: memref<8x128xf32, #tpu.memory_space<vmem>>) attributes {dimension_semantics = [#tpu.dimension_semantics<arbitrary>], iteration_bounds = array<i64: 2>, scalar_prefetch = 0 : i64, scratch_operands = 0 : i64, tpu.core_type = #tpu.core_type<tc>, window_params = [{pipeline_mode = #tpu.pipeline_mode<synchronous>, transform_indices = @transform_0, window_bounds = array<i64: 8, 128>}, {transform_indices = @transform_1, window_bounds = array<i64: 8, 128>}]} {
    %c0 = arith.constant 0 : index
    %c0_0 = arith.constant 0 : index
    %0 = vector.load %arg1[%c0, %c0_0] : memref<8x128xf32, #tpu.memory_space<vmem>>, vector<8x128xf32>
    %cst = arith.constant 1.000000e+00 : f32
    %1 = vector.broadcast %cst : f32 to vector<8x128xf32>
    %2 = arith.addf %0, %1 : vector<8x128xf32>
    %c0_1 = arith.constant 0 : index
    %c0_2 = arith.constant 0 : index
    %3 = vector.load %arg2[%c0_1, %c0_2] : memref<8x128xf32, #tpu.memory_space<vmem>>, vector<8x128xf32>
    tpu.vector_store %arg2[%c0_1, %c0_2], %2 {strides = array<i32>} : memref<8x128xf32, #tpu.memory_space<vmem>>, vector<8x128xf32>,
    return
  }
  func.func @transform_0(%arg0: i32) -> (i32, i32) {
    %c0_i32 = arith.constant 0 : i32
    %c0_i32_0 = arith.constant 0 : i32
    %c0_i32_1 = arith.constant 0 : i32
    return %c0_i32, %c0_i32_0 : i32, i32
  }
  func.func @transform_1(%arg0: i32) -> (i32, i32) {
    %c0_i32 = arith.constant 0 : i32
    %c0_i32_0 = arith.constant 0 : i32
    return %arg0, %c0_i32 : i32, i32
  }
}

module attributes {stable_mosaic.version = 11 : i64} {
  func.func @_conv1_proj_kernel(%arg0: i32, %arg1: i32, %arg2: memref<1x32x128xbf16, #tpu.memory_space<vmem>>, %arg3: memref<1x32x128xbf16, #tpu.memory_space<vmem>>, %arg4: memref<128x128xbf16, #tpu.memory_space<vmem>>, %arg5: memref<128x128xbf16, #tpu.memory_space<vmem>>, %arg6: memref<1x32x128xbf16, #tpu.memory_space<vmem>>, %arg7: memref<1x32x128xbf16, #tpu.memory_space<vmem>>, %arg8: memref<1x8x128xf32, #tpu.memory_space<vmem>>) attributes {dimension_semantics = [#tpu.dimension_semantics<parallel>, #tpu.dimension_semantics<parallel>], iteration_bounds = array<i64: 2, 2>, scalar_prefetch = 0 : i64, scratch_operands = 0 : i64, tpu.core_type = #tpu.core_type<tc>, window_params = [{transform_indices = @transform_0, window_bounds = array<i64: 1, 32, 128>}, {transform_indices = @transform_1, window_bounds = array<i64: 1, 32, 128>}, {pipeline_mode = #tpu.pipeline_mode<synchronous>, transform_indices = @transform_2, window_bounds = array<i64: 128, 128>}, {pipeline_mode = #tpu.pipeline_mode<synchronous>, transform_indices = @transform_3, window_bounds = array<i64: 128, 128>}, {transform_indices = @transform_4, window_bounds = array<i64: 1, 32, 128>}, {transform_indices = @transform_5, window_bounds = array<i64: 1, 32, 128>}, {transform_indices = @transform_6, window_bounds = array<i64: 1, 8, 128>}]} {
    %c0 = arith.constant 0 : index
    %c0_0 = arith.constant 0 : index
    %c0_1 = arith.constant 0 : index
    %0 = vector.load %arg2[%c0, %c0_0, %c0_1] : memref<1x32x128xbf16, #tpu.memory_space<vmem>>, vector<1x32x128xbf16>
    %1 = vector.shape_cast %0 : vector<1x32x128xbf16> to vector<32x128xbf16>
    %c0_2 = arith.constant 0 : index
    %c0_3 = arith.constant 0 : index
    %2 = vector.load %arg4[%c0_2, %c0_3] : memref<128x128xbf16, #tpu.memory_space<vmem>>, vector<128x128xbf16>
    %cst = arith.constant dense<0.000000e+00> : vector<32x128xf32>
    %3 = tpu.matmul %1, %2, %cst {dimension_numbers = #tpu.dot_dimension_numbers<[1], [0], [0], [1], [0, 0, 1, 1], [], []>} : vector<32x128xbf16>, vector<128x128xbf16>, vector<32x128xf32> -> vector<32x128xf32>
    %c0_4 = arith.constant 0 : index
    %c0_5 = arith.constant 0 : index
    %c0_6 = arith.constant 0 : index
    %4 = vector.load %arg3[%c0_4, %c0_5, %c0_6] : memref<1x32x128xbf16, #tpu.memory_space<vmem>>, vector<1x32x128xbf16>
    %5 = vector.shape_cast %4 : vector<1x32x128xbf16> to vector<32x128xbf16>
    %c0_7 = arith.constant 0 : index
    %c0_8 = arith.constant 0 : index
    %6 = vector.load %arg5[%c0_7, %c0_8] : memref<128x128xbf16, #tpu.memory_space<vmem>>, vector<128x128xbf16>
    %cst_9 = arith.constant dense<0.000000e+00> : vector<32x128xf32>
    %7 = tpu.matmul %5, %6, %cst_9 {dimension_numbers = #tpu.dot_dimension_numbers<[1], [0], [0], [1], [0, 0, 1, 1], [], []>} : vector<32x128xbf16>, vector<128x128xbf16>, vector<32x128xf32> -> vector<32x128xf32>
    %8 = arith.truncf %3 : vector<32x128xf32> to vector<32x128xbf16>
    %c0_10 = arith.constant 0 : index
    %c0_11 = arith.constant 0 : index
    %c0_12 = arith.constant 0 : index
    %9 = vector.load %arg6[%c0_10, %c0_11, %c0_12] : memref<1x32x128xbf16, #tpu.memory_space<vmem>>, vector<1x32x128xbf16>
    %10 = vector.shape_cast %9 : vector<1x32x128xbf16> to vector<32x128xbf16>
    %11 = vector.shape_cast %8 : vector<32x128xbf16> to vector<1x32x128xbf16>
    tpu.vector_store %arg6[%c0_10, %c0_11, %c0_12], %11 {strides = array<i32>} : memref<1x32x128xbf16, #tpu.memory_space<vmem>>, vector<1x32x128xbf16>,
    %12 = arith.truncf %7 : vector<32x128xf32> to vector<32x128xbf16>
    %c0_13 = arith.constant 0 : index
    %c0_14 = arith.constant 0 : index
    %c0_15 = arith.constant 0 : index
    %13 = vector.load %arg7[%c0_13, %c0_14, %c0_15] : memref<1x32x128xbf16, #tpu.memory_space<vmem>>, vector<1x32x128xbf16>
    %14 = vector.shape_cast %13 : vector<1x32x128xbf16> to vector<32x128xbf16>
    %15 = vector.shape_cast %12 : vector<32x128xbf16> to vector<1x32x128xbf16>
    tpu.vector_store %arg7[%c0_13, %c0_14, %c0_15], %15 {strides = array<i32>} : memref<1x32x128xbf16, #tpu.memory_space<vmem>>, vector<1x32x128xbf16>,
    %cst_16 = arith.constant dense<0.000000e+00> : vector<128xf32>
    %16 = vector.multi_reduction <add>, %3, %cst_16 [0] : vector<32x128xf32> to vector<128xf32>
    %17 = vector.shape_cast %16 : vector<128xf32> to vector<1x128xf32>
    %c0_17 = arith.constant 0 : index
    %c0_18 = arith.constant 0 : index
    %c0_19 = arith.constant 0 : index
    %18 = vector.load %arg8[%c0_17, %c0_18, %c0_19] : memref<1x8x128xf32, #tpu.memory_space<vmem>>, vector<1x1x128xf32>
    %19 = vector.shape_cast %18 : vector<1x1x128xf32> to vector<1x128xf32>
    %20 = vector.shape_cast %17 : vector<1x128xf32> to vector<1x1x128xf32>
    tpu.vector_store %arg8[%c0_17, %c0_18, %c0_19], %20 {strides = array<i32>} : memref<1x8x128xf32, #tpu.memory_space<vmem>>, vector<1x1x128xf32>,
    %21 = arith.mulf %3, %3 : vector<32x128xf32>
    %cst_20 = arith.constant dense<0.000000e+00> : vector<128xf32>
    %22 = vector.multi_reduction <add>, %21, %cst_20 [0] : vector<32x128xf32> to vector<128xf32>
    %23 = vector.shape_cast %22 : vector<128xf32> to vector<1x128xf32>
    %c0_21 = arith.constant 0 : index
    %c1 = arith.constant 1 : index
    %c0_22 = arith.constant 0 : index
    %24 = vector.load %arg8[%c0_21, %c1, %c0_22] : memref<1x8x128xf32, #tpu.memory_space<vmem>>, vector<1x1x128xf32>
    %25 = vector.shape_cast %24 : vector<1x1x128xf32> to vector<1x128xf32>
    %26 = vector.shape_cast %23 : vector<1x128xf32> to vector<1x1x128xf32>
    tpu.vector_store %arg8[%c0_21, %c1, %c0_22], %26 {strides = array<i32>} : memref<1x8x128xf32, #tpu.memory_space<vmem>>, vector<1x1x128xf32>,
    %cst_23 = arith.constant dense<0.000000e+00> : vector<128xf32>
    %27 = vector.multi_reduction <add>, %7, %cst_23 [0] : vector<32x128xf32> to vector<128xf32>
    %28 = vector.shape_cast %27 : vector<128xf32> to vector<1x128xf32>
    %c0_24 = arith.constant 0 : index
    %c2 = arith.constant 2 : index
    %c0_25 = arith.constant 0 : index
    %29 = vector.load %arg8[%c0_24, %c2, %c0_25] : memref<1x8x128xf32, #tpu.memory_space<vmem>>, vector<1x1x128xf32>
    %30 = vector.shape_cast %29 : vector<1x1x128xf32> to vector<1x128xf32>
    %31 = vector.shape_cast %28 : vector<1x128xf32> to vector<1x1x128xf32>
    tpu.vector_store %arg8[%c0_24, %c2, %c0_25], %31 {strides = array<i32>} : memref<1x8x128xf32, #tpu.memory_space<vmem>>, vector<1x1x128xf32>,
    %32 = arith.mulf %7, %7 : vector<32x128xf32>
    %cst_26 = arith.constant dense<0.000000e+00> : vector<128xf32>
    %33 = vector.multi_reduction <add>, %32, %cst_26 [0] : vector<32x128xf32> to vector<128xf32>
    %34 = vector.shape_cast %33 : vector<128xf32> to vector<1x128xf32>
    %c0_27 = arith.constant 0 : index
    %c3 = arith.constant 3 : index
    %c0_28 = arith.constant 0 : index
    %35 = vector.load %arg8[%c0_27, %c3, %c0_28] : memref<1x8x128xf32, #tpu.memory_space<vmem>>, vector<1x1x128xf32>
    %36 = vector.shape_cast %35 : vector<1x1x128xf32> to vector<1x128xf32>
    %37 = vector.shape_cast %34 : vector<1x128xf32> to vector<1x1x128xf32>
    tpu.vector_store %arg8[%c0_27, %c3, %c0_28], %37 {strides = array<i32>} : memref<1x8x128xf32, #tpu.memory_space<vmem>>, vector<1x1x128xf32>,
    return
  }
  func.func @transform_0(%arg0: i32, %arg1: i32) -> (i32, i32, i32) {
    %c0_i32 = arith.constant 0 : i32
    %c0_i32_0 = arith.constant 0 : i32
    return %arg0, %arg1, %c0_i32 : i32, i32, i32
  }
  func.func @transform_1(%arg0: i32, %arg1: i32) -> (i32, i32, i32) {
    %c0_i32 = arith.constant 0 : i32
    %c0_i32_0 = arith.constant 0 : i32
    return %arg0, %arg1, %c0_i32 : i32, i32, i32
  }
  func.func @transform_2(%arg0: i32, %arg1: i32) -> (i32, i32) {
    %c0_i32 = arith.constant 0 : i32
    %c0_i32_0 = arith.constant 0 : i32
    %c0_i32_1 = arith.constant 0 : i32
    return %c0_i32, %c0_i32_0 : i32, i32
  }
  func.func @transform_3(%arg0: i32, %arg1: i32) -> (i32, i32) {
    %c0_i32 = arith.constant 0 : i32
    %c0_i32_0 = arith.constant 0 : i32
    %c0_i32_1 = arith.constant 0 : i32
    return %c0_i32, %c0_i32_0 : i32, i32
  }
  func.func @transform_4(%arg0: i32, %arg1: i32) -> (i32, i32, i32) {
    %c0_i32 = arith.constant 0 : i32
    %c0_i32_0 = arith.constant 0 : i32
    return %arg0, %arg1, %c0_i32 : i32, i32, i32
  }
  func.func @transform_5(%arg0: i32, %arg1: i32) -> (i32, i32, i32) {
    %c0_i32 = arith.constant 0 : i32
    %c0_i32_0 = arith.constant 0 : i32
    return %arg0, %arg1, %c0_i32 : i32, i32, i32
  }
  func.func @transform_6(%arg0: i32, %arg1: i32) -> (i32, i32, i32) {
    %c2_i32 = arith.constant 2 : i32
    %0 = arith.muli %arg0, %c2_i32 : i32
    %1 = arith.addi %0, %arg1 : i32
    %c0_i32 = arith.constant 0 : i32
    %c0_i32_0 = arith.constant 0 : i32
    %c0_i32_1 = arith.constant 0 : i32
    return %1, %c0_i32, %c0_i32_0 : i32, i32, i32
  }
}

module attributes {stable_mosaic.version = 11 : i64} {
  func.func @_affine_kernel(%arg0: i32, %arg1: memref<1x64x128xbf16, #tpu.memory_space<vmem>>, %arg2: memref<8x128xf32, #tpu.memory_space<vmem>>, %arg3: memref<1x64x128xf32, #tpu.memory_space<vmem>>) attributes {dimension_semantics = [#tpu.dimension_semantics<parallel>], iteration_bounds = array<i64: 2>, scalar_prefetch = 0 : i64, scratch_operands = 0 : i64, tpu.core_type = #tpu.core_type<tc>, window_params = [{transform_indices = @transform_0, window_bounds = array<i64: 1, 64, 128>}, {pipeline_mode = #tpu.pipeline_mode<synchronous>, transform_indices = @transform_1, window_bounds = array<i64: 8, 128>}, {transform_indices = @transform_2, window_bounds = array<i64: 1, 64, 128>}]} {
    %c0 = arith.constant 0 : index
    %c0_0 = arith.constant 0 : index
    %c0_1 = arith.constant 0 : index
    %0 = vector.load %arg1[%c0, %c0_0, %c0_1] : memref<1x64x128xbf16, #tpu.memory_space<vmem>>, vector<1x64x128xbf16>
    %1 = vector.shape_cast %0 : vector<1x64x128xbf16> to vector<64x128xbf16>
    %2 = arith.extf %1 : vector<64x128xbf16> to vector<64x128xf32>
    %c0_2 = arith.constant 0 : index
    %c0_3 = arith.constant 0 : index
    %3 = vector.load %arg2[%c0_2, %c0_3] : memref<8x128xf32, #tpu.memory_space<vmem>>, vector<1x128xf32>
    %4 = vector.broadcast %3 : vector<1x128xf32> to vector<64x128xf32>
    %5 = arith.mulf %2, %4 : vector<64x128xf32>
    %c1 = arith.constant 1 : index
    %c0_4 = arith.constant 0 : index
    %6 = vector.load %arg2[%c1, %c0_4] : memref<8x128xf32, #tpu.memory_space<vmem>>, vector<1x128xf32>
    %7 = vector.broadcast %6 : vector<1x128xf32> to vector<64x128xf32>
    %8 = arith.addf %5, %7 : vector<64x128xf32>
    %c0_5 = arith.constant 0 : index
    %c0_6 = arith.constant 0 : index
    %c0_7 = arith.constant 0 : index
    %9 = vector.load %arg3[%c0_5, %c0_6, %c0_7] : memref<1x64x128xf32, #tpu.memory_space<vmem>>, vector<1x64x128xf32>
    %10 = vector.shape_cast %9 : vector<1x64x128xf32> to vector<64x128xf32>
    %11 = vector.shape_cast %8 : vector<64x128xf32> to vector<1x64x128xf32>
    tpu.vector_store %arg3[%c0_5, %c0_6, %c0_7], %11 {strides = array<i32>} : memref<1x64x128xf32, #tpu.memory_space<vmem>>, vector<1x64x128xf32>,
    return
  }
  func.func @transform_0(%arg0: i32) -> (i32, i32, i32) {
    %c0_i32 = arith.constant 0 : i32
    %c0_i32_0 = arith.constant 0 : i32
    %c0_i32_1 = arith.constant 0 : i32
    return %arg0, %c0_i32, %c0_i32_0 : i32, i32, i32
  }
  func.func @transform_1(%arg0: i32) -> (i32, i32) {
    %c0_i32 = arith.constant 0 : i32
    %c0_i32_0 = arith.constant 0 : i32
    %c0_i32_1 = arith.constant 0 : i32
    return %c0_i32, %c0_i32_0 : i32, i32
  }
  func.func @transform_2(%arg0: i32) -> (i32, i32, i32) {
    %c0_i32 = arith.constant 0 : i32
    %c0_i32_0 = arith.constant 0 : i32
    %c0_i32_1 = arith.constant 0 : i32
    return %arg0, %c0_i32, %c0_i32_0 : i32, i32, i32
  }
}

module attributes {stable_mosaic.version = 11 : i64} {
  func.func @_conv2_block_kernel(%arg0: i32, %arg1: memref<1x64x128xbf16, #tpu.memory_space<vmem>>, %arg2: memref<8x128xf32, #tpu.memory_space<vmem>>, %arg3: memref<9x128x128xbf16, #tpu.memory_space<vmem>>, %arg4: memref<1x64x128xbf16, #tpu.memory_space<vmem>>, %arg5: memref<8x128xf32, #tpu.memory_space<vmem>>, %arg6: memref<1x64x128xbf16, #tpu.memory_space<vmem>>, %arg7: memref<1x8x128xf32, #tpu.memory_space<vmem>>, %arg8: memref<10x10x128xbf16, #tpu.memory_space<vmem>>) attributes {dimension_semantics = [#tpu.dimension_semantics<parallel>], iteration_bounds = array<i64: 2>, scalar_prefetch = 0 : i64, scratch_operands = 1 : i64, tpu.core_type = #tpu.core_type<tc>, window_params = [{transform_indices = @transform_0, window_bounds = array<i64: 1, 64, 128>}, {pipeline_mode = #tpu.pipeline_mode<synchronous>, transform_indices = @transform_1, window_bounds = array<i64: 8, 128>}, {pipeline_mode = #tpu.pipeline_mode<synchronous>, transform_indices = @transform_2, window_bounds = array<i64: 9, 128, 128>}, {transform_indices = @transform_3, window_bounds = array<i64: 1, 64, 128>}, {pipeline_mode = #tpu.pipeline_mode<synchronous>, transform_indices = @transform_4, window_bounds = array<i64: 8, 128>}, {transform_indices = @transform_5, window_bounds = array<i64: 1, 64, 128>}, {transform_indices = @transform_6, window_bounds = array<i64: 1, 8, 128>}]} {
    %c0 = arith.constant 0 : index
    %c0_0 = arith.constant 0 : index
    %c0_1 = arith.constant 0 : index
    %0 = vector.load %arg1[%c0, %c0_0, %c0_1] : memref<1x64x128xbf16, #tpu.memory_space<vmem>>, vector<1x64x128xbf16>
    %1 = vector.shape_cast %0 : vector<1x64x128xbf16> to vector<64x128xbf16>
    %2 = arith.extf %1 : vector<64x128xbf16> to vector<64x128xf32>
    %c0_2 = arith.constant 0 : index
    %c0_3 = arith.constant 0 : index
    %3 = vector.load %arg2[%c0_2, %c0_3] : memref<8x128xf32, #tpu.memory_space<vmem>>, vector<1x128xf32>
    %4 = vector.broadcast %3 : vector<1x128xf32> to vector<64x128xf32>
    %5 = arith.mulf %2, %4 : vector<64x128xf32>
    %c1 = arith.constant 1 : index
    %c0_4 = arith.constant 0 : index
    %6 = vector.load %arg2[%c1, %c0_4] : memref<8x128xf32, #tpu.memory_space<vmem>>, vector<1x128xf32>
    %7 = vector.broadcast %6 : vector<1x128xf32> to vector<64x128xf32>
    %8 = arith.addf %5, %7 : vector<64x128xf32>
    %cst = arith.constant 0.000000e+00 : f32
    %9 = vector.broadcast %cst : f32 to vector<64x128xf32>
    %10 = arith.maximumf %8, %9 : vector<64x128xf32>
    %11 = arith.truncf %10 : vector<64x128xf32> to vector<64x128xbf16>
    %cst_5 = arith.constant 0.000000e+00 : bf16
    %12 = vector.broadcast %cst_5 : bf16 to vector<10x10x128xbf16>
    %c0_6 = arith.constant 0 : index
    %c0_7 = arith.constant 0 : index
    %c0_8 = arith.constant 0 : index
    %13 = vector.load %arg8[%c0_6, %c0_7, %c0_8] : memref<10x10x128xbf16, #tpu.memory_space<vmem>>, vector<10x10x128xbf16>
    tpu.vector_store %arg8[%c0_6, %c0_7, %c0_8], %12 {strides = array<i32>} : memref<10x10x128xbf16, #tpu.memory_space<vmem>>, vector<10x10x128xbf16>,
    %14 = vector.shape_cast %11 : vector<64x128xbf16> to vector<8x8x128xbf16>
    %c1_9 = arith.constant 1 : index
    %c1_10 = arith.constant 1 : index
    %c0_11 = arith.constant 0 : index
    %15 = vector.load %arg8[%c1_9, %c1_10, %c0_11] : memref<10x10x128xbf16, #tpu.memory_space<vmem>>, vector<8x8x128xbf16>
    tpu.vector_store %arg8[%c1_9, %c1_10, %c0_11], %14 {strides = array<i32>} : memref<10x10x128xbf16, #tpu.memory_space<vmem>>, vector<8x8x128xbf16>,
    %c0_12 = arith.constant 0 : index
    %c0_13 = arith.constant 0 : index
    %c0_14 = arith.constant 0 : index
    %16 = vector.load %arg8[%c0_12, %c0_13, %c0_14] : memref<10x10x128xbf16, #tpu.memory_space<vmem>>, vector<8x8x128xbf16>
    %17 = vector.shape_cast %16 : vector<8x8x128xbf16> to vector<64x128xbf16>
    %c0_15 = arith.constant 0 : index
    %c0_16 = arith.constant 0 : index
    %c0_17 = arith.constant 0 : index
    %18 = vector.load %arg3[%c0_15, %c0_16, %c0_17] : memref<9x128x128xbf16, #tpu.memory_space<vmem>>, vector<1x128x128xbf16>
    %19 = vector.shape_cast %18 : vector<1x128x128xbf16> to vector<128x128xbf16>
    %cst_18 = arith.constant dense<0.000000e+00> : vector<64x128xf32>
    %20 = tpu.matmul %17, %19, %cst_18 {dimension_numbers = #tpu.dot_dimension_numbers<[1], [0], [0], [1], [0, 0, 1, 1], [], []>} : vector<64x128xbf16>, vector<128x128xbf16>, vector<64x128xf32> -> vector<64x128xf32>
    %c0_19 = arith.constant 0 : index
    %c1_20 = arith.constant 1 : index
    %c0_21 = arith.constant 0 : index
    %21 = vector.load %arg8[%c0_19, %c1_20, %c0_21] : memref<10x10x128xbf16, #tpu.memory_space<vmem>>, vector<8x8x128xbf16>
    %22 = vector.shape_cast %21 : vector<8x8x128xbf16> to vector<64x128xbf16>
    %c1_22 = arith.constant 1 : index
    %c0_23 = arith.constant 0 : index
    %c0_24 = arith.constant 0 : index
    %23 = vector.load %arg3[%c1_22, %c0_23, %c0_24] : memref<9x128x128xbf16, #tpu.memory_space<vmem>>, vector<1x128x128xbf16>
    %24 = vector.shape_cast %23 : vector<1x128x128xbf16> to vector<128x128xbf16>
    %cst_25 = arith.constant dense<0.000000e+00> : vector<64x128xf32>
    %25 = tpu.matmul %22, %24, %cst_25 {dimension_numbers = #tpu.dot_dimension_numbers<[1], [0], [0], [1], [0, 0, 1, 1], [], []>} : vector<64x128xbf16>, vector<128x128xbf16>, vector<64x128xf32> -> vector<64x128xf32>
    %26 = arith.addf %20, %25 : vector<64x128xf32>
    %c0_26 = arith.constant 0 : index
    %c2 = arith.constant 2 : index
    %c0_27 = arith.constant 0 : index
    %27 = vector.load %arg8[%c0_26, %c2, %c0_27] : memref<10x10x128xbf16, #tpu.memory_space<vmem>>, vector<8x8x128xbf16>
    %28 = vector.shape_cast %27 : vector<8x8x128xbf16> to vector<64x128xbf16>
    %c2_28 = arith.constant 2 : index
    %c0_29 = arith.constant 0 : index
    %c0_30 = arith.constant 0 : index
    %29 = vector.load %arg3[%c2_28, %c0_29, %c0_30] : memref<9x128x128xbf16, #tpu.memory_space<vmem>>, vector<1x128x128xbf16>
    %30 = vector.shape_cast %29 : vector<1x128x128xbf16> to vector<128x128xbf16>
    %cst_31 = arith.constant dense<0.000000e+00> : vector<64x128xf32>
    %31 = tpu.matmul %28, %30, %cst_31 {dimension_numbers = #tpu.dot_dimension_numbers<[1], [0], [0], [1], [0, 0, 1, 1], [], []>} : vector<64x128xbf16>, vector<128x128xbf16>, vector<64x128xf32> -> vector<64x128xf32>
    %32 = arith.addf %26, %31 : vector<64x128xf32>
    %c1_32 = arith.constant 1 : index
    %c0_33 = arith.constant 0 : index
    %c0_34 = arith.constant 0 : index
    %33 = vector.load %arg8[%c1_32, %c0_33, %c0_34] : memref<10x10x128xbf16, #tpu.memory_space<vmem>>, vector<8x8x128xbf16>
    %34 = vector.shape_cast %33 : vector<8x8x128xbf16> to vector<64x128xbf16>
    %c3 = arith.constant 3 : index
    %c0_35 = arith.constant 0 : index
    %c0_36 = arith.constant 0 : index
    %35 = vector.load %arg3[%c3, %c0_35, %c0_36] : memref<9x128x128xbf16, #tpu.memory_space<vmem>>, vector<1x128x128xbf16>
    %36 = vector.shape_cast %35 : vector<1x128x128xbf16> to vector<128x128xbf16>
    %cst_37 = arith.constant dense<0.000000e+00> : vector<64x128xf32>
    %37 = tpu.matmul %34, %36, %cst_37 {dimension_numbers = #tpu.dot_dimension_numbers<[1], [0], [0], [1], [0, 0, 1, 1], [], []>} : vector<64x128xbf16>, vector<128x128xbf16>, vector<64x128xf32> -> vector<64x128xf32>
    %38 = arith.addf %32, %37 : vector<64x128xf32>
    %c1_38 = arith.constant 1 : index
    %c1_39 = arith.constant 1 : index
    %c0_40 = arith.constant 0 : index
    %39 = vector.load %arg8[%c1_38, %c1_39, %c0_40] : memref<10x10x128xbf16, #tpu.memory_space<vmem>>, vector<8x8x128xbf16>
    %40 = vector.shape_cast %39 : vector<8x8x128xbf16> to vector<64x128xbf16>
    %c4 = arith.constant 4 : index
    %c0_41 = arith.constant 0 : index
    %c0_42 = arith.constant 0 : index
    %41 = vector.load %arg3[%c4, %c0_41, %c0_42] : memref<9x128x128xbf16, #tpu.memory_space<vmem>>, vector<1x128x128xbf16>
    %42 = vector.shape_cast %41 : vector<1x128x128xbf16> to vector<128x128xbf16>
    %cst_43 = arith.constant dense<0.000000e+00> : vector<64x128xf32>
    %43 = tpu.matmul %40, %42, %cst_43 {dimension_numbers = #tpu.dot_dimension_numbers<[1], [0], [0], [1], [0, 0, 1, 1], [], []>} : vector<64x128xbf16>, vector<128x128xbf16>, vector<64x128xf32> -> vector<64x128xf32>
    %44 = arith.addf %38, %43 : vector<64x128xf32>
    %c1_44 = arith.constant 1 : index
    %c2_45 = arith.constant 2 : index
    %c0_46 = arith.constant 0 : index
    %45 = vector.load %arg8[%c1_44, %c2_45, %c0_46] : memref<10x10x128xbf16, #tpu.memory_space<vmem>>, vector<8x8x128xbf16>
    %46 = vector.shape_cast %45 : vector<8x8x128xbf16> to vector<64x128xbf16>
    %c5 = arith.constant 5 : index
    %c0_47 = arith.constant 0 : index
    %c0_48 = arith.constant 0 : index
    %47 = vector.load %arg3[%c5, %c0_47, %c0_48] : memref<9x128x128xbf16, #tpu.memory_space<vmem>>, vector<1x128x128xbf16>
    %48 = vector.shape_cast %47 : vector<1x128x128xbf16> to vector<128x128xbf16>
    %cst_49 = arith.constant dense<0.000000e+00> : vector<64x128xf32>
    %49 = tpu.matmul %46, %48, %cst_49 {dimension_numbers = #tpu.dot_dimension_numbers<[1], [0], [0], [1], [0, 0, 1, 1], [], []>} : vector<64x128xbf16>, vector<128x128xbf16>, vector<64x128xf32> -> vector<64x128xf32>
    %50 = arith.addf %44, %49 : vector<64x128xf32>
    %c2_50 = arith.constant 2 : index
    %c0_51 = arith.constant 0 : index
    %c0_52 = arith.constant 0 : index
    %51 = vector.load %arg8[%c2_50, %c0_51, %c0_52] : memref<10x10x128xbf16, #tpu.memory_space<vmem>>, vector<8x8x128xbf16>
    %52 = vector.shape_cast %51 : vector<8x8x128xbf16> to vector<64x128xbf16>
    %c6 = arith.constant 6 : index
    %c0_53 = arith.constant 0 : index
    %c0_54 = arith.constant 0 : index
    %53 = vector.load %arg3[%c6, %c0_53, %c0_54] : memref<9x128x128xbf16, #tpu.memory_space<vmem>>, vector<1x128x128xbf16>
    %54 = vector.shape_cast %53 : vector<1x128x128xbf16> to vector<128x128xbf16>
    %cst_55 = arith.constant dense<0.000000e+00> : vector<64x128xf32>
    %55 = tpu.matmul %52, %54, %cst_55 {dimension_numbers = #tpu.dot_dimension_numbers<[1], [0], [0], [1], [0, 0, 1, 1], [], []>} : vector<64x128xbf16>, vector<128x128xbf16>, vector<64x128xf32> -> vector<64x128xf32>
    %56 = arith.addf %50, %55 : vector<64x128xf32>
    %c2_56 = arith.constant 2 : index
    %c1_57 = arith.constant 1 : index
    %c0_58 = arith.constant 0 : index
    %57 = vector.load %arg8[%c2_56, %c1_57, %c0_58] : memref<10x10x128xbf16, #tpu.memory_space<vmem>>, vector<8x8x128xbf16>
    %58 = vector.shape_cast %57 : vector<8x8x128xbf16> to vector<64x128xbf16>
    %c7 = arith.constant 7 : index
    %c0_59 = arith.constant 0 : index
    %c0_60 = arith.constant 0 : index
    %59 = vector.load %arg3[%c7, %c0_59, %c0_60] : memref<9x128x128xbf16, #tpu.memory_space<vmem>>, vector<1x128x128xbf16>
    %60 = vector.shape_cast %59 : vector<1x128x128xbf16> to vector<128x128xbf16>
    %cst_61 = arith.constant dense<0.000000e+00> : vector<64x128xf32>
    %61 = tpu.matmul %58, %60, %cst_61 {dimension_numbers = #tpu.dot_dimension_numbers<[1], [0], [0], [1], [0, 0, 1, 1], [], []>} : vector<64x128xbf16>, vector<128x128xbf16>, vector<64x128xf32> -> vector<64x128xf32>
    %62 = arith.addf %56, %61 : vector<64x128xf32>
    %c2_62 = arith.constant 2 : index
    %c2_63 = arith.constant 2 : index
    %c0_64 = arith.constant 0 : index
    %63 = vector.load %arg8[%c2_62, %c2_63, %c0_64] : memref<10x10x128xbf16, #tpu.memory_space<vmem>>, vector<8x8x128xbf16>
    %64 = vector.shape_cast %63 : vector<8x8x128xbf16> to vector<64x128xbf16>
    %c8 = arith.constant 8 : index
    %c0_65 = arith.constant 0 : index
    %c0_66 = arith.constant 0 : index
    %65 = vector.load %arg3[%c8, %c0_65, %c0_66] : memref<9x128x128xbf16, #tpu.memory_space<vmem>>, vector<1x128x128xbf16>
    %66 = vector.shape_cast %65 : vector<1x128x128xbf16> to vector<128x128xbf16>
    %cst_67 = arith.constant dense<0.000000e+00> : vector<64x128xf32>
    %67 = tpu.matmul %64, %66, %cst_67 {dimension_numbers = #tpu.dot_dimension_numbers<[1], [0], [0], [1], [0, 0, 1, 1], [], []>} : vector<64x128xbf16>, vector<128x128xbf16>, vector<64x128xf32> -> vector<64x128xf32>
    %68 = arith.addf %62, %67 : vector<64x128xf32>
    %c0_68 = arith.constant 0 : index
    %c0_69 = arith.constant 0 : index
    %c0_70 = arith.constant 0 : index
    %69 = vector.load %arg4[%c0_68, %c0_69, %c0_70] : memref<1x64x128xbf16, #tpu.memory_space<vmem>>, vector<1x64x128xbf16>
    %70 = vector.shape_cast %69 : vector<1x64x128xbf16> to vector<64x128xbf16>
    %71 = arith.extf %70 : vector<64x128xbf16> to vector<64x128xf32>
    %c0_71 = arith.constant 0 : index
    %c0_72 = arith.constant 0 : index
    %72 = vector.load %arg5[%c0_71, %c0_72] : memref<8x128xf32, #tpu.memory_space<vmem>>, vector<1x128xf32>
    %73 = vector.broadcast %72 : vector<1x128xf32> to vector<64x128xf32>
    %74 = arith.mulf %71, %73 : vector<64x128xf32>
    %75 = arith.addf %68, %74 : vector<64x128xf32>
    %c1_73 = arith.constant 1 : index
    %c0_74 = arith.constant 0 : index
    %76 = vector.load %arg5[%c1_73, %c0_74] : memref<8x128xf32, #tpu.memory_space<vmem>>, vector<1x128xf32>
    %77 = vector.broadcast %76 : vector<1x128xf32> to vector<64x128xf32>
    %78 = arith.addf %75, %77 : vector<64x128xf32>
    %cst_75 = arith.constant 0.000000e+00 : f32
    %79 = vector.broadcast %cst_75 : f32 to vector<64x128xf32>
    %80 = arith.maximumf %78, %79 : vector<64x128xf32>
    %81 = arith.truncf %80 : vector<64x128xf32> to vector<64x128xbf16>
    %c0_76 = arith.constant 0 : index
    %c0_77 = arith.constant 0 : index
    %c0_78 = arith.constant 0 : index
    %82 = vector.load %arg6[%c0_76, %c0_77, %c0_78] : memref<1x64x128xbf16, #tpu.memory_space<vmem>>, vector<1x64x128xbf16>
    %83 = vector.shape_cast %82 : vector<1x64x128xbf16> to vector<64x128xbf16>
    %84 = vector.shape_cast %81 : vector<64x128xbf16> to vector<1x64x128xbf16>
    tpu.vector_store %arg6[%c0_76, %c0_77, %c0_78], %84 {strides = array<i32>} : memref<1x64x128xbf16, #tpu.memory_space<vmem>>, vector<1x64x128xbf16>,
    %cst_79 = arith.constant dense<0.000000e+00> : vector<128xf32>
    %85 = vector.multi_reduction <add>, %80, %cst_79 [0] : vector<64x128xf32> to vector<128xf32>
    %86 = vector.shape_cast %85 : vector<128xf32> to vector<1x128xf32>
    %c0_80 = arith.constant 0 : index
    %c0_81 = arith.constant 0 : index
    %c0_82 = arith.constant 0 : index
    %87 = vector.load %arg7[%c0_80, %c0_81, %c0_82] : memref<1x8x128xf32, #tpu.memory_space<vmem>>, vector<1x1x128xf32>
    %88 = vector.shape_cast %87 : vector<1x1x128xf32> to vector<1x128xf32>
    %89 = vector.shape_cast %86 : vector<1x128xf32> to vector<1x1x128xf32>
    tpu.vector_store %arg7[%c0_80, %c0_81, %c0_82], %89 {strides = array<i32>} : memref<1x8x128xf32, #tpu.memory_space<vmem>>, vector<1x1x128xf32>,
    %90 = arith.mulf %80, %80 : vector<64x128xf32>
    %cst_83 = arith.constant dense<0.000000e+00> : vector<128xf32>
    %91 = vector.multi_reduction <add>, %90, %cst_83 [0] : vector<64x128xf32> to vector<128xf32>
    %92 = vector.shape_cast %91 : vector<128xf32> to vector<1x128xf32>
    %c0_84 = arith.constant 0 : index
    %c1_85 = arith.constant 1 : index
    %c0_86 = arith.constant 0 : index
    %93 = vector.load %arg7[%c0_84, %c1_85, %c0_86] : memref<1x8x128xf32, #tpu.memory_space<vmem>>, vector<1x1x128xf32>
    %94 = vector.shape_cast %93 : vector<1x1x128xf32> to vector<1x128xf32>
    %95 = vector.shape_cast %92 : vector<1x128xf32> to vector<1x1x128xf32>
    tpu.vector_store %arg7[%c0_84, %c1_85, %c0_86], %95 {strides = array<i32>} : memref<1x8x128xf32, #tpu.memory_space<vmem>>, vector<1x1x128xf32>,
    return
  }
  func.func @transform_0(%arg0: i32) -> (i32, i32, i32) {
    %c0_i32 = arith.constant 0 : i32
    %c0_i32_0 = arith.constant 0 : i32
    %c0_i32_1 = arith.constant 0 : i32
    return %arg0, %c0_i32, %c0_i32_0 : i32, i32, i32
  }
  func.func @transform_1(%arg0: i32) -> (i32, i32) {
    %c0_i32 = arith.constant 0 : i32
    %c0_i32_0 = arith.constant 0 : i32
    %c0_i32_1 = arith.constant 0 : i32
    return %c0_i32, %c0_i32_0 : i32, i32
  }
  func.func @transform_2(%arg0: i32) -> (i32, i32, i32) {
    %c0_i32 = arith.constant 0 : i32
    %c0_i32_0 = arith.constant 0 : i32
    %c0_i32_1 = arith.constant 0 : i32
    %c0_i32_2 = arith.constant 0 : i32
    return %c0_i32, %c0_i32_0, %c0_i32_1 : i32, i32, i32
  }
  func.func @transform_3(%arg0: i32) -> (i32, i32, i32) {
    %c0_i32 = arith.constant 0 : i32
    %c0_i32_0 = arith.constant 0 : i32
    %c0_i32_1 = arith.constant 0 : i32
    return %arg0, %c0_i32, %c0_i32_0 : i32, i32, i32
  }
  func.func @transform_4(%arg0: i32) -> (i32, i32) {
    %c0_i32 = arith.constant 0 : i32
    %c0_i32_0 = arith.constant 0 : i32
    %c0_i32_1 = arith.constant 0 : i32
    return %c0_i32, %c0_i32_0 : i32, i32
  }
  func.func @transform_5(%arg0: i32) -> (i32, i32, i32) {
    %c0_i32 = arith.constant 0 : i32
    %c0_i32_0 = arith.constant 0 : i32
    %c0_i32_1 = arith.constant 0 : i32
    return %arg0, %c0_i32, %c0_i32_0 : i32, i32, i32
  }
  func.func @transform_6(%arg0: i32) -> (i32, i32, i32) {
    %c0_i32 = arith.constant 0 : i32
    %c0_i32_0 = arith.constant 0 : i32
    %c0_i32_1 = arith.constant 0 : i32
    return %arg0, %c0_i32, %c0_i32_0 : i32, i32, i32
  }
}

</mosaic_0001>

<llo_original>
// kernel: tpu_custom_call.1
$region0: #{tpu_custom_call.1}
  #allocation0 [shape = 'u32[]', space=smem, size = 0x4, offset = 0x4, fixed_abs, tag = 'smem constant byte address 0x4 - core index']
  #allocation1 [shape = 'u32[144,128]{1,0:T(1,128)}', space=vmem, size = 0x12000, scoped, tag = 'internal scratch']
  %s0 = inlined_call_operand.hbm [shape: f32[8,128], index: 0, kind: input, shape index: {}]
  %s1 = inlined_call_operand.hbm [shape: f32[16,128], index: 1, kind: output, shape index: {}]
  %s2 = sld [smem:[#allocation0]]
  $region41: #{tpu_custom_call.1} parent=0
    _
  %s4 = ssub.s32 1, %s2
  %s5 = scalar_select 0, %s4, %s2
  $region1: #{tpu_custom_call.1} parent=0
    #allocation2 [shape = 'u8[4096]{0}', space=vmem, size = 0x1000, scoped, tag = 'input window, operand 0, single buffered']
    #allocation3 [shape = 's32[2]{0}', space=sflag, size = 0x8, scoped, tag = 'scoped memory for tpu_custom_call.1']
    #allocation4 [shape = 's32[2]{0}', space=sflag, size = 0x8, scoped, tag = 'scoped memory for tpu_custom_call.1']
    #allocation5 [shape = 'u8[8192]{0}', space=vmem, size = 0x2000, scoped, tag = 'output window, operand 0']
    %6 = vsyncpa [#allocation3], 0
    %7 = vsyncpa [#allocation4], 0
    %s8 = scalar_lea.sflag [#allocation4], 1
    %9 = vsyncpa %s8, 0
    loop: start=0, step=1, limit=4
    $region2: #{tpu_custom_call.1} parent=1 // loop_pre_header
      _
    $region3: #{tpu_custom_call.1} parent=1 // loop_header
      %s11 = sphi 0, %s15
      %p12 = scmp.ge.s32.totalorder %s11, 4
      %s19 = sphi 0, %s19
      %s21 = sphi 0, %s19
      %s22 = sphi 0, %s21
      %s36 = sphi 0, %s22
      %s42 = sphi 0, %s44
      %s45 = sphi 0, %s42
      %s46 = sphi 0, %s45
      %s62 = sphi 0, %s46
    $region4: #{tpu_custom_call.1} parent=1 // loop_header_branch
      %14 = sbr.rel (%p12) target = $region8
    $region5: #{tpu_custom_call.1} parent=1 // loop_body
      %s16 = ssub.s32 %s11, 1
      %s17 = ssub.s32 %s11, 2
      %s18 = sadd.s32 %s11, 1
      %s20 = sadd.s32 %s19, 1
      %p23 = scmp.eq.s32.totalorder %s11, 1
      %p24 = scmp.ne.s32.totalorder %s19, %s21
      %p25 = scmp.eq.s32.totalorder %s11, 0
      %p26 = por %p24, %p25
      %p27 = scmp.ne.s32.totalorder %s19, %s21
      %p28 = scmp.eq.s32.totalorder %s16, 1
      %p29 = por %p27, %p28
      %p30 = scmp.ne.s32.totalorder %s21, %s22
      %p31 = scmp.eq.s32.totalorder %s16, 0
      %p32 = por %p30, %p31
      %p33 = scmp.ne.s32.totalorder %s21, %s22
      %p34 = scmp.eq.s32.totalorder %s17, 1
      %p35 = por %p33, %p34
      %p37 = scmp.ne.s32.totalorder %s22, %s36
      %p38 = scmp.eq.s32.totalorder %s17, 0
      %p39 = por %p37, %p38
      %s40 = ssub.s32 %s11, %s18
      %p41 = scmp.eq.s32.totalorder %s40, 0
      %s43 = sadd.s32 %s42, 1
      %s44 = scalar_select %p41, %s42, %s43
      %p47 = pneg %p41
      %p48 = scmp.eq.s32.totalorder %s11, 1
      %p49 = por %p47, %p48
      %p50 = scmp.ne.s32.totalorder %s42, %s45
      %p51 = scmp.eq.s32.totalorder %s11, 0
      %p52 = por %p50, %p51
      %p53 = scmp.ne.s32.totalorder %s42, %s45
      %p54 = scmp.eq.s32.totalorder %s16, 1
      %p55 = por %p53, %p54
      %p56 = scmp.ne.s32.totalorder %s45, %s46
      %p57 = scmp.eq.s32.totalorder %s16, 0
      %p58 = por %p56, %p57
      %p59 = scmp.ne.s32.totalorder %s45, %s46
      %p60 = scmp.eq.s32.totalorder %s17, 1
      %p61 = por %p59, %p60
      %p63 = scmp.ne.s32.totalorder %s46, %s62
      %p64 = scmp.eq.s32.totalorder %s17, 0
      %p65 = por %p63, %p64
      %p66 = scmp.le.s32.totalorder 1, %s11
      %p67 = scmp.lt.s32.totalorder %s11, 3
      %p68 = pnand %p66, %p67
      %p69 = pneg %p68
      // Predicated region
      $region9: #{tpu_custom_call.1} parent=5 // pred_check
        _
      $region10: #{tpu_custom_call.1} parent=5 // pred_check_branch
        %71 = sbr.rel (%p68) target = $region12
      $region11: #{tpu_custom_call.1} parent=5 // pred_region
        %s72 = ssub.s32 %s11, 1
        // Predicated region
        $region13: #{tpu_custom_call.1} parent=11 // pred_check
          %p73 = pneg %p32
        $region14: #{tpu_custom_call.1} parent=11 // pred_check_branch
          %75 = sbr.rel (%p73) target = $region16
        $region15: #{tpu_custom_call.1} parent=11 // pred_region
          %s77 = ssub.s32 128, 128
          %78 = vsyncadd [#allocation3], %s77
          %s80 = sshll.u32 [#allocation2], 4
          %s81 = int_to_ptr.vmem [resolvable:$true] %s80
          %83 = dma.hbm_to_vmem [thread:$0]  %s0, 128, %s81, [#allocation3]
        $region16: #{tpu_custom_call.1} parent=11 // pred_fallthru
          _
      $region12: #{tpu_custom_call.1} parent=5 // pred_fallthru
        _
      %p84 = scmp.lt.s32.totalorder %s11, 2
      // Predicated region
      $region17: #{tpu_custom_call.1} parent=5 // pred_check
        %p85 = pneg %p84
      $region18: #{tpu_custom_call.1} parent=5 // pred_check_branch
        %87 = sbr.rel (%p85) target = $region20
      $region19: #{tpu_custom_call.1} parent=5 // pred_region
        _
      $region20: #{tpu_custom_call.1} parent=5 // pred_fallthru
        _
      %p88 = scmp.le.s32.totalorder 1, %s11
      %p89 = scmp.lt.s32.totalorder %s11, 3
      %p90 = pnand %p88, %p89
      %p91 = pneg %p90
      // Predicated region
      $region21: #{tpu_custom_call.1} parent=5 // pred_check
        _
      $region22: #{tpu_custom_call.1} parent=5 // pred_check_branch
        %93 = sbr.rel (%p90) target = $region24
      $region23: #{tpu_custom_call.1} parent=5 // pred_region
        %s94 = ssub.s32 %s11, 1
        // Predicated region
        $region25: #{tpu_custom_call.1} parent=23 // pred_check
          %p95 = pneg %p32
        $region26: #{tpu_custom_call.1} parent=23 // pred_check_branch
          %97 = sbr.rel (%p95) target = $region28
        $region27: #{tpu_custom_call.1} parent=23 // pred_region
          %98 = dma.done [#allocation3], 128
        $region28: #{tpu_custom_call.1} parent=23 // pred_fallthru
          _
        %p99 = pneg %p32
        %p100 = pneg %p29
        %p101 = pneg %p58
        %p102 = pneg %p55
        %s103 = sand.u32 %s45, 1
        %s104 = scalar_lea.sflag [#allocation4], %s103
        %s105 = sand.u32 %s45, 1
        %s106 = smul.addr %s105, 8
        %s107 = scalar_lea.vmem [#allocation5], %s106
        %v108 = vld [vmem:[#allocation2] sm:$0xff]
        %v109 = vadd.f32 %v108, 1.0
        %110 = vst [vmem:[%s107] sm:$0xff] %v109
        %s111 = sand.u32 %s45, 1
        %s112 = scalar_lea.sflag [#allocation4], %s111
        %s113 = sand.u32 %s45, 1
        %s114 = smul.addr %s113, 8
        %s115 = scalar_lea.vmem [#allocation5], %s114
        // Predicated region
        $region29: #{tpu_custom_call.1} parent=23 // pred_check
          %p116 = pneg %p55
        $region30: #{tpu_custom_call.1} parent=23 // pred_check_branch
          %118 = sbr.rel (%p116) target = $region32
        $region31: #{tpu_custom_call.1} parent=23 // pred_region
          %s120 = ssub.s32 128, 128
          %121 = vsyncadd %s112, %s120
          %s122 = smul.addr %s16, 128
          %s123 = scalar_lea.hbm %s1, %s122
          %s125 = sshll.u32 %s115, 4
          %s126 = int_to_ptr.vmem [resolvable:$true] %s125
          %128 = dma.vmem_to_hbm [thread:$0]  %s126, 128, %s123, %s112
        $region32: #{tpu_custom_call.1} parent=23 // pred_fallthru
          _
      $region24: #{tpu_custom_call.1} parent=5 // pred_fallthru
        _
      %p129 = scmp.le.s32.totalorder 2, %s11
      // Predicated region
      $region33: #{tpu_custom_call.1} parent=5 // pred_check
        %p130 = pneg %p129
      $region34: #{tpu_custom_call.1} parent=5 // pred_check_branch
        %132 = sbr.rel (%p130) target = $region36
      $region35: #{tpu_custom_call.1} parent=5 // pred_region
        %s133 = ssub.s32 %s11, 2
        // Predicated region
        $region37: #{tpu_custom_call.1} parent=35 // pred_check
          %p134 = pneg %p61
        $region38: #{tpu_custom_call.1} parent=35 // pred_check_branch
          %136 = sbr.rel (%p134) target = $region40
        $region39: #{tpu_custom_call.1} parent=35 // pred_region
          %s137 = sand.u32 %s46, 1
          %s138 = scalar_lea.sflag [#allocation4], %s137
          %s139 = sand.u32 %s46, 1
          %s140 = smul.addr %s139, 8
          %s141 = scalar_lea.vmem [#allocation5], %s140
          %142 = dma.done %s138, 128
        $region40: #{tpu_custom_call.1} parent=35 // pred_fallthru
          _
      $region36: #{tpu_custom_call.1} parent=5 // pred_fallthru
        _
    $region6: #{tpu_custom_call.1} parent=1 // loop_footer
      %s15 = sadd.s32 1, %s11
    $region7: #{tpu_custom_call.1} parent=1 // loop_footer_branch
      %10 = sbr.rel target = $region3
    $region8: #{tpu_custom_call.1} parent=1 // loop_exit
      _
    %143 = vsyncpa [#allocation3], 1
    %s144 = scalar_lea.sflag [#allocation3], 1
    %145 = vsyncpa %s144, 1
    %146 = vsyncpa [#allocation4], 1
    %s147 = scalar_lea.sflag [#allocation4], 1
    %148 = vsyncpa %s147, 1

// kernel: basic_block_forward.5
$region0: #{basic_block_forward.5}
  #allocation0 [shape = 'u32[]', space=smem, size = 0x4, offset = 0x4, fixed_abs, tag = 'smem constant byte address 0x4 - core index']
  #allocation1 [shape = 'u32[144,128]{1,0:T(1,128)}', space=vmem, size = 0x12000, scoped, tag = 'internal scratch']
  %s0 = inlined_call_operand.vmem [shape: bf16[2,64,128], index: 0, kind: input, shape index: {}]
  %s1 = inlined_call_operand.vmem [shape: f32[8,128], index: 1, kind: input, shape index: {}]
  %s2 = inlined_call_operand.vmem [shape: f32[2,64,128], index: 2, kind: output, shape index: {}]
  %s3 = sld [smem:[#allocation0]]
  $region41: #{basic_block_forward.5} parent=0
    _
  %s5 = ssub.s32 1, %s3
  %s6 = scalar_select 0, %s5, %s3
  loop: start=0, step=1, limit=4
  $region2: #{basic_block_forward.5} parent=0 // loop_pre_header
    _
  $region3: #{basic_block_forward.5} parent=0 // loop_header
    %s8 = sphi 0, %s12
    %p9 = scmp.ge.s32.totalorder %s8, 4
    %s18 = sphi 0, %s20
    %s21 = sphi 0, %s18
    %s22 = sphi 0, %s21
    %s38 = sphi 0, %s22
    %s42 = sphi 0, %s42
    %s44 = sphi 0, %s42
    %s45 = sphi 0, %s44
    %s59 = sphi 0, %s45
    %s65 = sphi 0, %s67
    %s68 = sphi 0, %s65
    %s69 = sphi 0, %s68
    %s85 = sphi 0, %s69
  $region4: #{basic_block_forward.5} parent=0 // loop_header_branch
    %11 = sbr.rel (%p9) target = $region8
  $region5: #{basic_block_forward.5} parent=0 // loop_body
    %s13 = ssub.s32 %s8, 1
    %s14 = ssub.s32 %s8, 2
    %s15 = sadd.s32 %s8, 1
    %s16 = ssub.s32 %s8, %s15
    %p17 = scmp.eq.s32.totalorder %s16, 0
    %s19 = sadd.s32 %s18, 1
    %s20 = scalar_select %p17, %s18, %s19
    %p23 = pneg %p17
    %p24 = scmp.eq.s32.totalorder %s8, 1
    %p25 = por %p23, %p24
    %p26 = scmp.ne.s32.totalorder %s18, %s21
    %p27 = scmp.eq.s32.totalorder %s8, 0
    %p28 = por %p26, %p27
    %p29 = scmp.ne.s32.totalorder %s18, %s21
    %p30 = scmp.eq.s32.totalorder %s13, 1
    %p31 = por %p29, %p30
    %p32 = scmp.ne.s32.totalorder %s21, %s22
    %p33 = scmp.eq.s32.totalorder %s13, 0
    %p34 = por %p32, %p33
    %p35 = scmp.ne.s32.totalorder %s21, %s22
    %p36 = scmp.eq.s32.totalorder %s14, 1
    %p37 = por %p35, %p36
    %p39 = scmp.ne.s32.totalorder %s22, %s38
    %p40 = scmp.eq.s32.totalorder %s14, 0
    %p41 = por %p39, %p40
    %s43 = sadd.s32 %s42, 1
    %p46 = scmp.eq.s32.totalorder %s8, 1
    %p47 = scmp.ne.s32.totalorder %s42, %s44
    %p48 = scmp.eq.s32.totalorder %s8, 0
    %p49 = por %p47, %p48
    %p50 = scmp.ne.s32.totalorder %s42, %s44
    %p51 = scmp.eq.s32.totalorder %s13, 1
    %p52 = por %p50, %p51
    %p53 = scmp.ne.s32.totalorder %s44, %s45
    %p54 = scmp.eq.s32.totalorder %s13, 0
    %p55 = por %p53, %p54
    %p56 = scmp.ne.s32.totalorder %s44, %s45
    %p57 = scmp.eq.s32.totalorder %s14, 1
    %p58 = por %p56, %p57
    %p60 = scmp.ne.s32.totalorder %s45, %s59
    %p61 = scmp.eq.s32.totalorder %s14, 0
    %p62 = por %p60, %p61
    %s63 = ssub.s32 %s8, %s15
    %p64 = scmp.eq.s32.totalorder %s63, 0
    %s66 = sadd.s32 %s65, 1
    %s67 = scalar_select %p64, %s65, %s66
    %p70 = pneg %p64
    %p71 = scmp.eq.s32.totalorder %s8, 1
    %p72 = por %p70, %p71
    %p73 = scmp.ne.s32.totalorder %s65, %s68
    %p74 = scmp.eq.s32.totalorder %s8, 0
    %p75 = por %p73, %p74
    %p76 = scmp.ne.s32.totalorder %s65, %s68
    %p77 = scmp.eq.s32.totalorder %s13, 1
    %p78 = por %p76, %p77
    %p79 = scmp.ne.s32.totalorder %s68, %s69
    %p80 = scmp.eq.s32.totalorder %s13, 0
    %p81 = por %p79, %p80
    %p82 = scmp.ne.s32.totalorder %s68, %s69
    %p83 = scmp.eq.s32.totalorder %s14, 1
    %p84 = por %p82, %p83
    %p86 = scmp.ne.s32.totalorder %s69, %s85
    %p87 = scmp.eq.s32.totalorder %s14, 0
    %p88 = por %p86, %p87
    %p89 = scmp.le.s32.totalorder 1, %s8
    %p90 = scmp.lt.s32.totalorder %s8, 3
    %p91 = pnand %p89, %p90
    %p92 = pneg %p91
    // Predicated region
    $region9: #{basic_block_forward.5} parent=5 // pred_check
      _
    $region10: #{basic_block_forward.5} parent=5 // pred_check_branch
      %94 = sbr.rel (%p91) target = $region12
    $region11: #{basic_block_forward.5} parent=5 // pred_region
      %s95 = ssub.s32 %s8, 1
      // Predicated region
      $region13: #{basic_block_forward.5} parent=11 // pred_check
        %p96 = pneg %p55
      $region14: #{basic_block_forward.5} parent=11 // pred_check_branch
        %98 = sbr.rel (%p96) target = $region16
      $region15: #{basic_block_forward.5} parent=11 // pred_region
        _
      $region16: #{basic_block_forward.5} parent=11 // pred_fallthru
        _
    $region12: #{basic_block_forward.5} parent=5 // pred_fallthru
      _
    %p99 = scmp.lt.s32.totalorder %s8, 2
    // Predicated region
    $region17: #{basic_block_forward.5} parent=5 // pred_check
      %p100 = pneg %p99
    $region18: #{basic_block_forward.5} parent=5 // pred_check_branch
      %102 = sbr.rel (%p100) target = $region20
    $region19: #{basic_block_forward.5} parent=5 // pred_region
      // Predicated region
      $region21: #{basic_block_forward.5} parent=19 // pred_check
        %p103 = pneg %p28
      $region22: #{basic_block_forward.5} parent=19 // pred_check_branch
        %105 = sbr.rel (%p103) target = $region24
      $region23: #{basic_block_forward.5} parent=19 // pred_region
        %p106 = scmp.lt.s32.totalorder %s8, 1
        %s107 = scalar_select %p106, %s8, 1
        %s108 = smul.addr %s107, 8
        %s109 = smul.addr %s108, 4
        %s110 = scalar_lea.vmem %s0, %s109
      $region24: #{basic_block_forward.5} parent=19 // pred_fallthru
        _
    $region20: #{basic_block_forward.5} parent=5 // pred_fallthru
      _
    %p111 = scmp.le.s32.totalorder 1, %s8
    %p112 = scmp.lt.s32.totalorder %s8, 3
    %p113 = pnand %p111, %p112
    %p114 = pneg %p113
    // Predicated region
    $region25: #{basic_block_forward.5} parent=5 // pred_check
      _
    $region26: #{basic_block_forward.5} parent=5 // pred_check_branch
      %116 = sbr.rel (%p113) target = $region28
    $region27: #{basic_block_forward.5} parent=5 // pred_region
      %s117 = ssub.s32 %s8, 1
      %p118 = scmp.lt.s32.totalorder %s13, 1
      %s119 = scalar_select %p118, %s13, 1
      %s120 = smul.addr %s119, 8
      %s121 = smul.addr %s120, 4
      %s122 = scalar_lea.vmem %s0, %s121
      %p123 = pneg %p34
      %p124 = pneg %p31
      %p125 = pneg %p55
      %p126 = pneg %p52
      %p127 = pneg %p81
      %p128 = pneg %p78
      %p129 = scmp.lt.s32.totalorder %s13, 1
      %s130 = scalar_select %p129, %s13, 1
      %s131 = smul.addr %s130, 8
      %s132 = smul.addr %s131, 8
      %s133 = scalar_lea.vmem %s2, %s132
      %p134 = scmp.lt.s32.totalorder %s13, 1
      %s135 = scalar_select %p134, %s13, 1
      %s136 = smul.addr %s135, 8
      %s137 = smul.addr %s136, 4
      %s138 = scalar_lea.vmem %s0, %s137
      %p139 = scmp.lt.s32.totalorder %s13, 1
      %s140 = scalar_select %p139, %s13, 1
      %s141 = smul.addr %s140, 8
      %s142 = smul.addr %s141, 8
      %s143 = scalar_lea.vmem %s2, %s142
      %v144 = vld [vmem:[%s138] sm:$0xf]
      %v145 = vld [vmem:[%s138 + $0x4] sm:$0xf]
      %v146 = vld [vmem:[%s138 + $0x8] sm:$0xf]
      %v147 = vld [vmem:[%s138 + $0xc] sm:$0xf]
      %v148 = vld [vmem:[%s138 + $0x10] sm:$0xf]
      %v149 = vld [vmem:[%s138 + $0x14] sm:$0xf]
      %v150 = vld [vmem:[%s138 + $0x18] sm:$0xf]
      %v151 = vld [vmem:[%s138 + $0x1c] sm:$0xf]
      %v152 = vunpack.c.l.bf16 %v144
      %v153 = vunpack.c.l.bf16 %v145
      %v154 = vunpack.c.l.bf16 %v146
      %v155 = vunpack.c.l.bf16 %v147
      %v156 = vunpack.c.l.bf16 %v148
      %v157 = vunpack.c.l.bf16 %v149
      %v158 = vunpack.c.l.bf16 %v150
      %v159 = vunpack.c.l.bf16 %v151
      %v160 = vld [vmem:[%s1] sm:$0x1]
      %v161 = vlaneseq
      %v162 = vshrl.u32 %v161, 7
      %v163 = vsub.s32 0, %v162
      %v164 = vrot.slane %v160, %v163
      %v165 = vmul.f32 %v152, %v164
      %v166 = vmul.f32 %v153, %v164
      %v167 = vmul.f32 %v154, %v164
      %v168 = vmul.f32 %v155, %v164
      %v169 = vmul.f32 %v156, %v164
      %v170 = vmul.f32 %v157, %v164
      %v171 = vmul.f32 %v158, %v164
      %v172 = vmul.f32 %v159, %v164
      %v173 = vld [vmem:[%s1 + $0x1] sm:$0x1]
      %v174 = vlaneseq
      %v175 = vshrl.u32 %v174, 7
      %v176 = vsub.s32 0, %v175
      %v177 = vrot.slane %v173, %v176
      %v178 = vadd.f32 %v165, %v177
      %v179 = vadd.f32 %v166, %v177
      %v180 = vadd.f32 %v167, %v177
      %v181 = vadd.f32 %v168, %v177
      %v182 = vadd.f32 %v169, %v177
      %v183 = vadd.f32 %v170, %v177
      %v184 = vadd.f32 %v171, %v177
      %v185 = vadd.f32 %v172, %v177
      %186 = vst [vmem:[%s143] sm:$0xff] %v178
      %187 = vst [vmem:[%s143 + $0x8] sm:$0xff] %v179
      %188 = vst [vmem:[%s143 + $0x10] sm:$0xff] %v180
      %189 = vst [vmem:[%s143 + $0x18] sm:$0xff] %v181
      %190 = vst [vmem:[%s143 + $0x20] sm:$0xff] %v182
      %191 = vst [vmem:[%s143 + $0x28] sm:$0xff] %v183
      %192 = vst [vmem:[%s143 + $0x30] sm:$0xff] %v184
      %193 = vst [vmem:[%s143 + $0x38] sm:$0xff] %v185
      %p194 = scmp.lt.s32.totalorder %s13, 1
      %s195 = scalar_select %p194, %s13, 1
      %s196 = smul.addr %s195, 8
      %s197 = smul.addr %s196, 8
      %s198 = scalar_lea.vmem %s2, %s197
      // Predicated region
      $region29: #{basic_block_forward.5} parent=27 // pred_check
        %p199 = pneg %p78
      $region30: #{basic_block_forward.5} parent=27 // pred_check_branch
        %201 = sbr.rel (%p199) target = $region32
      $region31: #{basic_block_forward.5} parent=27 // pred_region
        _
      $region32: #{basic_block_forward.5} parent=27 // pred_fallthru
        _
    $region28: #{basic_block_forward.5} parent=5 // pred_fallthru
      _
    %p202 = scmp.le.s32.totalorder 2, %s8
    // Predicated region
    $region33: #{basic_block_forward.5} parent=5 // pred_check
      %p203 = pneg %p202
    $region34: #{basic_block_forward.5} parent=5 // pred_check_branch
      %205 = sbr.rel (%p203) target = $region36
    $region35: #{basic_block_forward.5} parent=5 // pred_region
      %s206 = ssub.s32 %s8, 2
      // Predicated region
      $region37: #{basic_block_forward.5} parent=35 // pred_check
        %p207 = pneg %p84
      $region38: #{basic_block_forward.5} parent=35 // pred_check_branch
        %209 = sbr.rel (%p207) target = $region40
      $region39: #{basic_block_forward.5} parent=35 // pred_region
        %p210 = scmp.lt.s32.totalorder %s14, 1
        %s211 = scalar_select %p210, %s14, 1
        %s212 = smul.addr %s211, 8
        %s213 = smul.addr %s212, 8
        %s214 = scalar_lea.vmem %s2, %s213
      $region40: #{basic_block_forward.5} parent=35 // pred_fallthru
        _
    $region36: #{basic_block_forward.5} parent=5 // pred_fallthru
      _
  $region6: #{basic_block_forward.5} parent=0 // loop_footer
    %s12 = sadd.s32 1, %s8
  $region7: #{basic_block_forward.5} parent=0 // loop_footer_branch
    %7 = sbr.rel target = $region3
  $region8: #{basic_block_forward.5} parent=0 // loop_exit
    _

// kernel: basic_block_forward.3
$region0: #{basic_block_forward.3}
  #allocation0 [shape = 'u32[]', space=smem, size = 0x4, offset = 0x4, fixed_abs, tag = 'smem constant byte address 0x4 - core index']
  #allocation1 [shape = 'u32[144,128]{1,0:T(1,128)}', space=vmem, size = 0x12000, scoped, tag = 'internal scratch']
  %s0 = inlined_call_operand.vmem [shape: bf16[2,64,128], index: 0, kind: input, shape index: {}]
  %s1 = inlined_call_operand.vmem [shape: bf16[2,64,128], index: 1, kind: input, shape index: {}]
  %s2 = inlined_call_operand.vmem [shape: bf16[128,128], index: 2, kind: input, shape index: {}]
  %s3 = inlined_call_operand.vmem [shape: bf16[128,128], index: 3, kind: input, shape index: {}]
  %s4 = inlined_call_operand.vmem [shape: bf16[2,64,128], index: 4, kind: output, shape index: {0}]
  %s5 = inlined_call_operand.vmem [shape: bf16[2,64,128], index: 5, kind: output, shape index: {1}]
  %s6 = inlined_call_operand.vmem [shape: f32[4,8,128], index: 6, kind: output, shape index: {2}]
  %7 = xla_tuple %s4, %s5, %s6
  %s8 = sld [smem:[#allocation0]]
  $region65: #{basic_block_forward.3} parent=0
    _
  %s10 = ssub.s32 1, %s8
  %s11 = scalar_select 0, %s10, %s8
  loop: start=0, step=1, limit=6
  $region2: #{basic_block_forward.3} parent=0 // loop_pre_header
    _
  $region3: #{basic_block_forward.3} parent=0 // loop_header
    %s13 = sphi 0, %s17
    %p14 = scmp.ge.s32.totalorder %s13, 6
    %s20 = sphi 0, %s32
    %s21 = sphi 0, %s28
    %s22 = sphi 0, %s20
    %s23 = sphi 0, %s21
    %s24 = sphi 0, %s22
    %s25 = sphi 0, %s23
    %s37 = sphi 0, %s39
    %s40 = sphi 0, %s37
    %s41 = sphi 0, %s40
    %s57 = sphi 0, %s41
    %s65 = sphi 0, %s67
    %s68 = sphi 0, %s65
    %s69 = sphi 0, %s68
    %s85 = sphi 0, %s69
    %s89 = sphi 0, %s89
    %s91 = sphi 0, %s89
    %s92 = sphi 0, %s91
    %s106 = sphi 0, %s92
    %s110 = sphi 0, %s110
    %s112 = sphi 0, %s110
    %s113 = sphi 0, %s112
    %s127 = sphi 0, %s113
    %s135 = sphi 0, %s137
    %s138 = sphi 0, %s135
    %s139 = sphi 0, %s138
    %s155 = sphi 0, %s139
    %s163 = sphi 0, %s165
    %s166 = sphi 0, %s163
    %s167 = sphi 0, %s166
    %s183 = sphi 0, %s167
    %s193 = sphi 0, %s195
    %s196 = sphi 0, %s193
    %s197 = sphi 0, %s196
    %s213 = sphi 0, %s197
  $region4: #{basic_block_forward.3} parent=0 // loop_header_branch
    %16 = sbr.rel (%p14) target = $region8
  $region5: #{basic_block_forward.3} parent=0 // loop_body
    %s18 = ssub.s32 %s13, 1
    %s19 = ssub.s32 %s13, 2
    %s26 = sadd.s32 1, %s21
    %p27 = scmp.ge.s32.totalorder %s26, 2
    %s28 = scalar_select %p27, 0, %s26
    %s29 = sadd.s32 1, %s20
    %s30 = scalar_select %p27, %s29, %s20
    %p31 = scmp.ge.s32.totalorder %s30, 2
    %s32 = scalar_select %p31, 0, %s30
    %s33 = ssub.s32 %s20, %s32
    %s34 = ssub.s32 %s21, %s28
    %s35 = sor.u32 %s33, %s34
    %p36 = scmp.eq.s32.totalorder %s35, 0
    %s38 = sadd.s32 %s37, 1
    %s39 = scalar_select %p36, %s37, %s38
    %p42 = pneg %p36
    %p43 = scmp.eq.s32.totalorder %s13, 3
    %p44 = por %p42, %p43
    %p45 = scmp.ne.s32.totalorder %s37, %s40
    %p46 = scmp.eq.s32.totalorder %s13, 0
    %p47 = por %p45, %p46
    %p48 = scmp.ne.s32.totalorder %s37, %s40
    %p49 = scmp.eq.s32.totalorder %s18, 3
    %p50 = por %p48, %p49
    %p51 = scmp.ne.s32.totalorder %s40, %s41
    %p52 = scmp.eq.s32.totalorder %s18, 0
    %p53 = por %p51, %p52
    %p54 = scmp.ne.s32.totalorder %s40, %s41
    %p55 = scmp.eq.s32.totalorder %s19, 3
    %p56 = por %p54, %p55
    %p58 = scmp.ne.s32.totalorder %s41, %s57
    %p59 = scmp.eq.s32.totalorder %s19, 0
    %p60 = por %p58, %p59
    %s61 = ssub.s32 %s20, %s32
    %s62 = ssub.s32 %s21, %s28
    %s63 = sor.u32 %s61, %s62
    %p64 = scmp.eq.s32.totalorder %s63, 0
    %s66 = sadd.s32 %s65, 1
    %s67 = scalar_select %p64, %s65, %s66
    %p70 = pneg %p64
    %p71 = scmp.eq.s32.totalorder %s13, 3
    %p72 = por %p70, %p71
    %p73 = scmp.ne.s32.totalorder %s65, %s68
    %p74 = scmp.eq.s32.totalorder %s13, 0
    %p75 = por %p73, %p74
    %p76 = scmp.ne.s32.totalorder %s65, %s68
    %p77 = scmp.eq.s32.totalorder %s18, 3
    %p78 = por %p76, %p77
    %p79 = scmp.ne.s32.totalorder %s68, %s69
    %p80 = scmp.eq.s32.totalorder %s18, 0
    %p81 = por %p79, %p80
    %p82 = scmp.ne.s32.totalorder %s68, %s69
    %p83 = scmp.eq.s32.totalorder %s19, 3
    %p84 = por %p82, %p83
    %p86 = scmp.ne.s32.totalorder %s69, %s85
    %p87 = scmp.eq.s32.totalorder %s19, 0
    %p88 = por %p86, %p87
    %s90 = sadd.s32 %s89, 1
    %p93 = scmp.eq.s32.totalorder %s13, 3
    %p94 = scmp.ne.s32.totalorder %s89, %s91
    %p95 = scmp.eq.s32.totalorder %s13, 0
    %p96 = por %p94, %p95
    %p97 = scmp.ne.s32.totalorder %s89, %s91
    %p98 = scmp.eq.s32.totalorder %s18, 3
    %p99 = por %p97, %p98
    %p100 = scmp.ne.s32.totalorder %s91, %s92
    %p101 = scmp.eq.s32.totalorder %s18, 0
    %p102 = por %p100, %p101
    %p103 = scmp.ne.s32.totalorder %s91, %s92
    %p104 = scmp.eq.s32.totalorder %s19, 3
    %p105 = por %p103, %p104
    %p107 = scmp.ne.s32.totalorder %s92, %s106
    %p108 = scmp.eq.s32.totalorder %s19, 0
    %p109 = por %p107, %p108
    %s111 = sadd.s32 %s110, 1
    %p114 = scmp.eq.s32.totalorder %s13, 3
    %p115 = scmp.ne.s32.totalorder %s110, %s112
    %p116 = scmp.eq.s32.totalorder %s13, 0
    %p117 = por %p115, %p116
    %p118 = scmp.ne.s32.totalorder %s110, %s112
    %p119 = scmp.eq.s32.totalorder %s18, 3
    %p120 = por %p118, %p119
    %p121 = scmp.ne.s32.totalorder %s112, %s113
    %p122 = scmp.eq.s32.totalorder %s18, 0
    %p123 = por %p121, %p122
    %p124 = scmp.ne.s32.totalorder %s112, %s113
    %p125 = scmp.eq.s32.totalorder %s19, 3
    %p126 = por %p124, %p125
    %p128 = scmp.ne.s32.totalorder %s113, %s127
    %p129 = scmp.eq.s32.totalorder %s19, 0
    %p130 = por %p128, %p129
    %s131 = ssub.s32 %s20, %s32
    %s132 = ssub.s32 %s21, %s28
    %s133 = sor.u32 %s131, %s132
    %p134 = scmp.eq.s32.totalorder %s133, 0
    %s136 = sadd.s32 %s135, 1
    %s137 = scalar_select %p134, %s135, %s136
    %p140 = pneg %p134
    %p141 = scmp.eq.s32.totalorder %s13, 3
    %p142 = por %p140, %p141
    %p143 = scmp.ne.s32.totalorder %s135, %s138
    %p144 = scmp.eq.s32.totalorder %s13, 0
    %p145 = por %p143, %p144
    %p146 = scmp.ne.s32.totalorder %s135, %s138
    %p147 = scmp.eq.s32.totalorder %s18, 3
    %p148 = por %p146, %p147
    %p149 = scmp.ne.s32.totalorder %s138, %s139
    %p150 = scmp.eq.s32.totalorder %s18, 0
    %p151 = por %p149, %p150
    %p152 = scmp.ne.s32.totalorder %s138, %s139
    %p153 = scmp.eq.s32.totalorder %s19, 3
    %p154 = por %p152, %p153
    %p156 = scmp.ne.s32.totalorder %s139, %s155
    %p157 = scmp.eq.s32.totalorder %s19, 0
    %p158 = por %p156, %p157
    %s159 = ssub.s32 %s20, %s32
    %s160 = ssub.s32 %s21, %s28
    %s161 = sor.u32 %s159, %s160
    %p162 = scmp.eq.s32.totalorder %s161, 0
    %s164 = sadd.s32 %s163, 1
    %s165 = scalar_select %p162, %s163, %s164
    %p168 = pneg %p162
    %p169 = scmp.eq.s32.totalorder %s13, 3
    %p170 = por %p168, %p169
    %p171 = scmp.ne.s32.totalorder %s163, %s166
    %p172 = scmp.eq.s32.totalorder %s13, 0
    %p173 = por %p171, %p172
    %p174 = scmp.ne.s32.totalorder %s163, %s166
    %p175 = scmp.eq.s32.totalorder %s18, 3
    %p176 = por %p174, %p175
    %p177 = scmp.ne.s32.totalorder %s166, %s167
    %p178 = scmp.eq.s32.totalorder %s18, 0
    %p179 = por %p177, %p178
    %p180 = scmp.ne.s32.totalorder %s166, %s167
    %p181 = scmp.eq.s32.totalorder %s19, 3
    %p182 = por %p180, %p181
    %p184 = scmp.ne.s32.totalorder %s167, %s183
    %p185 = scmp.eq.s32.totalorder %s19, 0
    %p186 = por %p184, %p185
    %s187 = smul.u32 %s20, 2
    %s188 = sadd.s32 %s187, %s21
    %s189 = smul.u32 %s32, 2
    %s190 = sadd.s32 %s189, %s28
    %s191 = ssub.s32 %s188, %s190
    %p192 = scmp.eq.s32.totalorder %s191, 0
    %s194 = sadd.s32 %s193, 1
    %s195 = scalar_select %p192, %s193, %s194
    %p198 = pneg %p192
    %p199 = scmp.eq.s32.totalorder %s13, 3
    %p200 = por %p198, %p199
    %p201 = scmp.ne.s32.totalorder %s193, %s196
    %p202 = scmp.eq.s32.totalorder %s13, 0
    %p203 = por %p201, %p202
    %p204 = scmp.ne.s32.totalorder %s193, %s196
    %p205 = scmp.eq.s32.totalorder %s18, 3
    %p206 = por %p204, %p205
    %p207 = scmp.ne.s32.totalorder %s196, %s197
    %p208 = scmp.eq.s32.totalorder %s18, 0
    %p209 = por %p207, %p208
    %p210 = scmp.ne.s32.totalorder %s196, %s197
    %p211 = scmp.eq.s32.totalorder %s19, 3
    %p212 = por %p210, %p211
    %p214 = scmp.ne.s32.totalorder %s197, %s213
    %p215 = scmp.eq.s32.totalorder %s19, 0
    %p216 = por %p214, %p215
    %p217 = scmp.le.s32.totalorder 1, %s13
    %p218 = scmp.lt.s32.totalorder %s13, 5
    %p219 = pnand %p217, %p218
    %p220 = pneg %p219
    // Predicated region
    $region9: #{basic_block_forward.3} parent=5 // pred_check
      _
    $region10: #{basic_block_forward.3} parent=5 // pred_check_branch
      %222 = sbr.rel (%p219) target = $region12
    $region11: #{basic_block_forward.3} parent=5 // pred_region
      %s223 = ssub.s32 %s13, 1
      // Predicated region
      $region13: #{basic_block_forward.3} parent=11 // pred_check
        %p224 = pneg %p102
      $region14: #{basic_block_forward.3} parent=11 // pred_check_branch
        %226 = sbr.rel (%p224) target = $region16
      $region15: #{basic_block_forward.3} parent=11 // pred_region
        _
      $region16: #{basic_block_forward.3} parent=11 // pred_fallthru
        _
      // Predicated region
      $region17: #{basic_block_forward.3} parent=11 // pred_check
        %p227 = pneg %p123
      $region18: #{basic_block_forward.3} parent=11 // pred_check_branch
        %229 = sbr.rel (%p227) target = $region20
      $region19: #{basic_block_forward.3} parent=11 // pred_region
        _
      $region20: #{basic_block_forward.3} parent=11 // pred_fallthru
        _
    $region12: #{basic_block_forward.3} parent=5 // pred_fallthru
      _
    %p230 = scmp.lt.s32.totalorder %s13, 4
    // Predicated region
    $region21: #{basic_block_forward.3} parent=5 // pred_check
      %p231 = pneg %p230
    $region22: #{basic_block_forward.3} parent=5 // pred_check_branch
      %233 = sbr.rel (%p231) target = $region24
    $region23: #{basic_block_forward.3} parent=5 // pred_region
      // Predicated region
      $region25: #{basic_block_forward.3} parent=23 // pred_check
        %p234 = pneg %p47
      $region26: #{basic_block_forward.3} parent=23 // pred_check_branch
        %236 = sbr.rel (%p234) target = $region28
      $region27: #{basic_block_forward.3} parent=23 // pred_region
        %s237 = smul.u32 4, %s21
        %p238 = scmp.lt.s32.totalorder %s20, 1
        %s239 = scalar_select %p238, %s20, 1
        %p240 = scmp.lt.s32.totalorder %s237, 7
        %s241 = scalar_select %p240, %s237, 7
        %s242 = smul.addr %s239, 8
        %s243 = sadd.s32 %s241, %s242
        %s244 = smul.addr %s243, 4
        %s245 = scalar_lea.vmem %s0, %s244
        %s246 = smul.u32 4, %s21
      $region28: #{basic_block_forward.3} parent=23 // pred_fallthru
        _
      // Predicated region
      $region29: #{basic_block_forward.3} parent=23 // pred_check
        %p247 = pneg %p75
      $region30: #{basic_block_forward.3} parent=23 // pred_check_branch
        %249 = sbr.rel (%p247) target = $region32
      $region31: #{basic_block_forward.3} parent=23 // pred_region
        %s250 = smul.u32 4, %s21
        %p251 = scmp.lt.s32.totalorder %s20, 1
        %s252 = scalar_select %p251, %s20, 1
        %p253 = scmp.lt.s32.totalorder %s250, 7
        %s254 = scalar_select %p253, %s250, 7
        %s255 = smul.addr %s252, 8
        %s256 = sadd.s32 %s254, %s255
        %s257 = smul.addr %s256, 4
        %s258 = scalar_lea.vmem %s1, %s257
        %s259 = smul.u32 4, %s21
      $region32: #{basic_block_forward.3} parent=23 // pred_fallthru
        _
    $region24: #{basic_block_forward.3} parent=5 // pred_fallthru
      _
    %p260 = scmp.le.s32.totalorder 1, %s13
    %p261 = scmp.lt.s32.totalorder %s13, 5
    %p262 = pnand %p260, %p261
    %p263 = pneg %p262
    // Predicated region
    $region33: #{basic_block_forward.3} parent=5 // pred_check
      _
    $region34: #{basic_block_forward.3} parent=5 // pred_check_branch
      %265 = sbr.rel (%p262) target = $region36
    $region35: #{basic_block_forward.3} parent=5 // pred_region
      %s266 = ssub.s32 %s13, 1
      %s267 = smul.u32 4, %s23
      %p268 = scmp.lt.s32.totalorder %s22, 1
      %s269 = scalar_select %p268, %s22, 1
      %p270 = scmp.lt.s32.totalorder %s267, 7
      %s271 = scalar_select %p270, %s267, 7
      %s272 = smul.addr %s269, 8
      %s273 = sadd.s32 %s271, %s272
      %s274 = smul.addr %s273, 4
      %s275 = scalar_lea.vmem %s0, %s274
      %p276 = pneg %p53
      %p277 = pneg %p50
      %s278 = smul.u32 4, %s23
      %p279 = scmp.lt.s32.totalorder %s22, 1
      %s280 = scalar_select %p279, %s22, 1
      %p281 = scmp.lt.s32.totalorder %s278, 7
      %s282 = scalar_select %p281, %s278, 7
      %s283 = smul.addr %s280, 8
      %s284 = sadd.s32 %s282, %s283
      %s285 = smul.addr %s284, 4
      %s286 = scalar_lea.vmem %s1, %s285
      %p287 = pneg %p81
      %p288 = pneg %p78
      %p289 = pneg %p102
      %p290 = pneg %p99
      %p291 = pneg %p123
      %p292 = pneg %p120
      %p293 = pneg %p151
      %p294 = pneg %p148
      %s295 = smul.u32 4, %s23
      %p296 = scmp.lt.s32.totalorder %s22, 1
      %s297 = scalar_select %p296, %s22, 1
      %p298 = scmp.lt.s32.totalorder %s295, 7
      %s299 = scalar_select %p298, %s295, 7
      %s300 = smul.addr %s297, 8
      %s301 = sadd.s32 %s299, %s300
      %s302 = smul.addr %s301, 4
      %s303 = scalar_lea.vmem %s4, %s302
      %p304 = pneg %p179
      %p305 = pneg %p176
      %s306 = smul.u32 4, %s23
      %p307 = scmp.lt.s32.totalorder %s22, 1
      %s308 = scalar_select %p307, %s22, 1
      %p309 = scmp.lt.s32.totalorder %s306, 7
      %s310 = scalar_select %p309, %s306, 7
      %s311 = smul.addr %s308, 8
      %s312 = sadd.s32 %s310, %s311
      %s313 = smul.addr %s312, 4
      %s314 = scalar_lea.vmem %s5, %s313
      %p315 = pneg %p209
      %p316 = pneg %p206
      %s317 = smul.u32 %s22, 2
      %s318 = sadd.s32 %s317, %s23
      %p319 = scmp.lt.s32.totalorder %s318, 3
      %s320 = scalar_select %p319, %s318, 3
      %s321 = smul.addr %s320, 8
      %s322 = scalar_lea.vmem %s6, %s321
      %s323 = smul.u32 4, %s23
      %p324 = scmp.lt.s32.totalorder %s22, 1
      %s325 = scalar_select %p324, %s22, 1
      %p326 = scmp.lt.s32.totalorder %s323, 7
      %s327 = scalar_select %p326, %s323, 7
      %s328 = smul.addr %s325, 8
      %s329 = sadd.s32 %s327, %s328
      %s330 = smul.addr %s329, 4
      %s331 = scalar_lea.vmem %s0, %s330
      %s332 = smul.u32 4, %s23
      %s333 = smul.u32 4, %s23
      %p334 = scmp.lt.s32.totalorder %s22, 1
      %s335 = scalar_select %p334, %s22, 1
      %p336 = scmp.lt.s32.totalorder %s333, 7
      %s337 = scalar_select %p336, %s333, 7
      %s338 = smul.addr %s335, 8
      %s339 = sadd.s32 %s337, %s338
      %s340 = smul.addr %s339, 4
      %s341 = scalar_lea.vmem %s1, %s340
      %s342 = smul.u32 4, %s23
      %s343 = smul.u32 4, %s23
      %p344 = scmp.lt.s32.totalorder %s22, 1
      %s345 = scalar_select %p344, %s22, 1
      %p346 = scmp.lt.s32.totalorder %s343, 7
      %s347 = scalar_select %p346, %s343, 7
      %s348 = smul.addr %s345, 8
      %s349 = sadd.s32 %s347, %s348
      %s350 = smul.addr %s349, 4
      %s351 = scalar_lea.vmem %s4, %s350
      %s352 = smul.u32 4, %s23
      %s353 = smul.u32 4, %s23
      %p354 = scmp.lt.s32.totalorder %s22, 1
      %s355 = scalar_select %p354, %s22, 1
      %p356 = scmp.lt.s32.totalorder %s353, 7
      %s357 = scalar_select %p356, %s353, 7
      %s358 = smul.addr %s355, 8
      %s359 = sadd.s32 %s357, %s358
      %s360 = smul.addr %s359, 4
      %s361 = scalar_lea.vmem %s5, %s360
      %s362 = smul.u32 4, %s23
      %s363 = smul.u32 %s22, 2
      %s364 = sadd.s32 %s363, %s23
      %p365 = scmp.lt.s32.totalorder %s364, 3
      %s366 = scalar_select %p365, %s364, 3
      %s367 = smul.addr %s366, 8
      %s368 = scalar_lea.vmem %s6, %s367
      %s369 = smul.u32 %s22, 2
      %s370 = sadd.s32 %s369, %s23
      %v372 = vld [vmem:[%s331] sm:$0xf]
      %v373 = vld [vmem:[%s331 + $0x4] sm:$0xf]
      %v374 = vld [vmem:[%s331 + $0x8] sm:$0xf]
      %v375 = vld [vmem:[%s331 + $0xc] sm:$0xf]
      %v376 = vld [vmem:[%s2] sm:$0xf]
      %v377 = vld [vmem:[%s2 + $0x4] sm:$0xf]
      %v378 = vld [vmem:[%s2 + $0x8] sm:$0xf]
      %v379 = vld [vmem:[%s2 + $0xc] sm:$0xf]
      %v380 = vld [vmem:[%s2 + $0x10] sm:$0xf]
      %v381 = vld [vmem:[%s2 + $0x14] sm:$0xf]
      %v382 = vld [vmem:[%s2 + $0x18] sm:$0xf]
      %v383 = vld [vmem:[%s2 + $0x1c] sm:$0xf]
      %v384 = vld [vmem:[%s2 + $0x20] sm:$0xf]
      %v385 = vld [vmem:[%s2 + $0x24] sm:$0xf]
      %v386 = vld [vmem:[%s2 + $0x28] sm:$0xf]
      %v387 = vld [vmem:[%s2 + $0x2c] sm:$0xf]
      %v388 = vld [vmem:[%s2 + $0x30] sm:$0xf]
      %v389 = vld [vmem:[%s2 + $0x34] sm:$0xf]
      %v390 = vld [vmem:[%s2 + $0x38] sm:$0xf]
      %v391 = vld [vmem:[%s2 + $0x3c] sm:$0xf]
      %v396 = vunpack.c.l.b16 %v372
      %v397 = vunpack.c.l.b16 %v373
      %v398 = vunpack.c.l.b16 %v374
      %v399 = vunpack.c.l.b16 %v375
      %v400 = vpack.c.b16 %v397, %v396
      %v401 = vpack.c.b16 %v399, %v398
      %v420 = vunpack.c.l.b16 %v376
      %v421 = vunpack.c.l.b16 %v377
      %v422 = vunpack.c.l.b16 %v378
      %v423 = vunpack.c.l.b16 %v379
      %v424 = vunpack.c.l.b16 %v380
      %v425 = vunpack.c.l.b16 %v381
      %v426 = vunpack.c.l.b16 %v382
      %v427 = vunpack.c.l.b16 %v383
      %v428 = vunpack.c.l.b16 %v384
      %v429 = vunpack.c.l.b16 %v385
      %v430 = vunpack.c.l.b16 %v386
      %v431 = vunpack.c.l.b16 %v387
      %v432 = vunpack.c.l.b16 %v388
      %v433 = vunpack.c.l.b16 %v389
      %v434 = vunpack.c.l.b16 %v390
      %v435 = vunpack.c.l.b16 %v391
      %v436 = vpack.c.b16 %v421, %v420
      %v437 = vpack.c.b16 %v423, %v422
      %v438 = vpack.c.b16 %v425, %v424
      %v439 = vpack.c.b16 %v427, %v426
      %v440 = vpack.c.b16 %v429, %v428
      %v441 = vpack.c.b16 %v431, %v430
      %v442 = vpack.c.b16 %v433, %v432
      %v443 = vpack.c.b16 %v435, %v434
      %452 = vmatprep.subr.bf16.mxu0 0
      %453 = vmatpush1.bf16.msra.mxu0 %v443
      %454 = vmatprep.subr.bf16.mxu0 0
      %455 = vmatpush1.bf16.msra.mxu0 %v442
      %456 = vmatprep.subr.bf16.mxu0 0
      %457 = vmatpush1.bf16.msra.mxu0 %v441
      %458 = vmatprep.subr.bf16.mxu0 0
      %459 = vmatpush1.bf16.msra.mxu0 %v440
      %460 = vmatprep.subr.bf16.mxu0 0
      %461 = vmatpush1.bf16.msra.mxu0 %v439
      %462 = vmatprep.subr.bf16.mxu0 0
      %463 = vmatpush1.bf16.msra.mxu0 %v438
      %464 = vmatprep.subr.bf16.mxu0 0
      %465 = vmatpush1.bf16.msra.mxu0 %v437
      %466 = vmatprep.subr.bf16.mxu0 0
      %467 = vmatpush1.bf16.msra.mxu0 %v436
      %468 = vmatprep.subr.bf16.mxu0 0
      %469 = vmatpush2.bf16.msra.mxu0 0
      %470 = vmatprep.subr.bf16.mxu0 0
      %471 = vmatpush2.bf16.msra.mxu0 0
      %472 = vmatprep.subr.bf16.mxu0 0
      %473 = vmatpush2.bf16.msra.mxu0 0
      %474 = vmatprep.subr.bf16.mxu0 0
      %475 = vmatpush2.bf16.msra.mxu0 0
      %476 = vmatprep.subr.bf16.mxu0 0
      %477 = vmatpush2.bf16.msra.mxu0 0
      %478 = vmatprep.subr.bf16.mxu0 0
      %479 = vmatpush2.bf16.msra.mxu0 0
      %480 = vmatprep.subr.bf16.mxu0 0
      %481 = vmatpush2.bf16.msra.mxu0 0
      %482 = vmatprep.subr.bf16.mxu0 0
      %483 = vmatpush2.bf16.msra.mxu0 0
      %484 = vmatprep.mubr.bf16.mxu0 0
      %485 = vmatmul.mubr.bf16.gmra.mxu0 %v400
      %v486 = vpop.f32.mrf.mxu0
      %v487 = vadd.f32 0.0, %v486
      %v488 = vpop.f32.mrf.mxu0
      %v489 = vpop.f32.mrf.mxu0
      %v490 = vadd.f32 0.0, %v489
      %v491 = vpop.f32.mrf.mxu0
      %492 = vmatprep.mubr.bf16.mxu0 0
      %493 = vmatmul.mubr.bf16.gmra.mxu0 %v401
      %v494 = vpop.f32.mrf.mxu0
      %v495 = vadd.f32 0.0, %v494
      %v496 = vpop.f32.mrf.mxu0
      %v497 = vpop.f32.mrf.mxu0
      %v498 = vadd.f32 0.0, %v497
      %v499 = vpop.f32.mrf.mxu0
      %500 = vdwg.mxu0
      %v501 = vld [vmem:[%s341] sm:$0xf]
      %v502 = vld [vmem:[%s341 + $0x4] sm:$0xf]
      %v503 = vld [vmem:[%s341 + $0x8] sm:$0xf]
      %v504 = vld [vmem:[%s341 + $0xc] sm:$0xf]
      %v505 = vld [vmem:[%s3] sm:$0xf]
      %v506 = vld [vmem:[%s3 + $0x4] sm:$0xf]
      %v507 = vld [vmem:[%s3 + $0x8] sm:$0xf]
      %v508 = vld [vmem:[%s3 + $0xc] sm:$0xf]
      %v509 = vld [vmem:[%s3 + $0x10] sm:$0xf]
      %v510 = vld [vmem:[%s3 + $0x14] sm:$0xf]
      %v511 = vld [vmem:[%s3 + $0x18] sm:$0xf]
      %v512 = vld [vmem:[%s3 + $0x1c] sm:$0xf]
      %v513 = vld [vmem:[%s3 + $0x20] sm:$0xf]
      %v514 = vld [vmem:[%s3 + $0x24] sm:$0xf]
      %v515 = vld [vmem:[%s3 + $0x28] sm:$0xf]
      %v516 = vld [vmem:[%s3 + $0x2c] sm:$0xf]
      %v517 = vld [vmem:[%s3 + $0x30] sm:$0xf]
      %v518 = vld [vmem:[%s3 + $0x34] sm:$0xf]
      %v519 = vld [vmem:[%s3 + $0x38] sm:$0xf]
      %v520 = vld [vmem:[%s3 + $0x3c] sm:$0xf]
      %v525 = vunpack.c.l.b16 %v501
      %v526 = vunpack.c.l.b16 %v502
      %v527 = vunpack.c.l.b16 %v503
      %v528 = vunpack.c.l.b16 %v504
      %v529 = vpack.c.b16 %v526, %v525
      %v530 = vpack.c.b16 %v528, %v527
      %v549 = vunpack.c.l.b16 %v505
      %v550 = vunpack.c.l.b16 %v506
      %v551 = vunpack.c.l.b16 %v507
      %v552 = vunpack.c.l.b16 %v508
      %v553 = vunpack.c.l.b16 %v509
      %v554 = vunpack.c.l.b16 %v510
      %v555 = vunpack.c.l.b16 %v511
      %v556 = vunpack.c.l.b16 %v512
      %v557 = vunpack.c.l.b16 %v513
      %v558 = vunpack.c.l.b16 %v514
      %v559 = vunpack.c.l.b16 %v515
      %v560 = vunpack.c.l.b16 %v516
      %v561 = vunpack.c.l.b16 %v517
      %v562 = vunpack.c.l.b16 %v518
      %v563 = vunpack.c.l.b16 %v519
      %v564 = vunpack.c.l.b16 %v520
      %v565 = vpack.c.b16 %v550, %v549
      %v566 = vpack.c.b16 %v552, %v551
      %v567 = vpack.c.b16 %v554, %v553
      %v568 = vpack.c.b16 %v556, %v555
      %v569 = vpack.c.b16 %v558, %v557
      %v570 = vpack.c.b16 %v560, %v559
      %v571 = vpack.c.b16 %v562, %v561
      %v572 = vpack.c.b16 %v564, %v563
      %581 = vmatprep.subr.bf16.mxu0 0
      %582 = vmatpush1.bf16.msra.mxu0 %v572
      %583 = vmatprep.subr.bf16.mxu0 0
      %584 = vmatpush1.bf16.msra.mxu0 %v571
      %585 = vmatprep.subr.bf16.mxu0 0
      %586 = vmatpush1.bf16.msra.mxu0 %v570
      %587 = vmatprep.subr.bf16.mxu0 0
      %588 = vmatpush1.bf16.msra.mxu0 %v569
      %589 = vmatprep.subr.bf16.mxu0 0
      %590 = vmatpush1.bf16.msra.mxu0 %v568
      %591 = vmatprep.subr.bf16.mxu0 0
      %592 = vmatpush1.bf16.msra.mxu0 %v567
      %593 = vmatprep.subr.bf16.mxu0 0
      %594 = vmatpush1.bf16.msra.mxu0 %v566
      %595 = vmatprep.subr.bf16.mxu0 0
      %596 = vmatpush1.bf16.msra.mxu0 %v565
      %597 = vmatprep.subr.bf16.mxu0 0
      %598 = vmatpush2.bf16.msra.mxu0 0
      %599 = vmatprep.subr.bf16.mxu0 0
      %600 = vmatpush2.bf16.msra.mxu0 0
      %601 = vmatprep.subr.bf16.mxu0 0
      %602 = vmatpush2.bf16.msra.mxu0 0
      %603 = vmatprep.subr.bf16.mxu0 0
      %604 = vmatpush2.bf16.msra.mxu0 0
      %605 = vmatprep.subr.bf16.mxu0 0
      %606 = vmatpush2.bf16.msra.mxu0 0
      %607 = vmatprep.subr.bf16.mxu0 0
      %608 = vmatpush2.bf16.msra.mxu0 0
      %609 = vmatprep.subr.bf16.mxu0 0
      %610 = vmatpush2.bf16.msra.mxu0 0
      %611 = vmatprep.subr.bf16.mxu0 0
      %612 = vmatpush2.bf16.msra.mxu0 0
      %613 = vmatprep.mubr.bf16.mxu0 0
      %614 = vmatmul.mubr.bf16.gmra.mxu0 %v529
      %v615 = vpop.f32.mrf.mxu0
      %v616 = vadd.f32 0.0, %v615
      %v617 = vpop.f32.mrf.mxu0
      %v618 = vpop.f32.mrf.mxu0
      %v619 = vadd.f32 0.0, %v618
      %v620 = vpop.f32.mrf.mxu0
      %621 = vmatprep.mubr.bf16.mxu0 0
      %622 = vmatmul.mubr.bf16.gmra.mxu0 %v530
      %v623 = vpop.f32.mrf.mxu0
      %v624 = vadd.f32 0.0, %v623
      %v625 = vpop.f32.mrf.mxu0
      %v626 = vpop.f32.mrf.mxu0
      %v627 = vadd.f32 0.0, %v626
      %v628 = vpop.f32.mrf.mxu0
      %629 = vdwg.mxu0
      %v630 = vpack.c.bf16 %v490, %v487
      %v631 = vpack.c.bf16 %v498, %v495
      %v634 = vunpack.c.l.b16 %v630
      %v635 = vunpack.c.h.b16 %v630
      %v636 = vunpack.c.l.b16 %v631
      %v637 = vunpack.c.h.b16 %v631
      %v638 = vpack.c.b16 %v634, %v634
      %v639 = vpack.c.b16 %v635, %v635
      %v640 = vpack.c.b16 %v636, %v636
      %v641 = vpack.c.b16 %v637, %v637
      %646 = vst [vmem:[%s351] sm:$0xf] %v638
      %647 = vst [vmem:[%s351 + $0x4] sm:$0xf] %v639
      %648 = vst [vmem:[%s351 + $0x8] sm:$0xf] %v640
      %649 = vst [vmem:[%s351 + $0xc] sm:$0xf] %v641
      %v650 = vpack.c.bf16 %v619, %v616
      %v651 = vpack.c.bf16 %v627, %v624
      %v654 = vunpack.c.l.b16 %v650
      %v655 = vunpack.c.h.b16 %v650
      %v656 = vunpack.c.l.b16 %v651
      %v657 = vunpack.c.h.b16 %v651
      %v658 = vpack.c.b16 %v654, %v654
      %v659 = vpack.c.b16 %v655, %v655
      %v660 = vpack.c.b16 %v656, %v656
      %v661 = vpack.c.b16 %v657, %v657
      %666 = vst [vmem:[%s361] sm:$0xf] %v658
      %667 = vst [vmem:[%s361 + $0x4] sm:$0xf] %v659
      %668 = vst [vmem:[%s361 + $0x8] sm:$0xf] %v660
      %669 = vst [vmem:[%s361 + $0xc] sm:$0xf] %v661
      %v670 = vadd.f32 %v487, %v490
      %v671 = vadd.f32 %v670, %v495
      %v672 = vadd.f32 %v671, %v498
      %v673 = vrot.slane %v672, 4
      %v674 = vadd.f32 %v672, %v673
      %v675 = vrot.slane %v674, 2
      %v676 = vadd.f32 %v674, %v675
      %v677 = vrot.slane %v676, 1
      %v678 = vadd.f32 %v676, %v677
      %679 = vst [vmem:[%s368] sm:$0x1] %v678
      %v680 = vmul.f32 %v487, %v487
      %v681 = vmul.f32 %v490, %v490
      %v682 = vmul.f32 %v495, %v495
      %v683 = vmul.f32 %v498, %v498
      %v684 = vadd.f32 %v680, %v681
      %v685 = vadd.f32 %v684, %v682
      %v686 = vadd.f32 %v685, %v683
      %v687 = vrot.slane %v686, 4
      %v688 = vadd.f32 %v686, %v687
      %v689 = vrot.slane %v688, 2
      %v690 = vadd.f32 %v688, %v689
      %v691 = vrot.slane %v690, 1
      %v692 = vadd.f32 %v690, %v691
      %693 = vst [vmem:[%s368 + $0x1] sm:$0x1] %v692
      %v694 = vadd.f32 %v616, %v619
      %v695 = vadd.f32 %v694, %v624
      %v696 = vadd.f32 %v695, %v627
      %v697 = vrot.slane %v696, 4
      %v698 = vadd.f32 %v696, %v697
      %v699 = vrot.slane %v698, 2
      %v700 = vadd.f32 %v698, %v699
      %v701 = vrot.slane %v700, 1
      %v702 = vadd.f32 %v700, %v701
      %703 = vst [vmem:[%s368 + $0x2] sm:$0x1] %v702
      %v704 = vmul.f32 %v616, %v616
      %v705 = vmul.f32 %v619, %v619
      %v706 = vmul.f32 %v624, %v624
      %v707 = vmul.f32 %v627, %v627
      %v708 = vadd.f32 %v704, %v705
      %v709 = vadd.f32 %v708, %v706
      %v710 = vadd.f32 %v709, %v707
      %v711 = vrot.slane %v710, 4
      %v712 = vadd.f32 %v710, %v711
      %v713 = vrot.slane %v712, 2
      %v714 = vadd.f32 %v712, %v713
      %v715 = vrot.slane %v714, 1
      %v716 = vadd.f32 %v714, %v715
      %717 = vst [vmem:[%s368 + $0x3] sm:$0x1] %v716
      %s718 = smul.u32 4, %s23
      %p719 = scmp.lt.s32.totalorder %s22, 1
      %s720 = scalar_select %p719, %s22, 1
      %p721 = scmp.lt.s32.totalorder %s718, 7
      %s722 = scalar_select %p721, %s718, 7
      %s723 = smul.addr %s720, 8
      %s724 = sadd.s32 %s722, %s723
      %s725 = smul.addr %s724, 4
      %s726 = scalar_lea.vmem %s4, %s725
      %s727 = smul.u32 4, %s23
      %p728 = scmp.lt.s32.totalorder %s22, 1
      %s729 = scalar_select %p728, %s22, 1
      %p730 = scmp.lt.s32.totalorder %s727, 7
      %s731 = scalar_select %p730, %s727, 7
      %s732 = smul.addr %s729, 8
      %s733 = sadd.s32 %s731, %s732
      %s734 = smul.addr %s733, 4
      %s735 = scalar_lea.vmem %s5, %s734
      %s736 = smul.u32 %s22, 2
      %s737 = sadd.s32 %s736, %s23
      %p738 = scmp.lt.s32.totalorder %s737, 3
      %s739 = scalar_select %p738, %s737, 3
      %s740 = smul.addr %s739, 8
      %s741 = scalar_lea.vmem %s6, %s740
      // Predicated region
      $region37: #{basic_block_forward.3} parent=35 // pred_check
        %p742 = pneg %p148
      $region38: #{basic_block_forward.3} parent=35 // pred_check_branch
        %744 = sbr.rel (%p742) target = $region40
      $region39: #{basic_block_forward.3} parent=35 // pred_region
        %s745 = smul.u32 4, %s23
      $region40: #{basic_block_forward.3} parent=35 // pred_fallthru
        _
      // Predicated region
      $region41: #{basic_block_forward.3} parent=35 // pred_check
        %p746 = pneg %p176
      $region42: #{basic_block_forward.3} parent=35 // pred_check_branch
        %748 = sbr.rel (%p746) target = $region44
      $region43: #{basic_block_forward.3} parent=35 // pred_region
        %s749 = smul.u32 4, %s23
      $region44: #{basic_block_forward.3} parent=35 // pred_fallthru
        _
      // Predicated region
      $region45: #{basic_block_forward.3} parent=35 // pred_check
        %p750 = pneg %p206
      $region46: #{basic_block_forward.3} parent=35 // pred_check_branch
        %752 = sbr.rel (%p750) target = $region48
      $region47: #{basic_block_forward.3} parent=35 // pred_region
        %s753 = smul.u32 %s22, 2
        %s754 = sadd.s32 %s753, %s23
      $region48: #{basic_block_forward.3} parent=35 // pred_fallthru
        _
    $region36: #{basic_block_forward.3} parent=5 // pred_fallthru
      _
    %p755 = scmp.le.s32.totalorder 2, %s13
    // Predicated region
    $region49: #{basic_block_forward.3} parent=5 // pred_check
      %p756 = pneg %p755
    $region50: #{basic_block_forward.3} parent=5 // pred_check_branch
      %758 = sbr.rel (%p756) target = $region52
    $region51: #{basic_block_forward.3} parent=5 // pred_region
      %s759 = ssub.s32 %s13, 2
      // Predicated region
      $region53: #{basic_block_forward.3} parent=51 // pred_check
        %p760 = pneg %p154
      $region54: #{basic_block_forward.3} parent=51 // pred_check_branch
        %762 = sbr.rel (%p760) target = $region56
      $region55: #{basic_block_forward.3} parent=51 // pred_region
        %s763 = smul.u32 4, %s25
        %p764 = scmp.lt.s32.totalorder %s24, 1
        %s765 = scalar_select %p764, %s24, 1
        %p766 = scmp.lt.s32.totalorder %s763, 7
        %s767 = scalar_select %p766, %s763, 7
        %s768 = smul.addr %s765, 8
        %s769 = sadd.s32 %s767, %s768
        %s770 = smul.addr %s769, 4
        %s771 = scalar_lea.vmem %s4, %s770
      $region56: #{basic_block_forward.3} parent=51 // pred_fallthru
        _
      // Predicated region
      $region57: #{basic_block_forward.3} parent=51 // pred_check
        %p772 = pneg %p182
      $region58: #{basic_block_forward.3} parent=51 // pred_check_branch
        %774 = sbr.rel (%p772) target = $region60
      $region59: #{basic_block_forward.3} parent=51 // pred_region
        %s775 = smul.u32 4, %s25
        %p776 = scmp.lt.s32.totalorder %s24, 1
        %s777 = scalar_select %p776, %s24, 1
        %p778 = scmp.lt.s32.totalorder %s775, 7
        %s779 = scalar_select %p778, %s775, 7
        %s780 = smul.addr %s777, 8
        %s781 = sadd.s32 %s779, %s780
        %s782 = smul.addr %s781, 4
        %s783 = scalar_lea.vmem %s5, %s782
      $region60: #{basic_block_forward.3} parent=51 // pred_fallthru
        _
      // Predicated region
      $region61: #{basic_block_forward.3} parent=51 // pred_check
        %p784 = pneg %p212
      $region62: #{basic_block_forward.3} parent=51 // pred_check_branch
        %786 = sbr.rel (%p784) target = $region64
      $region63: #{basic_block_forward.3} parent=51 // pred_region
        %s787 = smul.u32 %s24, 2
        %s788 = sadd.s32 %s787, %s25
        %p789 = scmp.lt.s32.totalorder %s788, 3
        %s790 = scalar_select %p789, %s788, 3
        %s791 = smul.addr %s790, 8
        %s792 = scalar_lea.vmem %s6, %s791
      $region64: #{basic_block_forward.3} parent=51 // pred_fallthru
        _
    $region52: #{basic_block_forward.3} parent=5 // pred_fallthru
      _
  $region6: #{basic_block_forward.3} parent=0 // loop_footer
    %s17 = sadd.s32 1, %s13
  $region7: #{basic_block_forward.3} parent=0 // loop_footer_branch
    %12 = sbr.rel target = $region3
  $region8: #{basic_block_forward.3} parent=0 // loop_exit
    _

// kernel: basic_block_forward.4
$region0: #{basic_block_forward.4}
  #allocation0 [shape = 'u32[]', space=smem, size = 0x4, offset = 0x4, fixed_abs, tag = 'smem constant byte address 0x4 - core index']
  #allocation1 [shape = 'u32[144,128]{1,0:T(1,128)}', space=vmem, size = 0x12000, scoped, tag = 'internal scratch']
  #allocation2 [shape = 'bf16[10,10,128]{2,1,0:T(8,128)(2,1)}', space=vmem, size = 0xa000, scoped, tag = 'scratch operand']
  %s0 = inlined_call_operand.vmem [shape: bf16[2,64,128], index: 0, kind: input, shape index: {}]
  %s1 = inlined_call_operand.vmem [shape: f32[8,128], index: 1, kind: input, shape index: {}]
  %s2 = inlined_call_operand.vmem [shape: bf16[9,128,128], index: 2, kind: input, shape index: {}]
  %s3 = inlined_call_operand.vmem [shape: bf16[2,64,128], index: 3, kind: input, shape index: {}]
  %s4 = inlined_call_operand.vmem [shape: f32[8,128], index: 4, kind: input, shape index: {}]
  %s5 = inlined_call_operand.vmem [shape: bf16[2,64,128], index: 5, kind: output, shape index: {0}]
  %s6 = inlined_call_operand.vmem [shape: f32[2,8,128], index: 6, kind: output, shape index: {1}]
  %7 = xla_tuple %s5, %s6
  %s8 = sld [smem:[#allocation0]]
  $region61: #{basic_block_forward.4} parent=0
    _
  %s10 = ssub.s32 1, %s8
  %s11 = scalar_select 0, %s10, %s8
  loop: start=0, step=1, limit=4
  $region2: #{basic_block_forward.4} parent=0 // loop_pre_header
    _
  $region3: #{basic_block_forward.4} parent=0 // loop_header
    %s13 = sphi 0, %s17
    %p14 = scmp.ge.s32.totalorder %s13, 4
    %s23 = sphi 0, %s25
    %s26 = sphi 0, %s23
    %s27 = sphi 0, %s26
    %s43 = sphi 0, %s27
    %s47 = sphi 0, %s47
    %s49 = sphi 0, %s47
    %s50 = sphi 0, %s49
    %s64 = sphi 0, %s50
    %s68 = sphi 0, %s68
    %s70 = sphi 0, %s68
    %s71 = sphi 0, %s70
    %s85 = sphi 0, %s71
    %s91 = sphi 0, %s93
    %s94 = sphi 0, %s91
    %s95 = sphi 0, %s94
    %s111 = sphi 0, %s95
    %s115 = sphi 0, %s115
    %s117 = sphi 0, %s115
    %s118 = sphi 0, %s117
    %s132 = sphi 0, %s118
    %s138 = sphi 0, %s140
    %s141 = sphi 0, %s138
    %s142 = sphi 0, %s141
    %s158 = sphi 0, %s142
    %s164 = sphi 0, %s166
    %s167 = sphi 0, %s164
    %s168 = sphi 0, %s167
    %s184 = sphi 0, %s168
  $region4: #{basic_block_forward.4} parent=0 // loop_header_branch
    %16 = sbr.rel (%p14) target = $region8
  $region5: #{basic_block_forward.4} parent=0 // loop_body
    %s18 = ssub.s32 %s13, 1
    %s19 = ssub.s32 %s13, 2
    %s20 = sadd.s32 %s13, 1
    %s21 = ssub.s32 %s13, %s20
    %p22 = scmp.eq.s32.totalorder %s21, 0
    %s24 = sadd.s32 %s23, 1
    %s25 = scalar_select %p22, %s23, %s24
    %p28 = pneg %p22
    %p29 = scmp.eq.s32.totalorder %s13, 1
    %p30 = por %p28, %p29
    %p31 = scmp.ne.s32.totalorder %s23, %s26
    %p32 = scmp.eq.s32.totalorder %s13, 0
    %p33 = por %p31, %p32
    %p34 = scmp.ne.s32.totalorder %s23, %s26
    %p35 = scmp.eq.s32.totalorder %s18, 1
    %p36 = por %p34, %p35
    %p37 = scmp.ne.s32.totalorder %s26, %s27
    %p38 = scmp.eq.s32.totalorder %s18, 0
    %p39 = por %p37, %p38
    %p40 = scmp.ne.s32.totalorder %s26, %s27
    %p41 = scmp.eq.s32.totalorder %s19, 1
    %p42 = por %p40, %p41
    %p44 = scmp.ne.s32.totalorder %s27, %s43
    %p45 = scmp.eq.s32.totalorder %s19, 0
    %p46 = por %p44, %p45
    %s48 = sadd.s32 %s47, 1
    %p51 = scmp.eq.s32.totalorder %s13, 1
    %p52 = scmp.ne.s32.totalorder %s47, %s49
    %p53 = scmp.eq.s32.totalorder %s13, 0
    %p54 = por %p52, %p53
    %p55 = scmp.ne.s32.totalorder %s47, %s49
    %p56 = scmp.eq.s32.totalorder %s18, 1
    %p57 = por %p55, %p56
    %p58 = scmp.ne.s32.totalorder %s49, %s50
    %p59 = scmp.eq.s32.totalorder %s18, 0
    %p60 = por %p58, %p59
    %p61 = scmp.ne.s32.totalorder %s49, %s50
    %p62 = scmp.eq.s32.totalorder %s19, 1
    %p63 = por %p61, %p62
    %p65 = scmp.ne.s32.totalorder %s50, %s64
    %p66 = scmp.eq.s32.totalorder %s19, 0
    %p67 = por %p65, %p66
    %s69 = sadd.s32 %s68, 1
    %p72 = scmp.eq.s32.totalorder %s13, 1
    %p73 = scmp.ne.s32.totalorder %s68, %s70
    %p74 = scmp.eq.s32.totalorder %s13, 0
    %p75 = por %p73, %p74
    %p76 = scmp.ne.s32.totalorder %s68, %s70
    %p77 = scmp.eq.s32.totalorder %s18, 1
    %p78 = por %p76, %p77
    %p79 = scmp.ne.s32.totalorder %s70, %s71
    %p80 = scmp.eq.s32.totalorder %s18, 0
    %p81 = por %p79, %p80
    %p82 = scmp.ne.s32.totalorder %s70, %s71
    %p83 = scmp.eq.s32.totalorder %s19, 1
    %p84 = por %p82, %p83
    %p86 = scmp.ne.s32.totalorder %s71, %s85
    %p87 = scmp.eq.s32.totalorder %s19, 0
    %p88 = por %p86, %p87
    %s89 = ssub.s32 %s13, %s20
    %p90 = scmp.eq.s32.totalorder %s89, 0
    %s92 = sadd.s32 %s91, 1
    %s93 = scalar_select %p90, %s91, %s92
    %p96 = pneg %p90
    %p97 = scmp.eq.s32.totalorder %s13, 1
    %p98 = por %p96, %p97
    %p99 = scmp.ne.s32.totalorder %s91, %s94
    %p100 = scmp.eq.s32.totalorder %s13, 0
    %p101 = por %p99, %p100
    %p102 = scmp.ne.s32.totalorder %s91, %s94
    %p103 = scmp.eq.s32.totalorder %s18, 1
    %p104 = por %p102, %p103
    %p105 = scmp.ne.s32.totalorder %s94, %s95
    %p106 = scmp.eq.s32.totalorder %s18, 0
    %p107 = por %p105, %p106
    %p108 = scmp.ne.s32.totalorder %s94, %s95
    %p109 = scmp.eq.s32.totalorder %s19, 1
    %p110 = por %p108, %p109
    %p112 = scmp.ne.s32.totalorder %s95, %s111
    %p113 = scmp.eq.s32.totalorder %s19, 0
    %p114 = por %p112, %p113
    %s116 = sadd.s32 %s115, 1
    %p119 = scmp.eq.s32.totalorder %s13, 1
    %p120 = scmp.ne.s32.totalorder %s115, %s117
    %p121 = scmp.eq.s32.totalorder %s13, 0
    %p122 = por %p120, %p121
    %p123 = scmp.ne.s32.totalorder %s115, %s117
    %p124 = scmp.eq.s32.totalorder %s18, 1
    %p125 = por %p123, %p124
    %p126 = scmp.ne.s32.totalorder %s117, %s118
    %p127 = scmp.eq.s32.totalorder %s18, 0
    %p128 = por %p126, %p127
    %p129 = scmp.ne.s32.totalorder %s117, %s118
    %p130 = scmp.eq.s32.totalorder %s19, 1
    %p131 = por %p129, %p130
    %p133 = scmp.ne.s32.totalorder %s118, %s132
    %p134 = scmp.eq.s32.totalorder %s19, 0
    %p135 = por %p133, %p134
    %s136 = ssub.s32 %s13, %s20
    %p137 = scmp.eq.s32.totalorder %s136, 0
    %s139 = sadd.s32 %s138, 1
    %s140 = scalar_select %p137, %s138, %s139
    %p143 = pneg %p137
    %p144 = scmp.eq.s32.totalorder %s13, 1
    %p145 = por %p143, %p144
    %p146 = scmp.ne.s32.totalorder %s138, %s141
    %p147 = scmp.eq.s32.totalorder %s13, 0
    %p148 = por %p146, %p147
    %p149 = scmp.ne.s32.totalorder %s138, %s141
    %p150 = scmp.eq.s32.totalorder %s18, 1
    %p151 = por %p149, %p150
    %p152 = scmp.ne.s32.totalorder %s141, %s142
    %p153 = scmp.eq.s32.totalorder %s18, 0
    %p154 = por %p152, %p153
    %p155 = scmp.ne.s32.totalorder %s141, %s142
    %p156 = scmp.eq.s32.totalorder %s19, 1
    %p157 = por %p155, %p156
    %p159 = scmp.ne.s32.totalorder %s142, %s158
    %p160 = scmp.eq.s32.totalorder %s19, 0
    %p161 = por %p159, %p160
    %s162 = ssub.s32 %s13, %s20
    %p163 = scmp.eq.s32.totalorder %s162, 0
    %s165 = sadd.s32 %s164, 1
    %s166 = scalar_select %p163, %s164, %s165
    %p169 = pneg %p163
    %p170 = scmp.eq.s32.totalorder %s13, 1
    %p171 = por %p169, %p170
    %p172 = scmp.ne.s32.totalorder %s164, %s167
    %p173 = scmp.eq.s32.totalorder %s13, 0
    %p174 = por %p172, %p173
    %p175 = scmp.ne.s32.totalorder %s164, %s167
    %p176 = scmp.eq.s32.totalorder %s18, 1
    %p177 = por %p175, %p176
    %p178 = scmp.ne.s32.totalorder %s167, %s168
    %p179 = scmp.eq.s32.totalorder %s18, 0
    %p180 = por %p178, %p179
    %p181 = scmp.ne.s32.totalorder %s167, %s168
    %p182 = scmp.eq.s32.totalorder %s19, 1
    %p183 = por %p181, %p182
    %p185 = scmp.ne.s32.totalorder %s168, %s184
    %p186 = scmp.eq.s32.totalorder %s19, 0
    %p187 = por %p185, %p186
    %p188 = scmp.le.s32.totalorder 1, %s13
    %p189 = scmp.lt.s32.totalorder %s13, 3
    %p190 = pnand %p188, %p189
    %p191 = pneg %p190
    // Predicated region
    $region9: #{basic_block_forward.4} parent=5 // pred_check
      _
    $region10: #{basic_block_forward.4} parent=5 // pred_check_branch
      %193 = sbr.rel (%p190) target = $region12
    $region11: #{basic_block_forward.4} parent=5 // pred_region
      %s194 = ssub.s32 %s13, 1
      // Predicated region
      $region13: #{basic_block_forward.4} parent=11 // pred_check
        %p195 = pneg %p60
      $region14: #{basic_block_forward.4} parent=11 // pred_check_branch
        %197 = sbr.rel (%p195) target = $region16
      $region15: #{basic_block_forward.4} parent=11 // pred_region
        _
      $region16: #{basic_block_forward.4} parent=11 // pred_fallthru
        _
      // Predicated region
      $region17: #{basic_block_forward.4} parent=11 // pred_check
        %p198 = pneg %p81
      $region18: #{basic_block_forward.4} parent=11 // pred_check_branch
        %200 = sbr.rel (%p198) target = $region20
      $region19: #{basic_block_forward.4} parent=11 // pred_region
        _
      $region20: #{basic_block_forward.4} parent=11 // pred_fallthru
        _
      // Predicated region
      $region21: #{basic_block_forward.4} parent=11 // pred_check
        %p201 = pneg %p128
      $region22: #{basic_block_forward.4} parent=11 // pred_check_branch
        %203 = sbr.rel (%p201) target = $region24
      $region23: #{basic_block_forward.4} parent=11 // pred_region
        _
      $region24: #{basic_block_forward.4} parent=11 // pred_fallthru
        _
    $region12: #{basic_block_forward.4} parent=5 // pred_fallthru
      _
    %p204 = scmp.lt.s32.totalorder %s13, 2
    // Predicated region
    $region25: #{basic_block_forward.4} parent=5 // pred_check
      %p205 = pneg %p204
    $region26: #{basic_block_forward.4} parent=5 // pred_check_branch
      %207 = sbr.rel (%p205) target = $region28
    $region27: #{basic_block_forward.4} parent=5 // pred_region
      // Predicated region
      $region29: #{basic_block_forward.4} parent=27 // pred_check
        %p208 = pneg %p33
      $region30: #{basic_block_forward.4} parent=27 // pred_check_branch
        %210 = sbr.rel (%p208) target = $region32
      $region31: #{basic_block_forward.4} parent=27 // pred_region
        %p211 = scmp.lt.s32.totalorder %s13, 1
        %s212 = scalar_select %p211, %s13, 1
        %s213 = smul.addr %s212, 8
        %s214 = smul.addr %s213, 4
        %s215 = scalar_lea.vmem %s0, %s214
      $region32: #{basic_block_forward.4} parent=27 // pred_fallthru
        _
      // Predicated region
      $region33: #{basic_block_forward.4} parent=27 // pred_check
        %p216 = pneg %p101
      $region34: #{basic_block_forward.4} parent=27 // pred_check_branch
        %218 = sbr.rel (%p216) target = $region36
      $region35: #{basic_block_forward.4} parent=27 // pred_region
        %p219 = scmp.lt.s32.totalorder %s13, 1
        %s220 = scalar_select %p219, %s13, 1
        %s221 = smul.addr %s220, 8
        %s222 = smul.addr %s221, 4
        %s223 = scalar_lea.vmem %s3, %s222
      $region36: #{basic_block_forward.4} parent=27 // pred_fallthru
        _
    $region28: #{basic_block_forward.4} parent=5 // pred_fallthru
      _
    %p224 = scmp.le.s32.totalorder 1, %s13
    %p225 = scmp.lt.s32.totalorder %s13, 3
    %p226 = pnand %p224, %p225
    %p227 = pneg %p226
    // Predicated region
    $region37: #{basic_block_forward.4} parent=5 // pred_check
      _
    $region38: #{basic_block_forward.4} parent=5 // pred_check_branch
      %229 = sbr.rel (%p226) target = $region40
    $region39: #{basic_block_forward.4} parent=5 // pred_region
      %s230 = ssub.s32 %s13, 1
      %p231 = scmp.lt.s32.totalorder %s18, 1
      %s232 = scalar_select %p231, %s18, 1
      %s233 = smul.addr %s232, 8
      %s234 = smul.addr %s233, 4
      %s235 = scalar_lea.vmem %s0, %s234
      %p236 = pneg %p39
      %p237 = pneg %p36
      %p238 = pneg %p60
      %p239 = pneg %p57
      %p240 = pneg %p81
      %p241 = pneg %p78
      %p242 = scmp.lt.s32.totalorder %s18, 1
      %s243 = scalar_select %p242, %s18, 1
      %s244 = smul.addr %s243, 8
      %s245 = smul.addr %s244, 4
      %s246 = scalar_lea.vmem %s3, %s245
      %p247 = pneg %p107
      %p248 = pneg %p104
      %p249 = pneg %p128
      %p250 = pneg %p125
      %p251 = pneg %p154
      %p252 = pneg %p151
      %p253 = scmp.lt.s32.totalorder %s18, 1
      %s254 = scalar_select %p253, %s18, 1
      %s255 = smul.addr %s254, 8
      %s256 = smul.addr %s255, 4
      %s257 = scalar_lea.vmem %s5, %s256
      %p258 = pneg %p180
      %p259 = pneg %p177
      %p260 = scmp.lt.s32.totalorder %s18, 1
      %s261 = scalar_select %p260, %s18, 1
      %s262 = smul.addr %s261, 8
      %s263 = scalar_lea.vmem %s6, %s262
      %p264 = scmp.lt.s32.totalorder %s18, 1
      %s265 = scalar_select %p264, %s18, 1
      %s266 = smul.addr %s265, 8
      %s267 = smul.addr %s266, 4
      %s268 = scalar_lea.vmem %s0, %s267
      %p269 = scmp.lt.s32.totalorder %s18, 1
      %s270 = scalar_select %p269, %s18, 1
      %s271 = smul.addr %s270, 8
      %s272 = smul.addr %s271, 4
      %s273 = scalar_lea.vmem %s3, %s272
      %p274 = scmp.lt.s32.totalorder %s18, 1
      %s275 = scalar_select %p274, %s18, 1
      %s276 = smul.addr %s275, 8
      %s277 = smul.addr %s276, 4
      %s278 = scalar_lea.vmem %s5, %s277
      %p279 = scmp.lt.s32.totalorder %s18, 1
      %s280 = scalar_select %p279, %s18, 1
      %s281 = smul.addr %s280, 8
      %s282 = scalar_lea.vmem %s6, %s281
      %v284 = vld [vmem:[%s268] sm:$0xf]
      %v285 = vld [vmem:[%s268 + $0x4] sm:$0xf]
      %v286 = vld [vmem:[%s268 + $0x8] sm:$0xf]
      %v287 = vld [vmem:[%s268 + $0xc] sm:$0xf]
      %v288 = vld [vmem:[%s268 + $0x10] sm:$0xf]
      %v289 = vld [vmem:[%s268 + $0x14] sm:$0xf]
      %v290 = vld [vmem:[%s268 + $0x18] sm:$0xf]
      %v291 = vld [vmem:[%s268 + $0x1c] sm:$0xf]
      %v292 = vunpack.c.l.bf16 %v284
      %v293 = vunpack.c.l.bf16 %v285
      %v294 = vunpack.c.l.bf16 %v286
      %v295 = vunpack.c.l.bf16 %v287
      %v296 = vunpack.c.l.bf16 %v288
      %v297 = vunpack.c.l.bf16 %v289
      %v298 = vunpack.c.l.bf16 %v290
      %v299 = vunpack.c.l.bf16 %v291
      %v300 = vld [vmem:[%s1] sm:$0x1]
      %v301 = vlaneseq
      %v302 = vshrl.u32 %v301, 7
      %v303 = vsub.s32 0, %v302
      %v304 = vrot.slane %v300, %v303
      %v305 = vmul.f32 %v292, %v304
      %v306 = vmul.f32 %v293, %v304
      %v307 = vmul.f32 %v294, %v304
      %v308 = vmul.f32 %v295, %v304
      %v309 = vmul.f32 %v296, %v304
      %v310 = vmul.f32 %v297, %v304
      %v311 = vmul.f32 %v298, %v304
      %v312 = vmul.f32 %v299, %v304
      %v313 = vld [vmem:[%s1 + $0x1] sm:$0x1]
      %v314 = vlaneseq
      %v315 = vshrl.u32 %v314, 7
      %v316 = vsub.s32 0, %v315
      %v317 = vrot.slane %v313, %v316
      %v318 = vadd.f32 %v305, %v317
      %v319 = vadd.f32 %v306, %v317
      %v320 = vadd.f32 %v307, %v317
      %v321 = vadd.f32 %v308, %v317
      %v322 = vadd.f32 %v309, %v317
      %v323 = vadd.f32 %v310, %v317
      %v324 = vadd.f32 %v311, %v317
      %v325 = vadd.f32 %v312, %v317
      %v326 = vmax.f32 %v318, 0.0
      %v327 = vmax.f32 %v319, 0.0
      %v328 = vmax.f32 %v320, 0.0
      %v329 = vmax.f32 %v321, 0.0
      %v330 = vmax.f32 %v322, 0.0
      %v331 = vmax.f32 %v323, 0.0
      %v332 = vmax.f32 %v324, 0.0
      %v333 = vmax.f32 %v325, 0.0
      %v334 = vpack.c.bf16 %v327, %v326
      %v335 = vpack.c.bf16 %v329, %v328
      %v336 = vpack.c.bf16 %v331, %v330
      %v337 = vpack.c.bf16 %v333, %v332
      %338 = vst [vmem:[#allocation2] sm:$0xf] 0
      %339 = vst [vmem:[#allocation2 + $0x4] sm:$0x1] 0
      %340 = vst [vmem:[#allocation2 + $0x8] sm:$0xf] 0
      %341 = vst [vmem:[#allocation2 + $0xc] sm:$0x1] 0
      %342 = vst [vmem:[#allocation2 + $0x10] sm:$0xf] 0
      %343 = vst [vmem:[#allocation2 + $0x14] sm:$0x1] 0
      %344 = vst [vmem:[#allocation2 + $0x18] sm:$0xf] 0
      %345 = vst [vmem:[#allocation2 + $0x1c] sm:$0x1] 0
      %346 = vst [vmem:[#allocation2 + $0x20] sm:$0xf] 0
      %347 = vst [vmem:[#allocation2 + $0x24] sm:$0x1] 0
      %348 = vst [vmem:[#allocation2 + $0x28] sm:$0xf] 0
      %349 = vst [vmem:[#allocation2 + $0x2c] sm:$0x1] 0
      %350 = vst [vmem:[#allocation2 + $0x30] sm:$0xf] 0
      %351 = vst [vmem:[#allocation2 + $0x34] sm:$0x1] 0
      %352 = vst [vmem:[#allocation2 + $0x38] sm:$0xf] 0
      %353 = vst [vmem:[#allocation2 + $0x3c] sm:$0x1] 0
      %354 = vst [vmem:[#allocation2 + $0x40] sm:$0xf] 0
      %355 = vst [vmem:[#allocation2 + $0x44] sm:$0x1] 0
      %356 = vst [vmem:[#allocation2 + $0x48] sm:$0xf] 0
      %357 = vst [vmem:[#allocation2 + $0x4c] sm:$0x1] 0
      %v362 = vunpack.c.l.b16 %v334
      %v363 = vunpack.c.h.b16 %v334
      %v364 = vunpack.c.l.b16 %v335
      %v365 = vunpack.c.h.b16 %v335
      %v366 = vunpack.c.l.b16 %v336
      %v367 = vunpack.c.h.b16 %v336
      %v368 = vunpack.c.l.b16 %v337
      %v369 = vunpack.c.h.b16 %v337
      %v370 = vpack.c.b16 %v362, %v362
      %v371 = vpack.c.b16 %v363, %v363
      %v372 = vpack.c.b16 %v364, %v364
      %v373 = vpack.c.b16 %v365, %v365
      %v374 = vpack.c.b16 %v366, %v366
      %v375 = vpack.c.b16 %v367, %v367
      %v376 = vpack.c.b16 %v368, %v368
      %v377 = vpack.c.b16 %v369, %v369
      %v379 = vshrl.u32 %v370, 16
      %v381 = vrot.slane %v379, 7
      %v382 = vshll.u32 %v370, 16
      %v384 = vor.u32 %v381, %v382
      %v385 = vrot.slane %v381, 4
      %v387 = vshrl.u32 %v371, 16
      %v389 = vrot.slane %v387, 7
      %v390 = vshll.u32 %v371, 16
      %v392 = vor.u32 %v389, %v390
      %v393 = vrot.slane %v389, 4
      %v395 = vshrl.u32 %v372, 16
      %v397 = vrot.slane %v395, 7
      %v398 = vshll.u32 %v372, 16
      %v400 = vor.u32 %v397, %v398
      %v401 = vrot.slane %v397, 4
      %v403 = vshrl.u32 %v373, 16
      %v405 = vrot.slane %v403, 7
      %v406 = vshll.u32 %v373, 16
      %v408 = vor.u32 %v405, %v406
      %v409 = vrot.slane %v405, 4
      %v411 = vshrl.u32 %v374, 16
      %v413 = vrot.slane %v411, 7
      %v414 = vshll.u32 %v374, 16
      %v416 = vor.u32 %v413, %v414
      %v417 = vrot.slane %v413, 4
      %v419 = vshrl.u32 %v375, 16
      %v421 = vrot.slane %v419, 7
      %v422 = vshll.u32 %v375, 16
      %v424 = vor.u32 %v421, %v422
      %v425 = vrot.slane %v421, 4
      %v427 = vshrl.u32 %v376, 16
      %v429 = vrot.slane %v427, 7
      %v430 = vshll.u32 %v376, 16
      %v432 = vor.u32 %v429, %v430
      %v433 = vrot.slane %v429, 4
      %v435 = vshrl.u32 %v377, 16
      %v437 = vrot.slane %v435, 7
      %v438 = vshll.u32 %v377, 16
      %v440 = vor.u32 %v437, %v438
      %v441 = vrot.slane %v437, 4
      %s458 = scalar_lea.vmem [#allocation2], 8
      %vm459 = vcmask 1043456
      %vm460 = vsmask.f32 7938
      %vm461 = vmand %vm459, %vm460
      %v462 = vld [vmem:[%s458] sm:$0xf]
      %v463 = vsel %vm461, %v384, %v462
      %464 = vst [vmem:[%s458] sm:$0xf] %v463
      %vm465 = vcmask 1040384
      %vm466 = vsmask.f32 256
      %vm467 = vmand %vm465, %vm466
      %v468 = vld [vmem:[%s458 + $0x4] sm:$0x1]
      %v469 = vsel %vm467, %v385, %v468
      %470 = vst [vmem:[%s458 + $0x4] sm:$0x1] %v469
      %v471 = vld [vmem:[%s458 + $0x8] sm:$0xf]
      %v472 = vsel %vm461, %v392, %v471
      %473 = vst [vmem:[%s458 + $0x8] sm:$0xf] %v472
      %v474 = vld [vmem:[%s458 + $0xc] sm:$0x1]
      %v475 = vsel %vm467, %v393, %v474
      %476 = vst [vmem:[%s458 + $0xc] sm:$0x1] %v475
      %v477 = vld [vmem:[%s458 + $0x10] sm:$0xf]
      %v478 = vsel %vm461, %v400, %v477
      %479 = vst [vmem:[%s458 + $0x10] sm:$0xf] %v478
      %v480 = vld [vmem:[%s458 + $0x14] sm:$0x1]
      %v481 = vsel %vm467, %v401, %v480
      %482 = vst [vmem:[%s458 + $0x14] sm:$0x1] %v481
      %v483 = vld [vmem:[%s458 + $0x18] sm:$0xf]
      %v484 = vsel %vm461, %v408, %v483
      %485 = vst [vmem:[%s458 + $0x18] sm:$0xf] %v484
      %v486 = vld [vmem:[%s458 + $0x1c] sm:$0x1]
      %v487 = vsel %vm467, %v409, %v486
      %488 = vst [vmem:[%s458 + $0x1c] sm:$0x1] %v487
      %v489 = vld [vmem:[%s458 + $0x20] sm:$0xf]
      %v490 = vsel %vm461, %v416, %v489
      %491 = vst [vmem:[%s458 + $0x20] sm:$0xf] %v490
      %v492 = vld [vmem:[%s458 + $0x24] sm:$0x1]
      %v493 = vsel %vm467, %v417, %v492
      %494 = vst [vmem:[%s458 + $0x24] sm:$0x1] %v493
      %v495 = vld [vmem:[%s458 + $0x28] sm:$0xf]
      %v496 = vsel %vm461, %v424, %v495
      %497 = vst [vmem:[%s458 + $0x28] sm:$0xf] %v496
      %v498 = vld [vmem:[%s458 + $0x2c] sm:$0x1]
      %v499 = vsel %vm467, %v425, %v498
      %500 = vst [vmem:[%s458 + $0x2c] sm:$0x1] %v499
      %v501 = vld [vmem:[%s458 + $0x30] sm:$0xf]
      %v502 = vsel %vm461, %v432, %v501
      %503 = vst [vmem:[%s458 + $0x30] sm:$0xf] %v502
      %v504 = vld [vmem:[%s458 + $0x34] sm:$0x1]
      %v505 = vsel %vm467, %v433, %v504
      %506 = vst [vmem:[%s458 + $0x34] sm:$0x1] %v505
      %v507 = vld [vmem:[%s458 + $0x38] sm:$0xf]
      %v508 = vsel %vm461, %v440, %v507
      %509 = vst [vmem:[%s458 + $0x38] sm:$0xf] %v508
      %v510 = vld [vmem:[%s458 + $0x3c] sm:$0x1]
      %v511 = vsel %vm467, %v441, %v510
      %512 = vst [vmem:[%s458 + $0x3c] sm:$0x1] %v511
      %v513 = vld [vmem:[#allocation2] sm:$0xf]
      %v514 = vld [vmem:[#allocation2 + $0x8] sm:$0xf]
      %v515 = vld [vmem:[#allocation2 + $0x10] sm:$0xf]
      %v516 = vld [vmem:[#allocation2 + $0x18] sm:$0xf]
      %v517 = vld [vmem:[#allocation2 + $0x20] sm:$0xf]
      %v518 = vld [vmem:[#allocation2 + $0x28] sm:$0xf]
      %v519 = vld [vmem:[#allocation2 + $0x30] sm:$0xf]
      %v520 = vld [vmem:[#allocation2 + $0x38] sm:$0xf]
      %v521 = vld [vmem:[%s2] sm:$0xf]
      %v522 = vld [vmem:[%s2 + $0x4] sm:$0xf]
      %v523 = vld [vmem:[%s2 + $0x8] sm:$0xf]
      %v524 = vld [vmem:[%s2 + $0xc] sm:$0xf]
      %v525 = vld [vmem:[%s2 + $0x10] sm:$0xf]
      %v526 = vld [vmem:[%s2 + $0x14] sm:$0xf]
      %v527 = vld [vmem:[%s2 + $0x18] sm:$0xf]
      %v528 = vld [vmem:[%s2 + $0x1c] sm:$0xf]
      %v529 = vld [vmem:[%s2 + $0x20] sm:$0xf]
      %v530 = vld [vmem:[%s2 + $0x24] sm:$0xf]
      %v531 = vld [vmem:[%s2 + $0x28] sm:$0xf]
      %v532 = vld [vmem:[%s2 + $0x2c] sm:$0xf]
      %v533 = vld [vmem:[%s2 + $0x30] sm:$0xf]
      %v534 = vld [vmem:[%s2 + $0x34] sm:$0xf]
      %v535 = vld [vmem:[%s2 + $0x38] sm:$0xf]
      %v536 = vld [vmem:[%s2 + $0x3c] sm:$0xf]
      %v537 = vld [vmem:[#allocation2 + $0x4] sm:$0x1]
      %v538 = vld [vmem:[#allocation2 + $0xc] sm:$0x1]
      %v539 = vld [vmem:[#allocation2 + $0x14] sm:$0x1]
      %v540 = vld [vmem:[#allocation2 + $0x1c] sm:$0x1]
      %v541 = vld [vmem:[#allocation2 + $0x24] sm:$0x1]
      %v542 = vld [vmem:[#allocation2 + $0x2c] sm:$0x1]
      %v543 = vld [vmem:[#allocation2 + $0x34] sm:$0x1]
      %v544 = vld [vmem:[#allocation2 + $0x3c] sm:$0x1]
      %vm545 = vsmask.f32 3328
      %vm546 = vsmask.f32 7440
      %vm547 = vmor %vm545, %vm546
      %v549 = vshrl.u32 %v513, 16
      %v551 = vrot.slane %v549, 4
      %v552 = vshll.u32 %v513, 16
      %v554 = vrot.slane %v552, 5
      %v555 = vor.u32 %v551, %v554
      %v556 = vrot.slane %v555, 4
      %v558 = vshll.u32 %v537, 16
      %v560 = vrot.slane %v558, 5
      %v561 = vsel %vm547, %v556, %v560
      %v563 = vshrl.u32 %v514, 16
      %v565 = vrot.slane %v563, 4
      %v566 = vshll.u32 %v514, 16
      %v568 = vrot.slane %v566, 5
      %v569 = vor.u32 %v565, %v568
      %v570 = vrot.slane %v569, 4
      %v572 = vshll.u32 %v538, 16
      %v574 = vrot.slane %v572, 5
      %v575 = vsel %vm547, %v570, %v574
      %v577 = vshrl.u32 %v515, 16
      %v579 = vrot.slane %v577, 4
      %v580 = vshll.u32 %v515, 16
      %v582 = vrot.slane %v580, 5
      %v583 = vor.u32 %v579, %v582
      %v584 = vrot.slane %v583, 4
      %v586 = vshll.u32 %v539, 16
      %v588 = vrot.slane %v586, 5
      %v589 = vsel %vm547, %v584, %v588
      %v591 = vshrl.u32 %v516, 16
      %v593 = vrot.slane %v591, 4
      %v594 = vshll.u32 %v516, 16
      %v596 = vrot.slane %v594, 5
      %v597 = vor.u32 %v593, %v596
      %v598 = vrot.slane %v597, 4
      %v600 = vshll.u32 %v540, 16
      %v602 = vrot.slane %v600, 5
      %v603 = vsel %vm547, %v598, %v602
      %v605 = vshrl.u32 %v517, 16
      %v607 = vrot.slane %v605, 4
      %v608 = vshll.u32 %v517, 16
      %v610 = vrot.slane %v608, 5
      %v611 = vor.u32 %v607, %v610
      %v612 = vrot.slane %v611, 4
      %v614 = vshll.u32 %v541, 16
      %v616 = vrot.slane %v614, 5
      %v617 = vsel %vm547, %v612, %v616
      %v619 = vshrl.u32 %v518, 16
      %v621 = vrot.slane %v619, 4
      %v622 = vshll.u32 %v518, 16
      %v624 = vrot.slane %v622, 5
      %v625 = vor.u32 %v621, %v624
      %v626 = vrot.slane %v625, 4
      %v628 = vshll.u32 %v542, 16
      %v630 = vrot.slane %v628, 5
      %v631 = vsel %vm547, %v626, %v630
      %v633 = vshrl.u32 %v519, 16
      %v635 = vrot.slane %v633, 4
      %v636 = vshll.u32 %v519, 16
      %v638 = vrot.slane %v636, 5
      %v639 = vor.u32 %v635, %v638
      %v640 = vrot.slane %v639, 4
      %v642 = vshll.u32 %v543, 16
      %v644 = vrot.slane %v642, 5
      %v645 = vsel %vm547, %v640, %v644
      %v647 = vshrl.u32 %v520, 16
      %v649 = vrot.slane %v647, 4
      %v650 = vshll.u32 %v520, 16
      %v652 = vrot.slane %v650, 5
      %v653 = vor.u32 %v649, %v652
      %v654 = vrot.slane %v653, 4
      %v656 = vshll.u32 %v544, 16
      %v658 = vrot.slane %v656, 5
      %v659 = vsel %vm547, %v654, %v658
      %s660 = scalar_lea.vmem %s2, 64
      %v661 = vld [vmem:[%s660] sm:$0xf]
      %v662 = vld [vmem:[%s660 + $0x4] sm:$0xf]
      %v663 = vld [vmem:[%s660 + $0x8] sm:$0xf]
      %v664 = vld [vmem:[%s660 + $0xc] sm:$0xf]
      %v665 = vld [vmem:[%s660 + $0x10] sm:$0xf]
      %v666 = vld [vmem:[%s660 + $0x14] sm:$0xf]
      %v667 = vld [vmem:[%s660 + $0x18] sm:$0xf]
      %v668 = vld [vmem:[%s660 + $0x1c] sm:$0xf]
      %v669 = vld [vmem:[%s660 + $0x20] sm:$0xf]
      %v670 = vld [vmem:[%s660 + $0x24] sm:$0xf]
      %v671 = vld [vmem:[%s660 + $0x28] sm:$0xf]
      %v672 = vld [vmem:[%s660 + $0x2c] sm:$0xf]
      %v673 = vld [vmem:[%s660 + $0x30] sm:$0xf]
      %v674 = vld [vmem:[%s660 + $0x34] sm:$0xf]
      %v675 = vld [vmem:[%s660 + $0x38] sm:$0xf]
      %v676 = vld [vmem:[%s660 + $0x3c] sm:$0xf]
      %v677 = vunpack.c.l.b16 %v561
      %v678 = vunpack.c.l.b16 %v575
      %v679 = vunpack.c.l.b16 %v589
      %v680 = vunpack.c.l.b16 %v603
      %v681 = vunpack.c.l.b16 %v617
      %v682 = vunpack.c.l.b16 %v631
      %v683 = vunpack.c.l.b16 %v645
      %v684 = vunpack.c.l.b16 %v659
      %v685 = vpack.c.b16 %v678, %v677
      %v686 = vpack.c.b16 %v680, %v679
      %v687 = vpack.c.b16 %v682, %v681
      %v688 = vpack.c.b16 %v684, %v683
      %v709 = vunpack.c.l.b16 %v661
      %v710 = vunpack.c.l.b16 %v662
      %v711 = vunpack.c.l.b16 %v663
      %v712 = vunpack.c.l.b16 %v664
      %v713 = vunpack.c.l.b16 %v665
      %v714 = vunpack.c.l.b16 %v666
      %v715 = vunpack.c.l.b16 %v667
      %v716 = vunpack.c.l.b16 %v668
      %v717 = vunpack.c.l.b16 %v669
      %v718 = vunpack.c.l.b16 %v670
      %v719 = vunpack.c.l.b16 %v671
      %v720 = vunpack.c.l.b16 %v672
      %v721 = vunpack.c.l.b16 %v673
      %v722 = vunpack.c.l.b16 %v674
      %v723 = vunpack.c.l.b16 %v675
      %v724 = vunpack.c.l.b16 %v676
      %v725 = vpack.c.b16 %v710, %v709
      %v726 = vpack.c.b16 %v712, %v711
      %v727 = vpack.c.b16 %v714, %v713
      %v728 = vpack.c.b16 %v716, %v715
      %v729 = vpack.c.b16 %v718, %v717
      %v730 = vpack.c.b16 %v720, %v719
      %v731 = vpack.c.b16 %v722, %v721
      %v732 = vpack.c.b16 %v724, %v723
      %741 = vmatprep.subr.bf16.mxu0 0
      %742 = vmatpush1.bf16.msra.mxu0 %v732
      %743 = vmatprep.subr.bf16.mxu0 0
      %744 = vmatpush1.bf16.msra.mxu0 %v731
      %745 = vmatprep.subr.bf16.mxu0 0
      %746 = vmatpush1.bf16.msra.mxu0 %v730
      %747 = vmatprep.subr.bf16.mxu0 0
      %748 = vmatpush1.bf16.msra.mxu0 %v729
      %749 = vmatprep.subr.bf16.mxu0 0
      %750 = vmatpush1.bf16.msra.mxu0 %v728
      %751 = vmatprep.subr.bf16.mxu0 0
      %752 = vmatpush1.bf16.msra.mxu0 %v727
      %753 = vmatprep.subr.bf16.mxu0 0
      %754 = vmatpush1.bf16.msra.mxu0 %v726
      %755 = vmatprep.subr.bf16.mxu0 0
      %756 = vmatpush1.bf16.msra.mxu0 %v725
      %757 = vmatprep.subr.bf16.mxu0 0
      %758 = vmatpush2.bf16.msra.mxu0 0
      %759 = vmatprep.subr.bf16.mxu0 0
      %760 = vmatpush2.bf16.msra.mxu0 0
      %761 = vmatprep.subr.bf16.mxu0 0
      %762 = vmatpush2.bf16.msra.mxu0 0
      %763 = vmatprep.subr.bf16.mxu0 0
      %764 = vmatpush2.bf16.msra.mxu0 0
      %765 = vmatprep.subr.bf16.mxu0 0
      %766 = vmatpush2.bf16.msra.mxu0 0
      %767 = vmatprep.subr.bf16.mxu0 0
      %768 = vmatpush2.bf16.msra.mxu0 0
      %769 = vmatprep.subr.bf16.mxu0 0
      %770 = vmatpush2.bf16.msra.mxu0 0
      %771 = vmatprep.subr.bf16.mxu0 0
      %772 = vmatpush2.bf16.msra.mxu0 0
      %773 = vmatprep.mubr.bf16.mxu0 0
      %774 = vmatmul.mubr.bf16.gmra.mxu0 %v685
      %v775 = vpop.f32.mrf.mxu0
      %v776 = vadd.f32 0.0, %v775
      %v777 = vpop.f32.mrf.mxu0
      %v778 = vpop.f32.mrf.mxu0
      %v779 = vadd.f32 0.0, %v778
      %v780 = vpop.f32.mrf.mxu0
      %781 = vmatprep.mubr.bf16.mxu0 0
      %782 = vmatmul.mubr.bf16.gmra.mxu0 %v686
      %v783 = vpop.f32.mrf.mxu0
      %v784 = vadd.f32 0.0, %v783
      %v785 = vpop.f32.mrf.mxu0
      %v786 = vpop.f32.mrf.mxu0
      %v787 = vadd.f32 0.0, %v786
      %v788 = vpop.f32.mrf.mxu0
      %789 = vmatprep.mubr.bf16.mxu0 0
      %790 = vmatmul.mubr.bf16.gmra.mxu0 %v687
      %v791 = vpop.f32.mrf.mxu0
      %v792 = vadd.f32 0.0, %v791
      %v793 = vpop.f32.mrf.mxu0
      %v794 = vpop.f32.mrf.mxu0
      %v795 = vadd.f32 0.0, %v794
      %v796 = vpop.f32.mrf.mxu0
      %797 = vmatprep.mubr.bf16.mxu0 0
      %798 = vmatmul.mubr.bf16.gmra.mxu0 %v688
      %v799 = vpop.f32.mrf.mxu0
      %v800 = vadd.f32 0.0, %v799
      %v801 = vpop.f32.mrf.mxu0
      %v802 = vpop.f32.mrf.mxu0
      %v803 = vadd.f32 0.0, %v802
      %v804 = vpop.f32.mrf.mxu0
      %805 = vdwg.mxu0
      %v814 = vunpack.c.l.b16 %v513
      %v815 = vunpack.c.l.b16 %v514
      %v816 = vunpack.c.l.b16 %v515
      %v817 = vunpack.c.l.b16 %v516
      %v818 = vunpack.c.l.b16 %v517
      %v819 = vunpack.c.l.b16 %v518
      %v820 = vunpack.c.l.b16 %v519
      %v821 = vunpack.c.l.b16 %v520
      %v822 = vpack.c.b16 %v815, %v814
      %v823 = vpack.c.b16 %v817, %v816
      %v824 = vpack.c.b16 %v819, %v818
      %v825 = vpack.c.b16 %v821, %v820
      %v846 = vunpack.c.l.b16 %v521
      %v847 = vunpack.c.l.b16 %v522
      %v848 = vunpack.c.l.b16 %v523
      %v849 = vunpack.c.l.b16 %v524
      %v850 = vunpack.c.l.b16 %v525
      %v851 = vunpack.c.l.b16 %v526
      %v852 = vunpack.c.l.b16 %v527
      %v853 = vunpack.c.l.b16 %v528
      %v854 = vunpack.c.l.b16 %v529
      %v855 = vunpack.c.l.b16 %v530
      %v856 = vunpack.c.l.b16 %v531
      %v857 = vunpack.c.l.b16 %v532
      %v858 = vunpack.c.l.b16 %v533
      %v859 = vunpack.c.l.b16 %v534
      %v860 = vunpack.c.l.b16 %v535
      %v861 = vunpack.c.l.b16 %v536
      %v862 = vpack.c.b16 %v847, %v846
      %v863 = vpack.c.b16 %v849, %v848
      %v864 = vpack.c.b16 %v851, %v850
      %v865 = vpack.c.b16 %v853, %v852
      %v866 = vpack.c.b16 %v855, %v854
      %v867 = vpack.c.b16 %v857, %v856
      %v868 = vpack.c.b16 %v859, %v858
      %v869 = vpack.c.b16 %v861, %v860
      %878 = vmatprep.subr.bf16.mxu0 0
      %879 = vmatpush1.bf16.msra.mxu0 %v869
      %880 = vmatprep.subr.bf16.mxu0 0
      %881 = vmatpush1.bf16.msra.mxu0 %v868
      %882 = vmatprep.subr.bf16.mxu0 0
      %883 = vmatpush1.bf16.msra.mxu0 %v867
      %884 = vmatprep.subr.bf16.mxu0 0
      %885 = vmatpush1.bf16.msra.mxu0 %v866
      %886 = vmatprep.subr.bf16.mxu0 0
      %887 = vmatpush1.bf16.msra.mxu0 %v865
      %888 = vmatprep.subr.bf16.mxu0 0
      %889 = vmatpush1.bf16.msra.mxu0 %v864
      %890 = vmatprep.subr.bf16.mxu0 0
      %891 = vmatpush1.bf16.msra.mxu0 %v863
      %892 = vmatprep.subr.bf16.mxu0 0
      %893 = vmatpush1.bf16.msra.mxu0 %v862
      %894 = vmatprep.subr.bf16.mxu0 0
      %895 = vmatpush2.bf16.msra.mxu0 0
      %896 = vmatprep.subr.bf16.mxu0 0
      %897 = vmatpush2.bf16.msra.mxu0 0
      %898 = vmatprep.subr.bf16.mxu0 0
      %899 = vmatpush2.bf16.msra.mxu0 0
      %900 = vmatprep.subr.bf16.mxu0 0
      %901 = vmatpush2.bf16.msra.mxu0 0
      %902 = vmatprep.subr.bf16.mxu0 0
      %903 = vmatpush2.bf16.msra.mxu0 0
      %904 = vmatprep.subr.bf16.mxu0 0
      %905 = vmatpush2.bf16.msra.mxu0 0
      %906 = vmatprep.subr.bf16.mxu0 0
      %907 = vmatpush2.bf16.msra.mxu0 0
      %908 = vmatprep.subr.bf16.mxu0 0
      %909 = vmatpush2.bf16.msra.mxu0 0
      %910 = vmatprep.mubr.bf16.mxu0 0
      %911 = vmatmul.mubr.bf16.gmra.mxu0 %v822
      %v912 = vpop.f32.mrf.mxu0
      %v913 = vadd.f32 %v776, %v912
      %v914 = vpop.f32.mrf.mxu0
      %v915 = vpop.f32.mrf.mxu0
      %v916 = vadd.f32 %v779, %v915
      %v917 = vpop.f32.mrf.mxu0
      %918 = vmatprep.mubr.bf16.mxu0 0
      %919 = vmatmul.mubr.bf16.gmra.mxu0 %v823
      %v920 = vpop.f32.mrf.mxu0
      %v921 = vadd.f32 %v784, %v920
      %v922 = vpop.f32.mrf.mxu0
      %v923 = vpop.f32.mrf.mxu0
      %v924 = vadd.f32 %v787, %v923
      %v925 = vpop.f32.mrf.mxu0
      %926 = vmatprep.mubr.bf16.mxu0 0
      %927 = vmatmul.mubr.bf16.gmra.mxu0 %v824
      %v928 = vpop.f32.mrf.mxu0
      %v929 = vadd.f32 %v792, %v928
      %v930 = vpop.f32.mrf.mxu0
      %v931 = vpop.f32.mrf.mxu0
      %v932 = vadd.f32 %v795, %v931
      %v933 = vpop.f32.mrf.mxu0
      %934 = vmatprep.mubr.bf16.mxu0 0
      %935 = vmatmul.mubr.bf16.gmra.mxu0 %v825
      %v936 = vpop.f32.mrf.mxu0
      %v937 = vadd.f32 %v800, %v936
      %v938 = vpop.f32.mrf.mxu0
      %v939 = vpop.f32.mrf.mxu0
      %v940 = vadd.f32 %v803, %v939
      %v941 = vpop.f32.mrf.mxu0
      %942 = vdwg.mxu0
      %v943 = vld [vmem:[#allocation2] sm:$0xe]
      %v944 = vld [vmem:[#allocation2 + $0x8] sm:$0xe]
      %v945 = vld [vmem:[#allocation2 + $0x10] sm:$0xe]
      %v946 = vld [vmem:[#allocation2 + $0x18] sm:$0xe]
      %v947 = vld [vmem:[#allocation2 + $0x20] sm:$0xe]
      %v948 = vld [vmem:[#allocation2 + $0x28] sm:$0xe]
      %v949 = vld [vmem:[#allocation2 + $0x30] sm:$0xe]
      %v950 = vld [vmem:[#allocation2 + $0x38] sm:$0xe]
      %vm967 = vcmask 1042432
      %vm968 = vcmask 1046532
      %vm969 = vmor %vm967, %vm968
      %v970 = vrot.slane %v943, 5
      %v971 = vrot.slane %v970, 4
      %v972 = vrot.slane %v537, 5
      %v973 = vsel %vm969, %v971, %v972
      %v974 = vrot.slane %v944, 5
      %v975 = vrot.slane %v974, 4
      %v976 = vrot.slane %v538, 5
      %v977 = vsel %vm969, %v975, %v976
      %v978 = vrot.slane %v945, 5
      %v979 = vrot.slane %v978, 4
      %v980 = vrot.slane %v539, 5
      %v981 = vsel %vm969, %v979, %v980
      %v982 = vrot.slane %v946, 5
      %v983 = vrot.slane %v982, 4
      %v984 = vrot.slane %v540, 5
      %v985 = vsel %vm969, %v983, %v984
      %v986 = vrot.slane %v947, 5
      %v987 = vrot.slane %v986, 4
      %v988 = vrot.slane %v541, 5
      %v989 = vsel %vm969, %v987, %v988
      %v990 = vrot.slane %v948, 5
      %v991 = vrot.slane %v990, 4
      %v992 = vrot.slane %v542, 5
      %v993 = vsel %vm969, %v991, %v992
      %v994 = vrot.slane %v949, 5
      %v995 = vrot.slane %v994, 4
      %v996 = vrot.slane %v543, 5
      %v997 = vsel %vm969, %v995, %v996
      %v998 = vrot.slane %v950, 5
      %v999 = vrot.slane %v998, 4
      %v1000 = vrot.slane %v544, 5
      %v1001 = vsel %vm969, %v999, %v1000
      %s1002 = scalar_lea.vmem %s2, 128
      %v1003 = vld [vmem:[%s1002] sm:$0xf]
      %v1004 = vld [vmem:[%s1002 + $0x4] sm:$0xf]
      %v1005 = vld [vmem:[%s1002 + $0x8] sm:$0xf]
      %v1006 = vld [vmem:[%s1002 + $0xc] sm:$0xf]
      %v1007 = vld [vmem:[%s1002 + $0x10] sm:$0xf]
      %v1008 = vld [vmem:[%s1002 + $0x14] sm:$0xf]
      %v1009 = vld [vmem:[%s1002 + $0x18] sm:$0xf]
      %v1010 = vld [vmem:[%s1002 + $0x1c] sm:$0xf]
      %v1011 = vld [vmem:[%s1002 + $0x20] sm:$0xf]
      %v1012 = vld [vmem:[%s1002 + $0x24] sm:$0xf]
      %v1013 = vld [vmem:[%s1002 + $0x28] sm:$0xf]
      %v1014 = vld [vmem:[%s1002 + $0x2c] sm:$0xf]
      %v1015 = vld [vmem:[%s1002 + $0x30] sm:$0xf]
      %v1016 = vld [vmem:[%s1002 + $0x34] sm:$0xf]
      %v1017 = vld [vmem:[%s1002 + $0x38] sm:$0xf]
      %v1018 = vld [vmem:[%s1002 + $0x3c] sm:$0xf]
      %v1019 = vunpack.c.l.b16 %v973
      %v1020 = vunpack.c.l.b16 %v977
      %v1021 = vunpack.c.l.b16 %v981
      %v1022 = vunpack.c.l.b16 %v985
      %v1023 = vunpack.c.l.b16 %v989
      %v1024 = vunpack.c.l.b16 %v993
      %v1025 = vunpack.c.l.b16 %v997
      %v1026 = vunpack.c.l.b16 %v1001
      %v1027 = vpack.c.b16 %v1020, %v1019
      %v1028 = vpack.c.b16 %v1022, %v1021
      %v1029 = vpack.c.b16 %v1024, %v1023
      %v1030 = vpack.c.b16 %v1026, %v1025
      %v1051 = vunpack.c.l.b16 %v1003
      %v1052 = vunpack.c.l.b16 %v1004
      %v1053 = vunpack.c.l.b16 %v1005
      %v1054 = vunpack.c.l.b16 %v1006
      %v1055 = vunpack.c.l.b16 %v1007
      %v1056 = vunpack.c.l.b16 %v1008
      %v1057 = vunpack.c.l.b16 %v1009
      %v1058 = vunpack.c.l.b16 %v1010
      %v1059 = vunpack.c.l.b16 %v1011
      %v1060 = vunpack.c.l.b16 %v1012
      %v1061 = vunpack.c.l.b16 %v1013
      %v1062 = vunpack.c.l.b16 %v1014
      %v1063 = vunpack.c.l.b16 %v1015
      %v1064 = vunpack.c.l.b16 %v1016
      %v1065 = vunpack.c.l.b16 %v1017
      %v1066 = vunpack.c.l.b16 %v1018
      %v1067 = vpack.c.b16 %v1052, %v1051
      %v1068 = vpack.c.b16 %v1054, %v1053
      %v1069 = vpack.c.b16 %v1056, %v1055
      %v1070 = vpack.c.b16 %v1058, %v1057
      %v1071 = vpack.c.b16 %v1060, %v1059
      %v1072 = vpack.c.b16 %v1062, %v1061
      %v1073 = vpack.c.b16 %v1064, %v1063
      %v1074 = vpack.c.b16 %v1066, %v1065
      %1083 = vmatprep.subr.bf16.mxu0 0
      %1084 = vmatpush1.bf16.msra.mxu0 %v1074
      %1085 = vmatprep.subr.bf16.mxu0 0
      %1086 = vmatpush1.bf16.msra.mxu0 %v1073
      %1087 = vmatprep.subr.bf16.mxu0 0
      %1088 = vmatpush1.bf16.msra.mxu0 %v1072
      %1089 = vmatprep.subr.bf16.mxu0 0
      %1090 = vmatpush1.bf16.msra.mxu0 %v1071
      %1091 = vmatprep.subr.bf16.mxu0 0
      %1092 = vmatpush1.bf16.msra.mxu0 %v1070
      %1093 = vmatprep.subr.bf16.mxu0 0
      %1094 = vmatpush1.bf16.msra.mxu0 %v1069
      %1095 = vmatprep.subr.bf16.mxu0 0
      %1096 = vmatpush1.bf16.msra.mxu0 %v1068
      %1097 = vmatprep.subr.bf16.mxu0 0
      %1098 = vmatpush1.bf16.msra.mxu0 %v1067
      %1099 = vmatprep.subr.bf16.mxu0 0
      %1100 = vmatpush2.bf16.msra.mxu0 0
      %1101 = vmatprep.subr.bf16.mxu0 0
      %1102 = vmatpush2.bf16.msra.mxu0 0
      %1103 = vmatprep.subr.bf16.mxu0 0
      %1104 = vmatpush2.bf16.msra.mxu0 0
      %1105 = vmatprep.subr.bf16.mxu0 0
      %1106 = vmatpush2.bf16.msra.mxu0 0
      %1107 = vmatprep.subr.bf16.mxu0 0
      %1108 = vmatpush2.bf16.msra.mxu0 0
      %1109 = vmatprep.subr.bf16.mxu0 0
      %1110 = vmatpush2.bf16.msra.mxu0 0
      %1111 = vmatprep.subr.bf16.mxu0 0
      %1112 = vmatpush2.bf16.msra.mxu0 0
      %1113 = vmatprep.subr.bf16.mxu0 0
      %1114 = vmatpush2.bf16.msra.mxu0 0
      %1115 = vmatprep.mubr.bf16.mxu0 0
      %1116 = vmatmul.mubr.bf16.gmra.mxu0 %v1027
      %v1117 = vpop.f32.mrf.mxu0
      %v1118 = vadd.f32 0.0, %v1117
      %v1119 = vpop.f32.mrf.mxu0
      %v1120 = vpop.f32.mrf.mxu0
      %v1121 = vadd.f32 0.0, %v1120
      %v1122 = vpop.f32.mrf.mxu0
      %1123 = vmatprep.mubr.bf16.mxu0 0
      %1124 = vmatmul.mubr.bf16.gmra.mxu0 %v1028
      %v1125 = vpop.f32.mrf.mxu0
      %v1126 = vadd.f32 0.0, %v1125
      %v1127 = vpop.f32.mrf.mxu0
      %v1128 = vpop.f32.mrf.mxu0
      %v1129 = vadd.f32 0.0, %v1128
      %v1130 = vpop.f32.mrf.mxu0
      %1131 = vmatprep.mubr.bf16.mxu0 0
      %1132 = vmatmul.mubr.bf16.gmra.mxu0 %v1029
      %v1133 = vpop.f32.mrf.mxu0
      %v1134 = vadd.f32 0.0, %v1133
      %v1135 = vpop.f32.mrf.mxu0
      %v1136 = vpop.f32.mrf.mxu0
      %v1137 = vadd.f32 0.0, %v1136
      %v1138 = vpop.f32.mrf.mxu0
      %1139 = vmatprep.mubr.bf16.mxu0 0
      %1140 = vmatmul.mubr.bf16.gmra.mxu0 %v1030
      %v1141 = vpop.f32.mrf.mxu0
      %v1142 = vadd.f32 0.0, %v1141
      %v1143 = vpop.f32.mrf.mxu0
      %v1144 = vpop.f32.mrf.mxu0
      %v1145 = vadd.f32 0.0, %v1144
      %v1146 = vpop.f32.mrf.mxu0
      %1147 = vdwg.mxu0
      %v1148 = vadd.f32 %v913, %v1118
      %v1149 = vadd.f32 %v916, %v1121
      %v1150 = vadd.f32 %v921, %v1126
      %v1151 = vadd.f32 %v924, %v1129
      %v1152 = vadd.f32 %v929, %v1134
      %v1153 = vadd.f32 %v932, %v1137
      %v1154 = vadd.f32 %v937, %v1142
      %v1155 = vadd.f32 %v940, %v1145
      %v1156 = vld [vmem:[%s458] sm:$0xf]
      %v1157 = vld [vmem:[%s458 + $0x8] sm:$0xf]
      %v1158 = vld [vmem:[%s458 + $0x10] sm:$0xf]
      %v1159 = vld [vmem:[%s458 + $0x18] sm:$0xf]
      %v1160 = vld [vmem:[%s458 + $0x20] sm:$0xf]
      %v1161 = vld [vmem:[%s458 + $0x28] sm:$0xf]
      %v1162 = vld [vmem:[%s458 + $0x30] sm:$0xf]
      %v1163 = vld [vmem:[%s458 + $0x38] sm:$0xf]
      %s1164 = scalar_lea.vmem %s2, 192
      %v1165 = vld [vmem:[%s1164] sm:$0xf]
      %v1166 = vld [vmem:[%s1164 + $0x4] sm:$0xf]
      %v1167 = vld [vmem:[%s1164 + $0x8] sm:$0xf]
      %v1168 = vld [vmem:[%s1164 + $0xc] sm:$0xf]
      %v1169 = vld [vmem:[%s1164 + $0x10] sm:$0xf]
      %v1170 = vld [vmem:[%s1164 + $0x14] sm:$0xf]
      %v1171 = vld [vmem:[%s1164 + $0x18] sm:$0xf]
      %v1172 = vld [vmem:[%s1164 + $0x1c] sm:$0xf]
      %v1173 = vld [vmem:[%s1164 + $0x20] sm:$0xf]
      %v1174 = vld [vmem:[%s1164 + $0x24] sm:$0xf]
      %v1175 = vld [vmem:[%s1164 + $0x28] sm:$0xf]
      %v1176 = vld [vmem:[%s1164 + $0x2c] sm:$0xf]
      %v1177 = vld [vmem:[%s1164 + $0x30] sm:$0xf]
      %v1178 = vld [vmem:[%s1164 + $0x34] sm:$0xf]
      %v1179 = vld [vmem:[%s1164 + $0x38] sm:$0xf]
      %v1180 = vld [vmem:[%s1164 + $0x3c] sm:$0xf]
      %v1189 = vunpack.c.l.b16 %v1156
      %v1190 = vunpack.c.l.b16 %v1157
      %v1191 = vunpack.c.l.b16 %v1158
      %v1192 = vunpack.c.l.b16 %v1159
      %v1193 = vunpack.c.l.b16 %v1160
      %v1194 = vunpack.c.l.b16 %v1161
      %v1195 = vunpack.c.l.b16 %v1162
      %v1196 = vunpack.c.l.b16 %v1163
      %v1197 = vpack.c.b16 %v1190, %v1189
      %v1198 = vpack.c.b16 %v1192, %v1191
      %v1199 = vpack.c.b16 %v1194, %v1193
      %v1200 = vpack.c.b16 %v1196, %v1195
      %v1221 = vunpack.c.l.b16 %v1165
      %v1222 = vunpack.c.l.b16 %v1166
      %v1223 = vunpack.c.l.b16 %v1167
      %v1224 = vunpack.c.l.b16 %v1168
      %v1225 = vunpack.c.l.b16 %v1169
      %v1226 = vunpack.c.l.b16 %v1170
      %v1227 = vunpack.c.l.b16 %v1171
      %v1228 = vunpack.c.l.b16 %v1172
      %v1229 = vunpack.c.l.b16 %v1173
      %v1230 = vunpack.c.l.b16 %v1174
      %v1231 = vunpack.c.l.b16 %v1175
      %v1232 = vunpack.c.l.b16 %v1176
      %v1233 = vunpack.c.l.b16 %v1177
      %v1234 = vunpack.c.l.b16 %v1178
      %v1235 = vunpack.c.l.b16 %v1179
      %v1236 = vunpack.c.l.b16 %v1180
      %v1237 = vpack.c.b16 %v1222, %v1221
      %v1238 = vpack.c.b16 %v1224, %v1223
      %v1239 = vpack.c.b16 %v1226, %v1225
      %v1240 = vpack.c.b16 %v1228, %v1227
      %v1241 = vpack.c.b16 %v1230, %v1229
      %v1242 = vpack.c.b16 %v1232, %v1231
      %v1243 = vpack.c.b16 %v1234, %v1233
      %v1244 = vpack.c.b16 %v1236, %v1235
      %1253 = vmatprep.subr.bf16.mxu0 0
      %1254 = vmatpush1.bf16.msra.mxu0 %v1244
      %1255 = vmatprep.subr.bf16.mxu0 0
      %1256 = vmatpush1.bf16.msra.mxu0 %v1243
      %1257 = vmatprep.subr.bf16.mxu0 0
      %1258 = vmatpush1.bf16.msra.mxu0 %v1242
      %1259 = vmatprep.subr.bf16.mxu0 0
      %1260 = vmatpush1.bf16.msra.mxu0 %v1241
      %1261 = vmatprep.subr.bf16.mxu0 0
      %1262 = vmatpush1.bf16.msra.mxu0 %v1240
      %1263 = vmatprep.subr.bf16.mxu0 0
      %1264 = vmatpush1.bf16.msra.mxu0 %v1239
      %1265 = vmatprep.subr.bf16.mxu0 0
      %1266 = vmatpush1.bf16.msra.mxu0 %v1238
      %1267 = vmatprep.subr.bf16.mxu0 0
      %1268 = vmatpush1.bf16.msra.mxu0 %v1237
      %1269 = vmatprep.subr.bf16.mxu0 0
      %1270 = vmatpush2.bf16.msra.mxu0 0
      %1271 = vmatprep.subr.bf16.mxu0 0
      %1272 = vmatpush2.bf16.msra.mxu0 0
      %1273 = vmatprep.subr.bf16.mxu0 0
      %1274 = vmatpush2.bf16.msra.mxu0 0
      %1275 = vmatprep.subr.bf16.mxu0 0
      %1276 = vmatpush2.bf16.msra.mxu0 0
      %1277 = vmatprep.subr.bf16.mxu0 0
      %1278 = vmatpush2.bf16.msra.mxu0 0
      %1279 = vmatprep.subr.bf16.mxu0 0
      %1280 = vmatpush2.bf16.msra.mxu0 0
      %1281 = vmatprep.subr.bf16.mxu0 0
      %1282 = vmatpush2.bf16.msra.mxu0 0
      %1283 = vmatprep.subr.bf16.mxu0 0
      %1284 = vmatpush2.bf16.msra.mxu0 0
      %1285 = vmatprep.mubr.bf16.mxu0 0
      %1286 = vmatmul.mubr.bf16.gmra.mxu0 %v1197
      %v1287 = vpop.f32.mrf.mxu0
      %v1288 = vadd.f32 0.0, %v1287
      %v1289 = vpop.f32.mrf.mxu0
      %v1290 = vpop.f32.mrf.mxu0
      %v1291 = vadd.f32 0.0, %v1290
      %v1292 = vpop.f32.mrf.mxu0
      %1293 = vmatprep.mubr.bf16.mxu0 0
      %1294 = vmatmul.mubr.bf16.gmra.mxu0 %v1198
      %v1295 = vpop.f32.mrf.mxu0
      %v1296 = vadd.f32 0.0, %v1295
      %v1297 = vpop.f32.mrf.mxu0
      %v1298 = vpop.f32.mrf.mxu0
      %v1299 = vadd.f32 0.0, %v1298
      %v1300 = vpop.f32.mrf.mxu0
      %1301 = vmatprep.mubr.bf16.mxu0 0
      %1302 = vmatmul.mubr.bf16.gmra.mxu0 %v1199
      %v1303 = vpop.f32.mrf.mxu0
      %v1304 = vadd.f32 0.0, %v1303
      %v1305 = vpop.f32.mrf.mxu0
      %v1306 = vpop.f32.mrf.mxu0
      %v1307 = vadd.f32 0.0, %v1306
      %v1308 = vpop.f32.mrf.mxu0
      %1309 = vmatprep.mubr.bf16.mxu0 0
      %1310 = vmatmul.mubr.bf16.gmra.mxu0 %v1200
      %v1311 = vpop.f32.mrf.mxu0
      %v1312 = vadd.f32 0.0, %v1311
      %v1313 = vpop.f32.mrf.mxu0
      %v1314 = vpop.f32.mrf.mxu0
      %v1315 = vadd.f32 0.0, %v1314
      %v1316 = vpop.f32.mrf.mxu0
      %1317 = vdwg.mxu0
      %v1318 = vadd.f32 %v1148, %v1288
      %v1319 = vadd.f32 %v1149, %v1291
      %v1320 = vadd.f32 %v1150, %v1296
      %v1321 = vadd.f32 %v1151, %v1299
      %v1322 = vadd.f32 %v1152, %v1304
      %v1323 = vadd.f32 %v1153, %v1307
      %v1324 = vadd.f32 %v1154, %v1312
      %v1325 = vadd.f32 %v1155, %v1315
      %v1326 = vld [vmem:[%s458] sm:$0xf]
      %v1327 = vld [vmem:[%s458 + $0x4] sm:$0x1]
      %v1328 = vld [vmem:[%s458 + $0x8] sm:$0xf]
      %v1329 = vld [vmem:[%s458 + $0xc] sm:$0x1]
      %v1330 = vld [vmem:[%s458 + $0x10] sm:$0xf]
      %v1331 = vld [vmem:[%s458 + $0x14] sm:$0x1]
      %v1332 = vld [vmem:[%s458 + $0x18] sm:$0xf]
      %v1333 = vld [vmem:[%s458 + $0x1c] sm:$0x1]
      %v1334 = vld [vmem:[%s458 + $0x20] sm:$0xf]
      %v1335 = vld [vmem:[%s458 + $0x24] sm:$0x1]
      %v1336 = vld [vmem:[%s458 + $0x28] sm:$0xf]
      %v1337 = vld [vmem:[%s458 + $0x2c] sm:$0x1]
      %v1338 = vld [vmem:[%s458 + $0x30] sm:$0xf]
      %v1339 = vld [vmem:[%s458 + $0x34] sm:$0x1]
      %v1340 = vld [vmem:[%s458 + $0x38] sm:$0xf]
      %v1341 = vld [vmem:[%s458 + $0x3c] sm:$0x1]
      %v1343 = vshrl.u32 %v1326, 16
      %v1345 = vrot.slane %v1343, 4
      %v1346 = vshll.u32 %v1326, 16
      %v1348 = vrot.slane %v1346, 5
      %v1349 = vor.u32 %v1345, %v1348
      %v1350 = vrot.slane %v1349, 4
      %v1352 = vshll.u32 %v1327, 16
      %v1354 = vrot.slane %v1352, 5
      %v1355 = vsel %vm547, %v1350, %v1354
      %v1357 = vshrl.u32 %v1328, 16
      %v1359 = vrot.slane %v1357, 4
      %v1360 = vshll.u32 %v1328, 16
      %v1362 = vrot.slane %v1360, 5
      %v1363 = vor.u32 %v1359, %v1362
      %v1364 = vrot.slane %v1363, 4
      %v1366 = vshll.u32 %v1329, 16
      %v1368 = vrot.slane %v1366, 5
      %v1369 = vsel %vm547, %v1364, %v1368
      %v1371 = vshrl.u32 %v1330, 16
      %v1373 = vrot.slane %v1371, 4
      %v1374 = vshll.u32 %v1330, 16
      %v1376 = vrot.slane %v1374, 5
      %v1377 = vor.u32 %v1373, %v1376
      %v1378 = vrot.slane %v1377, 4
      %v1380 = vshll.u32 %v1331, 16
      %v1382 = vrot.slane %v1380, 5
      %v1383 = vsel %vm547, %v1378, %v1382
      %v1385 = vshrl.u32 %v1332, 16
      %v1387 = vrot.slane %v1385, 4
      %v1388 = vshll.u32 %v1332, 16
      %v1390 = vrot.slane %v1388, 5
      %v1391 = vor.u32 %v1387, %v1390
      %v1392 = vrot.slane %v1391, 4
      %v1394 = vshll.u32 %v1333, 16
      %v1396 = vrot.slane %v1394, 5
      %v1397 = vsel %vm547, %v1392, %v1396
      %v1399 = vshrl.u32 %v1334, 16
      %v1401 = vrot.slane %v1399, 4
      %v1402 = vshll.u32 %v1334, 16
      %v1404 = vrot.slane %v1402, 5
      %v1405 = vor.u32 %v1401, %v1404
      %v1406 = vrot.slane %v1405, 4
      %v1408 = vshll.u32 %v1335, 16
      %v1410 = vrot.slane %v1408, 5
      %v1411 = vsel %vm547, %v1406, %v1410
      %v1413 = vshrl.u32 %v1336, 16
      %v1415 = vrot.slane %v1413, 4
      %v1416 = vshll.u32 %v1336, 16
      %v1418 = vrot.slane %v1416, 5
      %v1419 = vor.u32 %v1415, %v1418
      %v1420 = vrot.slane %v1419, 4
      %v1422 = vshll.u32 %v1337, 16
      %v1424 = vrot.slane %v1422, 5
      %v1425 = vsel %vm547, %v1420, %v1424
      %v1427 = vshrl.u32 %v1338, 16
      %v1429 = vrot.slane %v1427, 4
      %v1430 = vshll.u32 %v1338, 16
      %v1432 = vrot.slane %v1430, 5
      %v1433 = vor.u32 %v1429, %v1432
      %v1434 = vrot.slane %v1433, 4
      %v1436 = vshll.u32 %v1339, 16
      %v1438 = vrot.slane %v1436, 5
      %v1439 = vsel %vm547, %v1434, %v1438
      %v1441 = vshrl.u32 %v1340, 16
      %v1443 = vrot.slane %v1441, 4
      %v1444 = vshll.u32 %v1340, 16
      %v1446 = vrot.slane %v1444, 5
      %v1447 = vor.u32 %v1443, %v1446
      %v1448 = vrot.slane %v1447, 4
      %v1450 = vshll.u32 %v1341, 16
      %v1452 = vrot.slane %v1450, 5
      %v1453 = vsel %vm547, %v1448, %v1452
      %s1454 = scalar_lea.vmem %s2, 256
      %v1455 = vld [vmem:[%s1454] sm:$0xf]
      %v1456 = vld [vmem:[%s1454 + $0x4] sm:$0xf]
      %v1457 = vld [vmem:[%s1454 + $0x8] sm:$0xf]
      %v1458 = vld [vmem:[%s1454 + $0xc] sm:$0xf]
      %v1459 = vld [vmem:[%s1454 + $0x10] sm:$0xf]
      %v1460 = vld [vmem:[%s1454 + $0x14] sm:$0xf]
      %v1461 = vld [vmem:[%s1454 + $0x18] sm:$0xf]
      %v1462 = vld [vmem:[%s1454 + $0x1c] sm:$0xf]
      %v1463 = vld [vmem:[%s1454 + $0x20] sm:$0xf]
      %v1464 = vld [vmem:[%s1454 + $0x24] sm:$0xf]
      %v1465 = vld [vmem:[%s1454 + $0x28] sm:$0xf]
      %v1466 = vld [vmem:[%s1454 + $0x2c] sm:$0xf]
      %v1467 = vld [vmem:[%s1454 + $0x30] sm:$0xf]
      %v1468 = vld [vmem:[%s1454 + $0x34] sm:$0xf]
      %v1469 = vld [vmem:[%s1454 + $0x38] sm:$0xf]
      %v1470 = vld [vmem:[%s1454 + $0x3c] sm:$0xf]
      %v1471 = vunpack.c.l.b16 %v1355
      %v1472 = vunpack.c.l.b16 %v1369
      %v1473 = vunpack.c.l.b16 %v1383
      %v1474 = vunpack.c.l.b16 %v1397
      %v1475 = vunpack.c.l.b16 %v1411
      %v1476 = vunpack.c.l.b16 %v1425
      %v1477 = vunpack.c.l.b16 %v1439
      %v1478 = vunpack.c.l.b16 %v1453
      %v1479 = vpack.c.b16 %v1472, %v1471
      %v1480 = vpack.c.b16 %v1474, %v1473
      %v1481 = vpack.c.b16 %v1476, %v1475
      %v1482 = vpack.c.b16 %v1478, %v1477
      %v1503 = vunpack.c.l.b16 %v1455
      %v1504 = vunpack.c.l.b16 %v1456
      %v1505 = vunpack.c.l.b16 %v1457
      %v1506 = vunpack.c.l.b16 %v1458
      %v1507 = vunpack.c.l.b16 %v1459
      %v1508 = vunpack.c.l.b16 %v1460
      %v1509 = vunpack.c.l.b16 %v1461
      %v1510 = vunpack.c.l.b16 %v1462
      %v1511 = vunpack.c.l.b16 %v1463
      %v1512 = vunpack.c.l.b16 %v1464
      %v1513 = vunpack.c.l.b16 %v1465
      %v1514 = vunpack.c.l.b16 %v1466
      %v1515 = vunpack.c.l.b16 %v1467
      %v1516 = vunpack.c.l.b16 %v1468
      %v1517 = vunpack.c.l.b16 %v1469
      %v1518 = vunpack.c.l.b16 %v1470
      %v1519 = vpack.c.b16 %v1504, %v1503
      %v1520 = vpack.c.b16 %v1506, %v1505
      %v1521 = vpack.c.b16 %v1508, %v1507
      %v1522 = vpack.c.b16 %v1510, %v1509
      %v1523 = vpack.c.b16 %v1512, %v1511
      %v1524 = vpack.c.b16 %v1514, %v1513
      %v1525 = vpack.c.b16 %v1516, %v1515
      %v1526 = vpack.c.b16 %v1518, %v1517
      %1535 = vmatprep.subr.bf16.mxu0 0
      %1536 = vmatpush1.bf16.msra.mxu0 %v1526
      %1537 = vmatprep.subr.bf16.mxu0 0
      %1538 = vmatpush1.bf16.msra.mxu0 %v1525
      %1539 = vmatprep.subr.bf16.mxu0 0
      %1540 = vmatpush1.bf16.msra.mxu0 %v1524
      %1541 = vmatprep.subr.bf16.mxu0 0
      %1542 = vmatpush1.bf16.msra.mxu0 %v1523
      %1543 = vmatprep.subr.bf16.mxu0 0
      %1544 = vmatpush1.bf16.msra.mxu0 %v1522
      %1545 = vmatprep.subr.bf16.mxu0 0
      %1546 = vmatpush1.bf16.msra.mxu0 %v1521
      %1547 = vmatprep.subr.bf16.mxu0 0
      %1548 = vmatpush1.bf16.msra.mxu0 %v1520
      %1549 = vmatprep.subr.bf16.mxu0 0
      %1550 = vmatpush1.bf16.msra.mxu0 %v1519
      %1551 = vmatprep.subr.bf16.mxu0 0
      %1552 = vmatpush2.bf16.msra.mxu0 0
      %1553 = vmatprep.subr.bf16.mxu0 0
      %1554 = vmatpush2.bf16.msra.mxu0 0
      %1555 = vmatprep.subr.bf16.mxu0 0
      %1556 = vmatpush2.bf16.msra.mxu0 0
      %1557 = vmatprep.subr.bf16.mxu0 0
      %1558 = vmatpush2.bf16.msra.mxu0 0
      %1559 = vmatprep.subr.bf16.mxu0 0
      %1560 = vmatpush2.bf16.msra.mxu0 0
      %1561 = vmatprep.subr.bf16.mxu0 0
      %1562 = vmatpush2.bf16.msra.mxu0 0
      %1563 = vmatprep.subr.bf16.mxu0 0
      %1564 = vmatpush2.bf16.msra.mxu0 0
      %1565 = vmatprep.subr.bf16.mxu0 0
      %1566 = vmatpush2.bf16.msra.mxu0 0
      %1567 = vmatprep.mubr.bf16.mxu0 0
      %1568 = vmatmul.mubr.bf16.gmra.mxu0 %v1479
      %v1569 = vpop.f32.mrf.mxu0
      %v1570 = vadd.f32 0.0, %v1569
      %v1571 = vpop.f32.mrf.mxu0
      %v1572 = vpop.f32.mrf.mxu0
      %v1573 = vadd.f32 0.0, %v1572
      %v1574 = vpop.f32.mrf.mxu0
      %1575 = vmatprep.mubr.bf16.mxu0 0
      %1576 = vmatmul.mubr.bf16.gmra.mxu0 %v1480
      %v1577 = vpop.f32.mrf.mxu0
      %v1578 = vadd.f32 0.0, %v1577
      %v1579 = vpop.f32.mrf.mxu0
      %v1580 = vpop.f32.mrf.mxu0
      %v1581 = vadd.f32 0.0, %v1580
      %v1582 = vpop.f32.mrf.mxu0
      %1583 = vmatprep.mubr.bf16.mxu0 0
      %1584 = vmatmul.mubr.bf16.gmra.mxu0 %v1481
      %v1585 = vpop.f32.mrf.mxu0
      %v1586 = vadd.f32 0.0, %v1585
      %v1587 = vpop.f32.mrf.mxu0
      %v1588 = vpop.f32.mrf.mxu0
      %v1589 = vadd.f32 0.0, %v1588
      %v1590 = vpop.f32.mrf.mxu0
      %1591 = vmatprep.mubr.bf16.mxu0 0
      %1592 = vmatmul.mubr.bf16.gmra.mxu0 %v1482
      %v1593 = vpop.f32.mrf.mxu0
      %v1594 = vadd.f32 0.0, %v1593
      %v1595 = vpop.f32.mrf.mxu0
      %v1596 = vpop.f32.mrf.mxu0
      %v1597 = vadd.f32 0.0, %v1596
      %v1598 = vpop.f32.mrf.mxu0
      %1599 = vdwg.mxu0
      %v1600 = vadd.f32 %v1318, %v1570
      %v1601 = vadd.f32 %v1319, %v1573
      %v1602 = vadd.f32 %v1320, %v1578
      %v1603 = vadd.f32 %v1321, %v1581
      %v1604 = vadd.f32 %v1322, %v1586
      %v1605 = vadd.f32 %v1323, %v1589
      %v1606 = vadd.f32 %v1324, %v1594
      %v1607 = vadd.f32 %v1325, %v1597
      %v1608 = vld [vmem:[%s458] sm:$0xe]
      %v1609 = vld [vmem:[%s458 + $0x8] sm:$0xe]
      %v1610 = vld [vmem:[%s458 + $0x10] sm:$0xe]
      %v1611 = vld [vmem:[%s458 + $0x18] sm:$0xe]
      %v1612 = vld [vmem:[%s458 + $0x20] sm:$0xe]
      %v1613 = vld [vmem:[%s458 + $0x28] sm:$0xe]
      %v1614 = vld [vmem:[%s458 + $0x30] sm:$0xe]
      %v1615 = vld [vmem:[%s458 + $0x38] sm:$0xe]
      %v1632 = vrot.slane %v1608, 5
      %v1633 = vrot.slane %v1632, 4
      %v1634 = vrot.slane %v1327, 5
      %v1635 = vsel %vm969, %v1633, %v1634
      %v1636 = vrot.slane %v1609, 5
      %v1637 = vrot.slane %v1636, 4
      %v1638 = vrot.slane %v1329, 5
      %v1639 = vsel %vm969, %v1637, %v1638
      %v1640 = vrot.slane %v1610, 5
      %v1641 = vrot.slane %v1640, 4
      %v1642 = vrot.slane %v1331, 5
      %v1643 = vsel %vm969, %v1641, %v1642
      %v1644 = vrot.slane %v1611, 5
      %v1645 = vrot.slane %v1644, 4
      %v1646 = vrot.slane %v1333, 5
      %v1647 = vsel %vm969, %v1645, %v1646
      %v1648 = vrot.slane %v1612, 5
      %v1649 = vrot.slane %v1648, 4
      %v1650 = vrot.slane %v1335, 5
      %v1651 = vsel %vm969, %v1649, %v1650
      %v1652 = vrot.slane %v1613, 5
      %v1653 = vrot.slane %v1652, 4
      %v1654 = vrot.slane %v1337, 5
      %v1655 = vsel %vm969, %v1653, %v1654
      %v1656 = vrot.slane %v1614, 5
      %v1657 = vrot.slane %v1656, 4
      %v1658 = vrot.slane %v1339, 5
      %v1659 = vsel %vm969, %v1657, %v1658
      %v1660 = vrot.slane %v1615, 5
      %v1661 = vrot.slane %v1660, 4
      %v1662 = vrot.slane %v1341, 5
      %v1663 = vsel %vm969, %v1661, %v1662
      %s1664 = scalar_lea.vmem %s2, 320
      %v1665 = vld [vmem:[%s1664] sm:$0xf]
      %v1666 = vld [vmem:[%s1664 + $0x4] sm:$0xf]
      %v1667 = vld [vmem:[%s1664 + $0x8] sm:$0xf]
      %v1668 = vld [vmem:[%s1664 + $0xc] sm:$0xf]
      %v1669 = vld [vmem:[%s1664 + $0x10] sm:$0xf]
      %v1670 = vld [vmem:[%s1664 + $0x14] sm:$0xf]
      %v1671 = vld [vmem:[%s1664 + $0x18] sm:$0xf]
      %v1672 = vld [vmem:[%s1664 + $0x1c] sm:$0xf]
      %v1673 = vld [vmem:[%s1664 + $0x20] sm:$0xf]
      %v1674 = vld [vmem:[%s1664 + $0x24] sm:$0xf]
      %v1675 = vld [vmem:[%s1664 + $0x28] sm:$0xf]
      %v1676 = vld [vmem:[%s1664 + $0x2c] sm:$0xf]
      %v1677 = vld [vmem:[%s1664 + $0x30] sm:$0xf]
      %v1678 = vld [vmem:[%s1664 + $0x34] sm:$0xf]
      %v1679 = vld [vmem:[%s1664 + $0x38] sm:$0xf]
      %v1680 = vld [vmem:[%s1664 + $0x3c] sm:$0xf]
      %v1681 = vunpack.c.l.b16 %v1635
      %v1682 = vunpack.c.l.b16 %v1639
      %v1683 = vunpack.c.l.b16 %v1643
      %v1684 = vunpack.c.l.b16 %v1647
      %v1685 = vunpack.c.l.b16 %v1651
      %v1686 = vunpack.c.l.b16 %v1655
      %v1687 = vunpack.c.l.b16 %v1659
      %v1688 = vunpack.c.l.b16 %v1663
      %v1689 = vpack.c.b16 %v1682, %v1681
      %v1690 = vpack.c.b16 %v1684, %v1683
      %v1691 = vpack.c.b16 %v1686, %v1685
      %v1692 = vpack.c.b16 %v1688, %v1687
      %v1713 = vunpack.c.l.b16 %v1665
      %v1714 = vunpack.c.l.b16 %v1666
      %v1715 = vunpack.c.l.b16 %v1667
      %v1716 = vunpack.c.l.b16 %v1668
      %v1717 = vunpack.c.l.b16 %v1669
      %v1718 = vunpack.c.l.b16 %v1670
      %v1719 = vunpack.c.l.b16 %v1671
      %v1720 = vunpack.c.l.b16 %v1672
      %v1721 = vunpack.c.l.b16 %v1673
      %v1722 = vunpack.c.l.b16 %v1674
      %v1723 = vunpack.c.l.b16 %v1675
      %v1724 = vunpack.c.l.b16 %v1676
      %v1725 = vunpack.c.l.b16 %v1677
      %v1726 = vunpack.c.l.b16 %v1678
      %v1727 = vunpack.c.l.b16 %v1679
      %v1728 = vunpack.c.l.b16 %v1680
      %v1729 = vpack.c.b16 %v1714, %v1713
      %v1730 = vpack.c.b16 %v1716, %v1715
      %v1731 = vpack.c.b16 %v1718, %v1717
      %v1732 = vpack.c.b16 %v1720, %v1719
      %v1733 = vpack.c.b16 %v1722, %v1721
      %v1734 = vpack.c.b16 %v1724, %v1723
      %v1735 = vpack.c.b16 %v1726, %v1725
      %v1736 = vpack.c.b16 %v1728, %v1727
      %1745 = vmatprep.subr.bf16.mxu0 0
      %1746 = vmatpush1.bf16.msra.mxu0 %v1736
      %1747 = vmatprep.subr.bf16.mxu0 0
      %1748 = vmatpush1.bf16.msra.mxu0 %v1735
      %1749 = vmatprep.subr.bf16.mxu0 0
      %1750 = vmatpush1.bf16.msra.mxu0 %v1734
      %1751 = vmatprep.subr.bf16.mxu0 0
      %1752 = vmatpush1.bf16.msra.mxu0 %v1733
      %1753 = vmatprep.subr.bf16.mxu0 0
      %1754 = vmatpush1.bf16.msra.mxu0 %v1732
      %1755 = vmatprep.subr.bf16.mxu0 0
      %1756 = vmatpush1.bf16.msra.mxu0 %v1731
      %1757 = vmatprep.subr.bf16.mxu0 0
      %1758 = vmatpush1.bf16.msra.mxu0 %v1730
      %1759 = vmatprep.subr.bf16.mxu0 0
      %1760 = vmatpush1.bf16.msra.mxu0 %v1729
      %1761 = vmatprep.subr.bf16.mxu0 0
      %1762 = vmatpush2.bf16.msra.mxu0 0
      %1763 = vmatprep.subr.bf16.mxu0 0
      %1764 = vmatpush2.bf16.msra.mxu0 0
      %1765 = vmatprep.subr.bf16.mxu0 0
      %1766 = vmatpush2.bf16.msra.mxu0 0
      %1767 = vmatprep.subr.bf16.mxu0 0
      %1768 = vmatpush2.bf16.msra.mxu0 0
      %1769 = vmatprep.subr.bf16.mxu0 0
      %1770 = vmatpush2.bf16.msra.mxu0 0
      %1771 = vmatprep.subr.bf16.mxu0 0
      %1772 = vmatpush2.bf16.msra.mxu0 0
      %1773 = vmatprep.subr.bf16.mxu0 0
      %1774 = vmatpush2.bf16.msra.mxu0 0
      %1775 = vmatprep.subr.bf16.mxu0 0
      %1776 = vmatpush2.bf16.msra.mxu0 0
      %1777 = vmatprep.mubr.bf16.mxu0 0
      %1778 = vmatmul.mubr.bf16.gmra.mxu0 %v1689
      %v1779 = vpop.f32.mrf.mxu0
      %v1780 = vadd.f32 0.0, %v1779
      %v1781 = vpop.f32.mrf.mxu0
      %v1782 = vpop.f32.mrf.mxu0
      %v1783 = vadd.f32 0.0, %v1782
      %v1784 = vpop.f32.mrf.mxu0
      %1785 = vmatprep.mubr.bf16.mxu0 0
      %1786 = vmatmul.mubr.bf16.gmra.mxu0 %v1690
      %v1787 = vpop.f32.mrf.mxu0
      %v1788 = vadd.f32 0.0, %v1787
      %v1789 = vpop.f32.mrf.mxu0
      %v1790 = vpop.f32.mrf.mxu0
      %v1791 = vadd.f32 0.0, %v1790
      %v1792 = vpop.f32.mrf.mxu0
      %1793 = vmatprep.mubr.bf16.mxu0 0
      %1794 = vmatmul.mubr.bf16.gmra.mxu0 %v1691
      %v1795 = vpop.f32.mrf.mxu0
      %v1796 = vadd.f32 0.0, %v1795
      %v1797 = vpop.f32.mrf.mxu0
      %v1798 = vpop.f32.mrf.mxu0
      %v1799 = vadd.f32 0.0, %v1798
      %v1800 = vpop.f32.mrf.mxu0
      %1801 = vmatprep.mubr.bf16.mxu0 0
      %1802 = vmatmul.mubr.bf16.gmra.mxu0 %v1692
      %v1803 = vpop.f32.mrf.mxu0
      %v1804 = vadd.f32 0.0, %v1803
      %v1805 = vpop.f32.mrf.mxu0
      %v1806 = vpop.f32.mrf.mxu0
      %v1807 = vadd.f32 0.0, %v1806
      %v1808 = vpop.f32.mrf.mxu0
      %1809 = vdwg.mxu0
      %v1810 = vadd.f32 %v1600, %v1780
      %v1811 = vadd.f32 %v1601, %v1783
      %v1812 = vadd.f32 %v1602, %v1788
      %v1813 = vadd.f32 %v1603, %v1791
      %v1814 = vadd.f32 %v1604, %v1796
      %v1815 = vadd.f32 %v1605, %v1799
      %v1816 = vadd.f32 %v1606, %v1804
      %v1817 = vadd.f32 %v1607, %v1807
      %s1818 = scalar_lea.vmem [#allocation2], 16
      %v1819 = vld [vmem:[%s1818] sm:$0xf]
      %v1820 = vld [vmem:[%s1818 + $0x8] sm:$0xf]
      %v1821 = vld [vmem:[%s1818 + $0x10] sm:$0xf]
      %v1822 = vld [vmem:[%s1818 + $0x18] sm:$0xf]
      %v1823 = vld [vmem:[%s1818 + $0x20] sm:$0xf]
      %v1824 = vld [vmem:[%s1818 + $0x28] sm:$0xf]
      %v1825 = vld [vmem:[%s1818 + $0x30] sm:$0xf]
      %v1826 = vld [vmem:[%s1818 + $0x38] sm:$0xf]
      %s1827 = scalar_lea.vmem %s2, 384
      %v1828 = vld [vmem:[%s1827] sm:$0xf]
      %v1829 = vld [vmem:[%s1827 + $0x4] sm:$0xf]
      %v1830 = vld [vmem:[%s1827 + $0x8] sm:$0xf]
      %v1831 = vld [vmem:[%s1827 + $0xc] sm:$0xf]
      %v1832 = vld [vmem:[%s1827 + $0x10] sm:$0xf]
      %v1833 = vld [vmem:[%s1827 + $0x14] sm:$0xf]
      %v1834 = vld [vmem:[%s1827 + $0x18] sm:$0xf]
      %v1835 = vld [vmem:[%s1827 + $0x1c] sm:$0xf]
      %v1836 = vld [vmem:[%s1827 + $0x20] sm:$0xf]
      %v1837 = vld [vmem:[%s1827 + $0x24] sm:$0xf]
      %v1838 = vld [vmem:[%s1827 + $0x28] sm:$0xf]
      %v1839 = vld [vmem:[%s1827 + $0x2c] sm:$0xf]
      %v1840 = vld [vmem:[%s1827 + $0x30] sm:$0xf]
      %v1841 = vld [vmem:[%s1827 + $0x34] sm:$0xf]
      %v1842 = vld [vmem:[%s1827 + $0x38] sm:$0xf]
      %v1843 = vld [vmem:[%s1827 + $0x3c] sm:$0xf]
      %v1852 = vunpack.c.l.b16 %v1819
      %v1853 = vunpack.c.l.b16 %v1820
      %v1854 = vunpack.c.l.b16 %v1821
      %v1855 = vunpack.c.l.b16 %v1822
      %v1856 = vunpack.c.l.b16 %v1823
      %v1857 = vunpack.c.l.b16 %v1824
      %v1858 = vunpack.c.l.b16 %v1825
      %v1859 = vunpack.c.l.b16 %v1826
      %v1860 = vpack.c.b16 %v1853, %v1852
      %v1861 = vpack.c.b16 %v1855, %v1854
      %v1862 = vpack.c.b16 %v1857, %v1856
      %v1863 = vpack.c.b16 %v1859, %v1858
      %v1884 = vunpack.c.l.b16 %v1828
      %v1885 = vunpack.c.l.b16 %v1829
      %v1886 = vunpack.c.l.b16 %v1830
      %v1887 = vunpack.c.l.b16 %v1831
      %v1888 = vunpack.c.l.b16 %v1832
      %v1889 = vunpack.c.l.b16 %v1833
      %v1890 = vunpack.c.l.b16 %v1834
      %v1891 = vunpack.c.l.b16 %v1835
      %v1892 = vunpack.c.l.b16 %v1836
      %v1893 = vunpack.c.l.b16 %v1837
      %v1894 = vunpack.c.l.b16 %v1838
      %v1895 = vunpack.c.l.b16 %v1839
      %v1896 = vunpack.c.l.b16 %v1840
      %v1897 = vunpack.c.l.b16 %v1841
      %v1898 = vunpack.c.l.b16 %v1842
      %v1899 = vunpack.c.l.b16 %v1843
      %v1900 = vpack.c.b16 %v1885, %v1884
      %v1901 = vpack.c.b16 %v1887, %v1886
      %v1902 = vpack.c.b16 %v1889, %v1888
      %v1903 = vpack.c.b16 %v1891, %v1890
      %v1904 = vpack.c.b16 %v1893, %v1892
      %v1905 = vpack.c.b16 %v1895, %v1894
      %v1906 = vpack.c.b16 %v1897, %v1896
      %v1907 = vpack.c.b16 %v1899, %v1898
      %1916 = vmatprep.subr.bf16.mxu0 0
      %1917 = vmatpush1.bf16.msra.mxu0 %v1907
      %1918 = vmatprep.subr.bf16.mxu0 0
      %1919 = vmatpush1.bf16.msra.mxu0 %v1906
      %1920 = vmatprep.subr.bf16.mxu0 0
      %1921 = vmatpush1.bf16.msra.mxu0 %v1905
      %1922 = vmatprep.subr.bf16.mxu0 0
      %1923 = vmatpush1.bf16.msra.mxu0 %v1904
      %1924 = vmatprep.subr.bf16.mxu0 0
      %1925 = vmatpush1.bf16.msra.mxu0 %v1903
      %1926 = vmatprep.subr.bf16.mxu0 0
      %1927 = vmatpush1.bf16.msra.mxu0 %v1902
      %1928 = vmatprep.subr.bf16.mxu0 0
      %1929 = vmatpush1.bf16.msra.mxu0 %v1901
      %1930 = vmatprep.subr.bf16.mxu0 0
      %1931 = vmatpush1.bf16.msra.mxu0 %v1900
      %1932 = vmatprep.subr.bf16.mxu0 0
      %1933 = vmatpush2.bf16.msra.mxu0 0
      %1934 = vmatprep.subr.bf16.mxu0 0
      %1935 = vmatpush2.bf16.msra.mxu0 0
      %1936 = vmatprep.subr.bf16.mxu0 0
      %1937 = vmatpush2.bf16.msra.mxu0 0
      %1938 = vmatprep.subr.bf16.mxu0 0
      %1939 = vmatpush2.bf16.msra.mxu0 0
      %1940 = vmatprep.subr.bf16.mxu0 0
      %1941 = vmatpush2.bf16.msra.mxu0 0
      %1942 = vmatprep.subr.bf16.mxu0 0
      %1943 = vmatpush2.bf16.msra.mxu0 0
      %1944 = vmatprep.subr.bf16.mxu0 0
      %1945 = vmatpush2.bf16.msra.mxu0 0
      %1946 = vmatprep.subr.bf16.mxu0 0
      %1947 = vmatpush2.bf16.msra.mxu0 0
      %1948 = vmatprep.mubr.bf16.mxu0 0
      %1949 = vmatmul.mubr.bf16.gmra.mxu0 %v1860
      %v1950 = vpop.f32.mrf.mxu0
      %v1951 = vadd.f32 0.0, %v1950
      %v1952 = vpop.f32.mrf.mxu0
      %v1953 = vpop.f32.mrf.mxu0
      %v1954 = vadd.f32 0.0, %v1953
      %v1955 = vpop.f32.mrf.mxu0
      %1956 = vmatprep.mubr.bf16.mxu0 0
      %1957 = vmatmul.mubr.bf16.gmra.mxu0 %v1861
      %v1958 = vpop.f32.mrf.mxu0
      %v1959 = vadd.f32 0.0, %v1958
      %v1960 = vpop.f32.mrf.mxu0
      %v1961 = vpop.f32.mrf.mxu0
      %v1962 = vadd.f32 0.0, %v1961
      %v1963 = vpop.f32.mrf.mxu0
      %1964 = vmatprep.mubr.bf16.mxu0 0
      %1965 = vmatmul.mubr.bf16.gmra.mxu0 %v1862
      %v1966 = vpop.f32.mrf.mxu0
      %v1967 = vadd.f32 0.0, %v1966
      %v1968 = vpop.f32.mrf.mxu0
      %v1969 = vpop.f32.mrf.mxu0
      %v1970 = vadd.f32 0.0, %v1969
      %v1971 = vpop.f32.mrf.mxu0
      %1972 = vmatprep.mubr.bf16.mxu0 0
      %1973 = vmatmul.mubr.bf16.gmra.mxu0 %v1863
      %v1974 = vpop.f32.mrf.mxu0
      %v1975 = vadd.f32 0.0, %v1974
      %v1976 = vpop.f32.mrf.mxu0
      %v1977 = vpop.f32.mrf.mxu0
      %v1978 = vadd.f32 0.0, %v1977
      %v1979 = vpop.f32.mrf.mxu0
      %1980 = vdwg.mxu0
      %v1981 = vadd.f32 %v1810, %v1951
      %v1982 = vadd.f32 %v1811, %v1954
      %v1983 = vadd.f32 %v1812, %v1959
      %v1984 = vadd.f32 %v1813, %v1962
      %v1985 = vadd.f32 %v1814, %v1967
      %v1986 = vadd.f32 %v1815, %v1970
      %v1987 = vadd.f32 %v1816, %v1975
      %v1988 = vadd.f32 %v1817, %v1978
      %v1989 = vld [vmem:[%s1818] sm:$0xf]
      %v1990 = vld [vmem:[%s1818 + $0x4] sm:$0x1]
      %v1991 = vld [vmem:[%s1818 + $0x8] sm:$0xf]
      %v1992 = vld [vmem:[%s1818 + $0xc] sm:$0x1]
      %v1993 = vld [vmem:[%s1818 + $0x10] sm:$0xf]
      %v1994 = vld [vmem:[%s1818 + $0x14] sm:$0x1]
      %v1995 = vld [vmem:[%s1818 + $0x18] sm:$0xf]
      %v1996 = vld [vmem:[%s1818 + $0x1c] sm:$0x1]
      %v1997 = vld [vmem:[%s1818 + $0x20] sm:$0xf]
      %v1998 = vld [vmem:[%s1818 + $0x24] sm:$0x1]
      %v1999 = vld [vmem:[%s1818 + $0x28] sm:$0xf]
      %v2000 = vld [vmem:[%s1818 + $0x2c] sm:$0x1]
      %v2001 = vld [vmem:[%s1818 + $0x30] sm:$0xf]
      %v2002 = vld [vmem:[%s1818 + $0x34] sm:$0x1]
      %v2003 = vld [vmem:[%s1818 + $0x38] sm:$0xf]
      %v2004 = vld [vmem:[%s1818 + $0x3c] sm:$0x1]
      %v2006 = vshrl.u32 %v1989, 16
      %v2008 = vrot.slane %v2006, 4
      %v2009 = vshll.u32 %v1989, 16
      %v2011 = vrot.slane %v2009, 5
      %v2012 = vor.u32 %v2008, %v2011
      %v2013 = vrot.slane %v2012, 4
      %v2015 = vshll.u32 %v1990, 16
      %v2017 = vrot.slane %v2015, 5
      %v2018 = vsel %vm547, %v2013, %v2017
      %v2020 = vshrl.u32 %v1991, 16
      %v2022 = vrot.slane %v2020, 4
      %v2023 = vshll.u32 %v1991, 16
      %v2025 = vrot.slane %v2023, 5
      %v2026 = vor.u32 %v2022, %v2025
      %v2027 = vrot.slane %v2026, 4
      %v2029 = vshll.u32 %v1992, 16
      %v2031 = vrot.slane %v2029, 5
      %v2032 = vsel %vm547, %v2027, %v2031
      %v2034 = vshrl.u32 %v1993, 16
      %v2036 = vrot.slane %v2034, 4
      %v2037 = vshll.u32 %v1993, 16
      %v2039 = vrot.slane %v2037, 5
      %v2040 = vor.u32 %v2036, %v2039
      %v2041 = vrot.slane %v2040, 4
      %v2043 = vshll.u32 %v1994, 16
      %v2045 = vrot.slane %v2043, 5
      %v2046 = vsel %vm547, %v2041, %v2045
      %v2048 = vshrl.u32 %v1995, 16
      %v2050 = vrot.slane %v2048, 4
      %v2051 = vshll.u32 %v1995, 16
      %v2053 = vrot.slane %v2051, 5
      %v2054 = vor.u32 %v2050, %v2053
      %v2055 = vrot.slane %v2054, 4
      %v2057 = vshll.u32 %v1996, 16
      %v2059 = vrot.slane %v2057, 5
      %v2060 = vsel %vm547, %v2055, %v2059
      %v2062 = vshrl.u32 %v1997, 16
      %v2064 = vrot.slane %v2062, 4
      %v2065 = vshll.u32 %v1997, 16
      %v2067 = vrot.slane %v2065, 5
      %v2068 = vor.u32 %v2064, %v2067
      %v2069 = vrot.slane %v2068, 4
      %v2071 = vshll.u32 %v1998, 16
      %v2073 = vrot.slane %v2071, 5
      %v2074 = vsel %vm547, %v2069, %v2073
      %v2076 = vshrl.u32 %v1999, 16
      %v2078 = vrot.slane %v2076, 4
      %v2079 = vshll.u32 %v1999, 16
      %v2081 = vrot.slane %v2079, 5
      %v2082 = vor.u32 %v2078, %v2081
      %v2083 = vrot.slane %v2082, 4
      %v2085 = vshll.u32 %v2000, 16
      %v2087 = vrot.slane %v2085, 5
      %v2088 = vsel %vm547, %v2083, %v2087
      %v2090 = vshrl.u32 %v2001, 16
      %v2092 = vrot.slane %v2090, 4
      %v2093 = vshll.u32 %v2001, 16
      %v2095 = vrot.slane %v2093, 5
      %v2096 = vor.u32 %v2092, %v2095
      %v2097 = vrot.slane %v2096, 4
      %v2099 = vshll.u32 %v2002, 16
      %v2101 = vrot.slane %v2099, 5
      %v2102 = vsel %vm547, %v2097, %v2101
      %v2104 = vshrl.u32 %v2003, 16
      %v2106 = vrot.slane %v2104, 4
      %v2107 = vshll.u32 %v2003, 16
      %v2109 = vrot.slane %v2107, 5
      %v2110 = vor.u32 %v2106, %v2109
      %v2111 = vrot.slane %v2110, 4
      %v2113 = vshll.u32 %v2004, 16
      %v2115 = vrot.slane %v2113, 5
      %v2116 = vsel %vm547, %v2111, %v2115
      %s2117 = scalar_lea.vmem %s2, 448
      %v2118 = vld [vmem:[%s2117] sm:$0xf]
      %v2119 = vld [vmem:[%s2117 + $0x4] sm:$0xf]
      %v2120 = vld [vmem:[%s2117 + $0x8] sm:$0xf]
      %v2121 = vld [vmem:[%s2117 + $0xc] sm:$0xf]
      %v2122 = vld [vmem:[%s2117 + $0x10] sm:$0xf]
      %v2123 = vld [vmem:[%s2117 + $0x14] sm:$0xf]
      %v2124 = vld [vmem:[%s2117 + $0x18] sm:$0xf]
      %v2125 = vld [vmem:[%s2117 + $0x1c] sm:$0xf]
      %v2126 = vld [vmem:[%s2117 + $0x20] sm:$0xf]
      %v2127 = vld [vmem:[%s2117 + $0x24] sm:$0xf]
      %v2128 = vld [vmem:[%s2117 + $0x28] sm:$0xf]
      %v2129 = vld [vmem:[%s2117 + $0x2c] sm:$0xf]
      %v2130 = vld [vmem:[%s2117 + $0x30] sm:$0xf]
      %v2131 = vld [vmem:[%s2117 + $0x34] sm:$0xf]
      %v2132 = vld [vmem:[%s2117 + $0x38] sm:$0xf]
      %v2133 = vld [vmem:[%s2117 + $0x3c] sm:$0xf]
      %v2134 = vunpack.c.l.b16 %v2018
      %v2135 = vunpack.c.l.b16 %v2032
      %v2136 = vunpack.c.l.b16 %v2046
      %v2137 = vunpack.c.l.b16 %v2060
      %v2138 = vunpack.c.l.b16 %v2074
      %v2139 = vunpack.c.l.b16 %v2088
      %v2140 = vunpack.c.l.b16 %v2102
      %v2141 = vunpack.c.l.b16 %v2116
      %v2142 = vpack.c.b16 %v2135, %v2134
      %v2143 = vpack.c.b16 %v2137, %v2136
      %v2144 = vpack.c.b16 %v2139, %v2138
      %v2145 = vpack.c.b16 %v2141, %v2140
      %v2166 = vunpack.c.l.b16 %v2118
      %v2167 = vunpack.c.l.b16 %v2119
      %v2168 = vunpack.c.l.b16 %v2120
      %v2169 = vunpack.c.l.b16 %v2121
      %v2170 = vunpack.c.l.b16 %v2122
      %v2171 = vunpack.c.l.b16 %v2123
      %v2172 = vunpack.c.l.b16 %v2124
      %v2173 = vunpack.c.l.b16 %v2125
      %v2174 = vunpack.c.l.b16 %v2126
      %v2175 = vunpack.c.l.b16 %v2127
      %v2176 = vunpack.c.l.b16 %v2128
      %v2177 = vunpack.c.l.b16 %v2129
      %v2178 = vunpack.c.l.b16 %v2130
      %v2179 = vunpack.c.l.b16 %v2131
      %v2180 = vunpack.c.l.b16 %v2132
      %v2181 = vunpack.c.l.b16 %v2133
      %v2182 = vpack.c.b16 %v2167, %v2166
      %v2183 = vpack.c.b16 %v2169, %v2168
      %v2184 = vpack.c.b16 %v2171, %v2170
      %v2185 = vpack.c.b16 %v2173, %v2172
      %v2186 = vpack.c.b16 %v2175, %v2174
      %v2187 = vpack.c.b16 %v2177, %v2176
      %v2188 = vpack.c.b16 %v2179, %v2178
      %v2189 = vpack.c.b16 %v2181, %v2180
      %2198 = vmatprep.subr.bf16.mxu0 0
      %2199 = vmatpush1.bf16.msra.mxu0 %v2189
      %2200 = vmatprep.subr.bf16.mxu0 0
      %2201 = vmatpush1.bf16.msra.mxu0 %v2188
      %2202 = vmatprep.subr.bf16.mxu0 0
      %2203 = vmatpush1.bf16.msra.mxu0 %v2187
      %2204 = vmatprep.subr.bf16.mxu0 0
      %2205 = vmatpush1.bf16.msra.mxu0 %v2186
      %2206 = vmatprep.subr.bf16.mxu0 0
      %2207 = vmatpush1.bf16.msra.mxu0 %v2185
      %2208 = vmatprep.subr.bf16.mxu0 0
      %2209 = vmatpush1.bf16.msra.mxu0 %v2184
      %2210 = vmatprep.subr.bf16.mxu0 0
      %2211 = vmatpush1.bf16.msra.mxu0 %v2183
      %2212 = vmatprep.subr.bf16.mxu0 0
      %2213 = vmatpush1.bf16.msra.mxu0 %v2182
      %2214 = vmatprep.subr.bf16.mxu0 0
      %2215 = vmatpush2.bf16.msra.mxu0 0
      %2216 = vmatprep.subr.bf16.mxu0 0
      %2217 = vmatpush2.bf16.msra.mxu0 0
      %2218 = vmatprep.subr.bf16.mxu0 0
      %2219 = vmatpush2.bf16.msra.mxu0 0
      %2220 = vmatprep.subr.bf16.mxu0 0
      %2221 = vmatpush2.bf16.msra.mxu0 0
      %2222 = vmatprep.subr.bf16.mxu0 0
      %2223 = vmatpush2.bf16.msra.mxu0 0
      %2224 = vmatprep.subr.bf16.mxu0 0
      %2225 = vmatpush2.bf16.msra.mxu0 0
      %2226 = vmatprep.subr.bf16.mxu0 0
      %2227 = vmatpush2.bf16.msra.mxu0 0
      %2228 = vmatprep.subr.bf16.mxu0 0
      %2229 = vmatpush2.bf16.msra.mxu0 0
      %2230 = vmatprep.mubr.bf16.mxu0 0
      %2231 = vmatmul.mubr.bf16.gmra.mxu0 %v2142
      %v2232 = vpop.f32.mrf.mxu0
      %v2233 = vadd.f32 0.0, %v2232
      %v2234 = vpop.f32.mrf.mxu0
      %v2235 = vpop.f32.mrf.mxu0
      %v2236 = vadd.f32 0.0, %v2235
      %v2237 = vpop.f32.mrf.mxu0
      %2238 = vmatprep.mubr.bf16.mxu0 0
      %2239 = vmatmul.mubr.bf16.gmra.mxu0 %v2143
      %v2240 = vpop.f32.mrf.mxu0
      %v2241 = vadd.f32 0.0, %v2240
      %v2242 = vpop.f32.mrf.mxu0
      %v2243 = vpop.f32.mrf.mxu0
      %v2244 = vadd.f32 0.0, %v2243
      %v2245 = vpop.f32.mrf.mxu0
      %2246 = vmatprep.mubr.bf16.mxu0 0
      %2247 = vmatmul.mubr.bf16.gmra.mxu0 %v2144
      %v2248 = vpop.f32.mrf.mxu0
      %v2249 = vadd.f32 0.0, %v2248
      %v2250 = vpop.f32.mrf.mxu0
      %v2251 = vpop.f32.mrf.mxu0
      %v2252 = vadd.f32 0.0, %v2251
      %v2253 = vpop.f32.mrf.mxu0
      %2254 = vmatprep.mubr.bf16.mxu0 0
      %2255 = vmatmul.mubr.bf16.gmra.mxu0 %v2145
      %v2256 = vpop.f32.mrf.mxu0
      %v2257 = vadd.f32 0.0, %v2256
      %v2258 = vpop.f32.mrf.mxu0
      %v2259 = vpop.f32.mrf.mxu0
      %v2260 = vadd.f32 0.0, %v2259
      %v2261 = vpop.f32.mrf.mxu0
      %2262 = vdwg.mxu0
      %v2263 = vadd.f32 %v1981, %v2233
      %v2264 = vadd.f32 %v1982, %v2236
      %v2265 = vadd.f32 %v1983, %v2241
      %v2266 = vadd.f32 %v1984, %v2244
      %v2267 = vadd.f32 %v1985, %v2249
      %v2268 = vadd.f32 %v1986, %v2252
      %v2269 = vadd.f32 %v1987, %v2257
      %v2270 = vadd.f32 %v1988, %v2260
      %v2271 = vld [vmem:[%s1818] sm:$0xe]
      %v2272 = vld [vmem:[%s1818 + $0x8] sm:$0xe]
      %v2273 = vld [vmem:[%s1818 + $0x10] sm:$0xe]
      %v2274 = vld [vmem:[%s1818 + $0x18] sm:$0xe]
      %v2275 = vld [vmem:[%s1818 + $0x20] sm:$0xe]
      %v2276 = vld [vmem:[%s1818 + $0x28] sm:$0xe]
      %v2277 = vld [vmem:[%s1818 + $0x30] sm:$0xe]
      %v2278 = vld [vmem:[%s1818 + $0x38] sm:$0xe]
      %v2295 = vrot.slane %v2271, 5
      %v2296 = vrot.slane %v2295, 4
      %v2297 = vrot.slane %v1990, 5
      %v2298 = vsel %vm969, %v2296, %v2297
      %v2299 = vrot.slane %v2272, 5
      %v2300 = vrot.slane %v2299, 4
      %v2301 = vrot.slane %v1992, 5
      %v2302 = vsel %vm969, %v2300, %v2301
      %v2303 = vrot.slane %v2273, 5
      %v2304 = vrot.slane %v2303, 4
      %v2305 = vrot.slane %v1994, 5
      %v2306 = vsel %vm969, %v2304, %v2305
      %v2307 = vrot.slane %v2274, 5
      %v2308 = vrot.slane %v2307, 4
      %v2309 = vrot.slane %v1996, 5
      %v2310 = vsel %vm969, %v2308, %v2309
      %v2311 = vrot.slane %v2275, 5
      %v2312 = vrot.slane %v2311, 4
      %v2313 = vrot.slane %v1998, 5
      %v2314 = vsel %vm969, %v2312, %v2313
      %v2315 = vrot.slane %v2276, 5
      %v2316 = vrot.slane %v2315, 4
      %v2317 = vrot.slane %v2000, 5
      %v2318 = vsel %vm969, %v2316, %v2317
      %v2319 = vrot.slane %v2277, 5
      %v2320 = vrot.slane %v2319, 4
      %v2321 = vrot.slane %v2002, 5
      %v2322 = vsel %vm969, %v2320, %v2321
      %v2323 = vrot.slane %v2278, 5
      %v2324 = vrot.slane %v2323, 4
      %v2325 = vrot.slane %v2004, 5
      %v2326 = vsel %vm969, %v2324, %v2325
      %s2327 = scalar_lea.vmem %s2, 512
      %v2328 = vld [vmem:[%s2327] sm:$0xf]
      %v2329 = vld [vmem:[%s2327 + $0x4] sm:$0xf]
      %v2330 = vld [vmem:[%s2327 + $0x8] sm:$0xf]
      %v2331 = vld [vmem:[%s2327 + $0xc] sm:$0xf]
      %v2332 = vld [vmem:[%s2327 + $0x10] sm:$0xf]
      %v2333 = vld [vmem:[%s2327 + $0x14] sm:$0xf]
      %v2334 = vld [vmem:[%s2327 + $0x18] sm:$0xf]
      %v2335 = vld [vmem:[%s2327 + $0x1c] sm:$0xf]
      %v2336 = vld [vmem:[%s2327 + $0x20] sm:$0xf]
      %v2337 = vld [vmem:[%s2327 + $0x24] sm:$0xf]
      %v2338 = vld [vmem:[%s2327 + $0x28] sm:$0xf]
      %v2339 = vld [vmem:[%s2327 + $0x2c] sm:$0xf]
      %v2340 = vld [vmem:[%s2327 + $0x30] sm:$0xf]
      %v2341 = vld [vmem:[%s2327 + $0x34] sm:$0xf]
      %v2342 = vld [vmem:[%s2327 + $0x38] sm:$0xf]
      %v2343 = vld [vmem:[%s2327 + $0x3c] sm:$0xf]
      %v2344 = vunpack.c.l.b16 %v2298
      %v2345 = vunpack.c.l.b16 %v2302
      %v2346 = vunpack.c.l.b16 %v2306
      %v2347 = vunpack.c.l.b16 %v2310
      %v2348 = vunpack.c.l.b16 %v2314
      %v2349 = vunpack.c.l.b16 %v2318
      %v2350 = vunpack.c.l.b16 %v2322
      %v2351 = vunpack.c.l.b16 %v2326
      %v2352 = vpack.c.b16 %v2345, %v2344
      %v2353 = vpack.c.b16 %v2347, %v2346
      %v2354 = vpack.c.b16 %v2349, %v2348
      %v2355 = vpack.c.b16 %v2351, %v2350
      %v2376 = vunpack.c.l.b16 %v2328
      %v2377 = vunpack.c.l.b16 %v2329
      %v2378 = vunpack.c.l.b16 %v2330
      %v2379 = vunpack.c.l.b16 %v2331
      %v2380 = vunpack.c.l.b16 %v2332
      %v2381 = vunpack.c.l.b16 %v2333
      %v2382 = vunpack.c.l.b16 %v2334
      %v2383 = vunpack.c.l.b16 %v2335
      %v2384 = vunpack.c.l.b16 %v2336
      %v2385 = vunpack.c.l.b16 %v2337
      %v2386 = vunpack.c.l.b16 %v2338
      %v2387 = vunpack.c.l.b16 %v2339
      %v2388 = vunpack.c.l.b16 %v2340
      %v2389 = vunpack.c.l.b16 %v2341
      %v2390 = vunpack.c.l.b16 %v2342
      %v2391 = vunpack.c.l.b16 %v2343
      %v2392 = vpack.c.b16 %v2377, %v2376
      %v2393 = vpack.c.b16 %v2379, %v2378
      %v2394 = vpack.c.b16 %v2381, %v2380
      %v2395 = vpack.c.b16 %v2383, %v2382
      %v2396 = vpack.c.b16 %v2385, %v2384
      %v2397 = vpack.c.b16 %v2387, %v2386
      %v2398 = vpack.c.b16 %v2389, %v2388
      %v2399 = vpack.c.b16 %v2391, %v2390
      %2408 = vmatprep.subr.bf16.mxu0 0
      %2409 = vmatpush1.bf16.msra.mxu0 %v2399
      %2410 = vmatprep.subr.bf16.mxu0 0
      %2411 = vmatpush1.bf16.msra.mxu0 %v2398
      %2412 = vmatprep.subr.bf16.mxu0 0
      %2413 = vmatpush1.bf16.msra.mxu0 %v2397
      %2414 = vmatprep.subr.bf16.mxu0 0
      %2415 = vmatpush1.bf16.msra.mxu0 %v2396
      %2416 = vmatprep.subr.bf16.mxu0 0
      %2417 = vmatpush1.bf16.msra.mxu0 %v2395
      %2418 = vmatprep.subr.bf16.mxu0 0
      %2419 = vmatpush1.bf16.msra.mxu0 %v2394
      %2420 = vmatprep.subr.bf16.mxu0 0
      %2421 = vmatpush1.bf16.msra.mxu0 %v2393
      %2422 = vmatprep.subr.bf16.mxu0 0
      %2423 = vmatpush1.bf16.msra.mxu0 %v2392
      %2424 = vmatprep.subr.bf16.mxu0 0
      %2425 = vmatpush2.bf16.msra.mxu0 0
      %2426 = vmatprep.subr.bf16.mxu0 0
      %2427 = vmatpush2.bf16.msra.mxu0 0
      %2428 = vmatprep.subr.bf16.mxu0 0
      %2429 = vmatpush2.bf16.msra.mxu0 0
      %2430 = vmatprep.subr.bf16.mxu0 0
      %2431 = vmatpush2.bf16.msra.mxu0 0
      %2432 = vmatprep.subr.bf16.mxu0 0
      %2433 = vmatpush2.bf16.msra.mxu0 0
      %2434 = vmatprep.subr.bf16.mxu0 0
      %2435 = vmatpush2.bf16.msra.mxu0 0
      %2436 = vmatprep.subr.bf16.mxu0 0
      %2437 = vmatpush2.bf16.msra.mxu0 0
      %2438 = vmatprep.subr.bf16.mxu0 0
      %2439 = vmatpush2.bf16.msra.mxu0 0
      %2440 = vmatprep.mubr.bf16.mxu0 0
      %2441 = vmatmul.mubr.bf16.gmra.mxu0 %v2352
      %v2442 = vpop.f32.mrf.mxu0
      %v2443 = vadd.f32 0.0, %v2442
      %v2444 = vpop.f32.mrf.mxu0
      %v2445 = vpop.f32.mrf.mxu0
      %v2446 = vadd.f32 0.0, %v2445
      %v2447 = vpop.f32.mrf.mxu0
      %2448 = vmatprep.mubr.bf16.mxu0 0
      %2449 = vmatmul.mubr.bf16.gmra.mxu0 %v2353
      %v2450 = vpop.f32.mrf.mxu0
      %v2451 = vadd.f32 0.0, %v2450
      %v2452 = vpop.f32.mrf.mxu0
      %v2453 = vpop.f32.mrf.mxu0
      %v2454 = vadd.f32 0.0, %v2453
      %v2455 = vpop.f32.mrf.mxu0
      %2456 = vmatprep.mubr.bf16.mxu0 0
      %2457 = vmatmul.mubr.bf16.gmra.mxu0 %v2354
      %v2458 = vpop.f32.mrf.mxu0
      %v2459 = vadd.f32 0.0, %v2458
      %v2460 = vpop.f32.mrf.mxu0
      %v2461 = vpop.f32.mrf.mxu0
      %v2462 = vadd.f32 0.0, %v2461
      %v2463 = vpop.f32.mrf.mxu0
      %2464 = vmatprep.mubr.bf16.mxu0 0
      %2465 = vmatmul.mubr.bf16.gmra.mxu0 %v2355
      %v2466 = vpop.f32.mrf.mxu0
      %v2467 = vadd.f32 0.0, %v2466
      %v2468 = vpop.f32.mrf.mxu0
      %v2469 = vpop.f32.mrf.mxu0
      %v2470 = vadd.f32 0.0, %v2469
      %v2471 = vpop.f32.mrf.mxu0
      %2472 = vdwg.mxu0
      %v2473 = vadd.f32 %v2263, %v2443
      %v2474 = vadd.f32 %v2264, %v2446
      %v2475 = vadd.f32 %v2265, %v2451
      %v2476 = vadd.f32 %v2266, %v2454
      %v2477 = vadd.f32 %v2267, %v2459
      %v2478 = vadd.f32 %v2268, %v2462
      %v2479 = vadd.f32 %v2269, %v2467
      %v2480 = vadd.f32 %v2270, %v2470
      %v2481 = vld [vmem:[%s273] sm:$0xf]
      %v2482 = vld [vmem:[%s273 + $0x4] sm:$0xf]
      %v2483 = vld [vmem:[%s273 + $0x8] sm:$0xf]
      %v2484 = vld [vmem:[%s273 + $0xc] sm:$0xf]
      %v2485 = vld [vmem:[%s273 + $0x10] sm:$0xf]
      %v2486 = vld [vmem:[%s273 + $0x14] sm:$0xf]
      %v2487 = vld [vmem:[%s273 + $0x18] sm:$0xf]
      %v2488 = vld [vmem:[%s273 + $0x1c] sm:$0xf]
      %v2489 = vunpack.c.l.bf16 %v2481
      %v2490 = vunpack.c.l.bf16 %v2482
      %v2491 = vunpack.c.l.bf16 %v2483
      %v2492 = vunpack.c.l.bf16 %v2484
      %v2493 = vunpack.c.l.bf16 %v2485
      %v2494 = vunpack.c.l.bf16 %v2486
      %v2495 = vunpack.c.l.bf16 %v2487
      %v2496 = vunpack.c.l.bf16 %v2488
      %v2497 = vld [vmem:[%s4] sm:$0x1]
      %v2498 = vlaneseq
      %v2499 = vshrl.u32 %v2498, 7
      %v2500 = vsub.s32 0, %v2499
      %v2501 = vrot.slane %v2497, %v2500
      %v2502 = vmul.f32 %v2489, %v2501
      %v2503 = vmul.f32 %v2490, %v2501
      %v2504 = vmul.f32 %v2491, %v2501
      %v2505 = vmul.f32 %v2492, %v2501
      %v2506 = vmul.f32 %v2493, %v2501
      %v2507 = vmul.f32 %v2494, %v2501
      %v2508 = vmul.f32 %v2495, %v2501
      %v2509 = vmul.f32 %v2496, %v2501
      %v2510 = vadd.f32 %v2473, %v2502
      %v2511 = vadd.f32 %v2474, %v2503
      %v2512 = vadd.f32 %v2475, %v2504
      %v2513 = vadd.f32 %v2476, %v2505
      %v2514 = vadd.f32 %v2477, %v2506
      %v2515 = vadd.f32 %v2478, %v2507
      %v2516 = vadd.f32 %v2479, %v2508
      %v2517 = vadd.f32 %v2480, %v2509
      %v2518 = vld [vmem:[%s4 + $0x1] sm:$0x1]
      %v2519 = vlaneseq
      %v2520 = vshrl.u32 %v2519, 7
      %v2521 = vsub.s32 0, %v2520
      %v2522 = vrot.slane %v2518, %v2521
      %v2523 = vadd.f32 %v2510, %v2522
      %v2524 = vadd.f32 %v2511, %v2522
      %v2525 = vadd.f32 %v2512, %v2522
      %v2526 = vadd.f32 %v2513, %v2522
      %v2527 = vadd.f32 %v2514, %v2522
      %v2528 = vadd.f32 %v2515, %v2522
      %v2529 = vadd.f32 %v2516, %v2522
      %v2530 = vadd.f32 %v2517, %v2522
      %v2531 = vmax.f32 %v2523, 0.0
      %v2532 = vmax.f32 %v2524, 0.0
      %v2533 = vmax.f32 %v2525, 0.0
      %v2534 = vmax.f32 %v2526, 0.0
      %v2535 = vmax.f32 %v2527, 0.0
      %v2536 = vmax.f32 %v2528, 0.0
      %v2537 = vmax.f32 %v2529, 0.0
      %v2538 = vmax.f32 %v2530, 0.0
      %v2539 = vpack.c.bf16 %v2532, %v2531
      %v2540 = vpack.c.bf16 %v2534, %v2533
      %v2541 = vpack.c.bf16 %v2536, %v2535
      %v2542 = vpack.c.bf16 %v2538, %v2537
      %v2547 = vunpack.c.l.b16 %v2539
      %v2548 = vunpack.c.h.b16 %v2539
      %v2549 = vunpack.c.l.b16 %v2540
      %v2550 = vunpack.c.h.b16 %v2540
      %v2551 = vunpack.c.l.b16 %v2541
      %v2552 = vunpack.c.h.b16 %v2541
      %v2553 = vunpack.c.l.b16 %v2542
      %v2554 = vunpack.c.h.b16 %v2542
      %v2555 = vpack.c.b16 %v2547, %v2547
      %v2556 = vpack.c.b16 %v2548, %v2548
      %v2557 = vpack.c.b16 %v2549, %v2549
      %v2558 = vpack.c.b16 %v2550, %v2550
      %v2559 = vpack.c.b16 %v2551, %v2551
      %v2560 = vpack.c.b16 %v2552, %v2552
      %v2561 = vpack.c.b16 %v2553, %v2553
      %v2562 = vpack.c.b16 %v2554, %v2554
      %2571 = vst [vmem:[%s278] sm:$0xf] %v2555
      %2572 = vst [vmem:[%s278 + $0x4] sm:$0xf] %v2556
      %2573 = vst [vmem:[%s278 + $0x8] sm:$0xf] %v2557
      %2574 = vst [vmem:[%s278 + $0xc] sm:$0xf] %v2558
      %2575 = vst [vmem:[%s278 + $0x10] sm:$0xf] %v2559
      %2576 = vst [vmem:[%s278 + $0x14] sm:$0xf] %v2560
      %2577 = vst [vmem:[%s278 + $0x18] sm:$0xf] %v2561
      %2578 = vst [vmem:[%s278 + $0x1c] sm:$0xf] %v2562
      %v2579 = vadd.f32 %v2531, %v2532
      %v2580 = vadd.f32 %v2579, %v2533
      %v2581 = vadd.f32 %v2580, %v2534
      %v2582 = vadd.f32 %v2581, %v2535
      %v2583 = vadd.f32 %v2582, %v2536
      %v2584 = vadd.f32 %v2583, %v2537
      %v2585 = vadd.f32 %v2584, %v2538
      %v2586 = vrot.slane %v2585, 4
      %v2587 = vadd.f32 %v2585, %v2586
      %v2588 = vrot.slane %v2587, 2
      %v2589 = vadd.f32 %v2587, %v2588
      %v2590 = vrot.slane %v2589, 1
      %v2591 = vadd.f32 %v2589, %v2590
      %2592 = vst [vmem:[%s282] sm:$0x1] %v2591
      %v2593 = vmul.f32 %v2531, %v2531
      %v2594 = vmul.f32 %v2532, %v2532
      %v2595 = vmul.f32 %v2533, %v2533
      %v2596 = vmul.f32 %v2534, %v2534
      %v2597 = vmul.f32 %v2535, %v2535
      %v2598 = vmul.f32 %v2536, %v2536
      %v2599 = vmul.f32 %v2537, %v2537
      %v2600 = vmul.f32 %v2538, %v2538
      %v2601 = vadd.f32 %v2593, %v2594
      %v2602 = vadd.f32 %v2601, %v2595
      %v2603 = vadd.f32 %v2602, %v2596
      %v2604 = vadd.f32 %v2603, %v2597
      %v2605 = vadd.f32 %v2604, %v2598
      %v2606 = vadd.f32 %v2605, %v2599
      %v2607 = vadd.f32 %v2606, %v2600
      %v2608 = vrot.slane %v2607, 4
      %v2609 = vadd.f32 %v2607, %v2608
      %v2610 = vrot.slane %v2609, 2
      %v2611 = vadd.f32 %v2609, %v2610
      %v2612 = vrot.slane %v2611, 1
      %v2613 = vadd.f32 %v2611, %v2612
      %2614 = vst [vmem:[%s282 + $0x1] sm:$0x1] %v2613
      %p2615 = scmp.lt.s32.totalorder %s18, 1
      %s2616 = scalar_select %p2615, %s18, 1
      %s2617 = smul.addr %s2616, 8
      %s2618 = smul.addr %s2617, 4
      %s2619 = scalar_lea.vmem %s5, %s2618
      %p2620 = scmp.lt.s32.totalorder %s18, 1
      %s2621 = scalar_select %p2620, %s18, 1
      %s2622 = smul.addr %s2621, 8
      %s2623 = scalar_lea.vmem %s6, %s2622
      // Predicated region
      $region41: #{basic_block_forward.4} parent=39 // pred_check
        %p2624 = pneg %p151
      $region42: #{basic_block_forward.4} parent=39 // pred_check_branch
        %2626 = sbr.rel (%p2624) target = $region44
      $region43: #{basic_block_forward.4} parent=39 // pred_region
        _
      $region44: #{basic_block_forward.4} parent=39 // pred_fallthru
        _
      // Predicated region
      $region45: #{basic_block_forward.4} parent=39 // pred_check
        %p2627 = pneg %p177
      $region46: #{basic_block_forward.4} parent=39 // pred_check_branch
        %2629 = sbr.rel (%p2627) target = $region48
      $region47: #{basic_block_forward.4} parent=39 // pred_region
        _
      $region48: #{basic_block_forward.4} parent=39 // pred_fallthru
        _
    $region40: #{basic_block_forward.4} parent=5 // pred_fallthru
      _
    %p2630 = scmp.le.s32.totalorder 2, %s13
    // Predicated region
    $region49: #{basic_block_forward.4} parent=5 // pred_check
      %p2631 = pneg %p2630
    $region50: #{basic_block_forward.4} parent=5 // pred_check_branch
      %2633 = sbr.rel (%p2631) target = $region52
    $region51: #{basic_block_forward.4} parent=5 // pred_region
      %s2634 = ssub.s32 %s13, 2
      // Predicated region
      $region53: #{basic_block_forward.4} parent=51 // pred_check
        %p2635 = pneg %p157
      $region54: #{basic_block_forward.4} parent=51 // pred_check_branch
        %2637 = sbr.rel (%p2635) target = $region56
      $region55: #{basic_block_forward.4} parent=51 // pred_region
        %p2638 = scmp.lt.s32.totalorder %s19, 1
        %s2639 = scalar_select %p2638, %s19, 1
        %s2640 = smul.addr %s2639, 8
        %s2641 = smul.addr %s2640, 4
        %s2642 = scalar_lea.vmem %s5, %s2641
      $region56: #{basic_block_forward.4} parent=51 // pred_fallthru
        _
      // Predicated region
      $region57: #{basic_block_forward.4} parent=51 // pred_check
        %p2643 = pneg %p183
      $region58: #{basic_block_forward.4} parent=51 // pred_check_branch
        %2645 = sbr.rel (%p2643) target = $region60
      $region59: #{basic_block_forward.4} parent=51 // pred_region
        %p2646 = scmp.lt.s32.totalorder %s19, 1
        %s2647 = scalar_select %p2646, %s19, 1
        %s2648 = smul.addr %s2647, 8
        %s2649 = scalar_lea.vmem %s6, %s2648
      $region60: #{basic_block_forward.4} parent=51 // pred_fallthru
        _
    $region52: #{basic_block_forward.4} parent=5 // pred_fallthru
      _
  $region6: #{basic_block_forward.4} parent=0 // loop_footer
    %s17 = sadd.s32 1, %s13
  $region7: #{basic_block_forward.4} parent=0 // loop_footer_branch
    %12 = sbr.rel target = $region3
  $region8: #{basic_block_forward.4} parent=0 // loop_exit
    _

</llo_original>
